<compile_context>
chip_gen: v5e
topology: v5e:2x2
jax: 0.10.0
libtpu: 0.0.40
codegen_flags: <defaults>
</compile_context>

<pallas_src>
import jax
import jax.numpy as jnp
from jax import lax
from jax.experimental import pallas as pl
from jax.experimental.pallas import tpu as pltpu
import numpy as np

_HIGHEST = jax.lax.Precision.HIGHEST


def cbam_kernel(x_ref, w1t_ref, w2t_ref, mavg_ref, mmax_ref, o_ref):
    # x_ref:    (Bt, C, HW)  input slab (lane-dense: HW on lanes)      VMEM
    # w1t_ref:  (C, HID)     first Linear weight, pre-transposed       VMEM
    # w2t_ref:  (HID, C)     second Linear weight, pre-transposed      VMEM
    # mavg_ref: (HW, HW)     7x7 conv, avg-channel taps as dense matrix
    # mmax_ref: (HW, HW)     7x7 conv, max-channel taps as dense matrix
    # o_ref:    (Bt, C, HW)  output slab
    xb = x_ref[...].astype(jnp.float32)                      # (Bt, C, HW)
    bt, c, hw = xb.shape

    # ---- channel attention: global avg / max pool over the spatial lanes ----
    chn_avg = jnp.sum(xb, axis=-1) * (1.0 / hw)              # (Bt, C)
    chn_max = jnp.max(xb, axis=-1)                           # (Bt, C)

    w1t = w1t_ref[...].astype(jnp.float32)                   # (C, HID)
    w2t = w2t_ref[...].astype(jnp.float32)                   # (HID, C)

    # Fused excitation MLP: one first-layer matmul for both pooled vectors
    # (stacked along rows), then one second-layer matmul on the summed hidden
    # activations.  Identical to the two separate bias-free MLP passes.
    pooled = jnp.concatenate([chn_avg, chn_max], axis=0)     # (2*Bt, C)
    hid = jnp.maximum(
        jnp.dot(pooled, w1t, preferred_element_type=jnp.float32,
                precision=_HIGHEST), 0.0)                    # (2*Bt, HID)
    h = hid[:bt] + hid[bt:]                                  # (Bt, HID)
    gate = jax.nn.sigmoid(
        jnp.dot(h, w2t, preferred_element_type=jnp.float32,
                precision=_HIGHEST))                         # (Bt, C)

    chn_cbam = xb * gate[:, :, None]                         # (Bt, C, HW)

    # ---- spatial attention: channel mean/max, 7x7 conv as two MXU matmuls ----
    avg_out = jnp.mean(chn_cbam, axis=1)                     # (Bt, HW)
    max_out = jnp.max(chn_cbam, axis=1)                      # (Bt, HW)

    conv = (jnp.dot(avg_out, mavg_ref[...], preferred_element_type=jnp.float32,
                    precision=_HIGHEST)
            + jnp.dot(max_out, mmax_ref[...], preferred_element_type=jnp.float32,
                      precision=_HIGHEST))                   # (Bt, HW)
    spa = jax.nn.sigmoid(conv)                               # (Bt, HW)

    o_ref[...] = (chn_cbam * spa[:, None, :]).astype(o_ref.dtype)


def _spatial_conv_as_matrices(wconv, H, W):
    """Expand the (1, 2, K, K) conv weight (stride 1, padding K//2, OIHW) into
    two dense (H*W, H*W) matrices (avg channel, max channel) with the zero
    padding baked in, so that
        conv(cat)[oy, ox] == (avg @ M_avg + max @ M_max)[oy*W + ox].
    Host-side numpy only (runs once per weight set)."""
    # TODO(synk): at production spatial sizes (HW >~ 1024) replace this dense
    # form with a block-banded matrix (only 7 nonzero WxW blocks per block-row)
    # or 49 pltpu.roll + mask MACs -- dense (HW, HW) scales quadratically and
    # would exceed v7x's 64 MiB VMEM.
    wconv = np.asarray(wconv, np.float32)                    # (1, 2, K, K)
    K = wconv.shape[-1]
    P = (K - 1) // 2
    w = wconv[0]                                             # (2, K, K)
    m = np.zeros((2, H, W, H, W), np.float32)                # (c, iy, ix, oy, ox)
    for oy in range(H):
        for ox in range(W):
            for ky in range(K):
                iy = oy + ky - P
                if iy < 0 or iy >= H:
                    continue
                for kx in range(K):
                    ix = ox + kx - P
                    if ix < 0 or ix >= W:
                        continue
                    m[:, iy, ix, oy, ox] = w[:, ky, kx]
    m = m.reshape(2, H * W, H * W)
    return jnp.asarray(m[0]), jnp.asarray(m[1])


def cbam_prepare_params(w1, w2, wconv, H, W):
    """One-time, host-side weight preparation (hoisted out of the forward)."""
    w1t = jnp.asarray(np.asarray(w1, np.float32).T)          # (C, HID)
    w2t = jnp.asarray(np.asarray(w2, np.float32).T)          # (HID, C)
    m_avg, m_max = _spatial_conv_as_matrices(wconv, H, W)    # (HW, HW) x2
    return {"w1t": w1t, "w2t": w2t, "m_avg": m_avg, "m_max": m_max}


def _pick_block_batch(B, per_batch_bytes, input_block_budget):
    """Largest divisor of B such that (a) the grid has >= 2 steps so BlockSpec
    software pipelining overlaps DMA with compute, and (b) the per-step input
    block fits the budget.  Prefer an even grid length (v7x: 2 TensorCores)."""
    divisors = [d for d in range(1, B + 1) if B % d == 0]
    cands = [d for d in divisors
             if d <= max(1, B // 2) and d * per_batch_bytes <= input_block_budget]
    if not cands:
        return 1
    even = [d for d in cands if (B // d) % 2 == 0]
    return max(even) if even else max(cands)


def cbam_forward(x, params, *, block_batch=None):
    """x: (B, C, H, W); params from cbam_prepare_params."""
    B, C, H, W = x.shape
    HW = H * W
    w1t, w2t = params["w1t"], params["w2t"]
    m_avg, m_max = params["m_avg"], params["m_max"]
    HID = w1t.shape[1]

    # Lane-dense layout: flatten the spatial dims (free reshape outside).
    x2 = x.reshape(B, C, HW)

    itemsize = jnp.dtype(x.dtype).itemsize
    per_batch = C * HW * itemsize

    # Per-generation input-block budget: 4 MiB is safe on 64 MiB-VMEM parts
    # (v7x); 8 MiB on 128 MiB parts (v5e/v6e) for better HBM utilization.
    try:
        vmem_cap = int(pltpu.get_tpu_info().vmem_capacity_bytes)
    except Exception:
        vmem_cap = 64 << 20
    input_budget = (8 << 20) if vmem_cap >= (128 << 20) else (4 << 20)

    if block_batch is None:
        block_batch = _pick_block_batch(B, per_batch, input_budget)
    assert B % block_batch == 0

    # Scoped-VMEM sizing: double-buffered in/out blocks, doubly-allocated (but
    # singly DMA'd) constants, ~2 live full-size f32 temporaries, headroom.
    blk_io = block_batch * per_batch
    const_bytes = (C * HID + HID * C + 2 * HW * HW) * 4
    blk_f32 = block_batch * C * HW * 4
    needed = 2 * (blk_io + blk_io) + 2 * const_bytes + 2 * blk_f32 + (2 << 20)
    vmem_limit = int(min(max(needed, 32 << 20), 48 << 20))

    out2 = pl.pallas_call(
        cbam_kernel,
        out_shape=jax.ShapeDtypeStruct((B, C, HW), x.dtype),
        grid=(B // block_batch,),
        in_specs=[
            pl.BlockSpec((block_batch, C, HW), lambda b: (b, 0, 0)),
            pl.BlockSpec((C, HID), lambda b: (0, 0)),
            pl.BlockSpec((HID, C), lambda b: (0, 0)),
            pl.BlockSpec((HW, HW), lambda b: (0, 0)),
            pl.BlockSpec((HW, HW), lambda b: (0, 0)),
        ],
        out_specs=pl.BlockSpec((block_batch, C, HW), lambda b: (b, 0, 0)),
        compiler_params=pltpu.CompilerParams(
            dimension_semantics=("parallel",),
            vmem_limit_bytes=vmem_limit),
    )(x2, w1t, w2t, m_avg, m_max)

    return out2.reshape(B, C, H, W)


def cbam_reference(x, w1, w2, wconv):
    """Pure-JAX reference matching the PyTorch forward (exact f32)."""
    avg = jnp.mean(x, axis=(2, 3))                           # (B, C)
    mx = jnp.max(x, axis=(2, 3))                             # (B, C)

    def mlp(v):
        hid = jnp.maximum(jnp.dot(v, w1.T, precision=_HIGHEST), 0.0)
        return jnp.dot(hid, w2.T, precision=_HIGHEST)

    gate = jax.nn.sigmoid(mlp(avg) + mlp(mx))[:, :, None, None]
    chn = x * gate
    avg_out = jnp.mean(chn, axis=1, keepdims=True)
    max_out = jnp.max(chn, axis=1, keepdims=True)
    cat = jnp.concatenate([avg_out, max_out], axis=1)
    conv = lax.conv_general_dilated(
        cat, wconv, window_strides=(1, 1), padding=((3, 3), (3, 3)),
        dimension_numbers=("NCHW", "OIHW", "NCHW"), precision=_HIGHEST)
    spa = jax.nn.sigmoid(conv)
    return chn * spa


if __name__ == "__main__":
    B, C, H, W = 2, 32, 16, 16
    reduction = 16
    HID = C // reduction                                     # = 2

    key = jax.random.PRNGKey(0)
    kx, k1, k2, kc = jax.random.split(key, 4)

    x = jax.random.normal(kx, (B, C, H, W), dtype=jnp.float32)
    # Deterministic synthetic weights (shapes match nn.Linear / nn.Conv2d,
    # both bias-free as in the source module).
    w1 = jax.random.normal(k1, (HID, C), dtype=jnp.float32) / np.sqrt(C)
    w2 = jax.random.normal(k2, (C, HID), dtype=jnp.float32) / np.sqrt(HID)
    wconv = jax.random.normal(kc, (1, 2, 7, 7), dtype=jnp.float32) / np.sqrt(2 * 49)

    # Weight prep hoisted out of the forward path; forward is jitted so the
    # pallas_call (and any residual host math) compiles once.
    params = cbam_prepare_params(w1, w2, wconv, H, W)
    fwd = jax.jit(cbam_forward)

    out = jax.block_until_ready(fwd(x, params))

    ref = cbam_reference(x, w1, w2, wconv)
    np.testing.assert_allclose(np.asarray(out), np.asarray(ref),
                               rtol=1e-3, atol=1e-4)

    print("KERNEL_OK")
</pallas_src>

<mosaic_0001>
module attributes {stable_mosaic.version = 11 : i64} {
  func.func @cbam_kernel(%arg0: i32, %arg1: memref<1x32x256xf32, #tpu.memory_space<vmem>>, %arg2: memref<32x2xf32, #tpu.memory_space<vmem>>, %arg3: memref<2x32xf32, #tpu.memory_space<vmem>>, %arg4: memref<256x256xf32, #tpu.memory_space<vmem>>, %arg5: memref<256x256xf32, #tpu.memory_space<vmem>>, %arg6: memref<1x32x256xf32, #tpu.memory_space<vmem>>) attributes {dimension_semantics = [#tpu.dimension_semantics<parallel>], iteration_bounds = array<i64: 2>, scalar_prefetch = 0 : i64, scratch_operands = 0 : i64, tpu.core_type = #tpu.core_type<tc>, window_params = [{transform_indices = @transform_0, window_bounds = array<i64: 1, 32, 256>}, {pipeline_mode = #tpu.pipeline_mode<synchronous>, transform_indices = @transform_1, window_bounds = array<i64: 32, 2>}, {pipeline_mode = #tpu.pipeline_mode<synchronous>, transform_indices = @transform_2, window_bounds = array<i64: 2, 32>}, {pipeline_mode = #tpu.pipeline_mode<synchronous>, transform_indices = @transform_3, window_bounds = array<i64: 256, 256>}, {pipeline_mode = #tpu.pipeline_mode<synchronous>, transform_indices = @transform_4, window_bounds = array<i64: 256, 256>}, {transform_indices = @transform_5, window_bounds = array<i64: 1, 32, 256>}]} {
    %c0 = arith.constant 0 : index
    %c0_0 = arith.constant 0 : index
    %c0_1 = arith.constant 0 : index
    %0 = vector.load %arg1[%c0, %c0_0, %c0_1] : memref<1x32x256xf32, #tpu.memory_space<vmem>>, vector<1x32x256xf32>
    %cst = arith.constant dense<0.000000e+00> : vector<1x32xf32>
    %1 = vector.multi_reduction <add>, %0, %cst [2] : vector<1x32x256xf32> to vector<1x32xf32>
    %cst_2 = arith.constant 3.906250e-03 : f32
    %2 = vector.broadcast %cst_2 : f32 to vector<1x32xf32>
    %3 = arith.mulf %1, %2 : vector<1x32xf32>
    %cst_3 = arith.constant dense<0xFF800000> : vector<1x32xf32>
    %4 = vector.multi_reduction <maximumf>, %0, %cst_3 [2] : vector<1x32x256xf32> to vector<1x32xf32>
    %c0_4 = arith.constant 0 : index
    %c0_5 = arith.constant 0 : index
    %5 = vector.load %arg2[%c0_4, %c0_5] : memref<32x2xf32, #tpu.memory_space<vmem>>, vector<32x2xf32>
    %c0_6 = arith.constant 0 : index
    %c0_7 = arith.constant 0 : index
    %6 = vector.load %arg3[%c0_6, %c0_7] : memref<2x32xf32, #tpu.memory_space<vmem>>, vector<2x32xf32>
    %7 = tpu.concatenate %3, %4 in 0 : vector<1x32xf32>, vector<1x32xf32> -> vector<2x32xf32>
    %cst_8 = arith.constant dense<0.000000e+00> : vector<2x2xf32>
    %8 = tpu.matmul %7, %5, %cst_8 {dimension_numbers = #tpu.dot_dimension_numbers<[1], [0], [0], [1], [0, 0, 1, 1], [], []>, precision = #tpu.contract_precision<fp32>} : vector<2x32xf32>, vector<32x2xf32>, vector<2x2xf32> -> vector<2x2xf32>
    %cst_9 = arith.constant 0.000000e+00 : f32
    %9 = vector.broadcast %cst_9 : f32 to vector<2x2xf32>
    %10 = arith.maximumf %8, %9 : vector<2x2xf32>
    %11 = vector.extract_strided_slice %10 {offsets = [0, 0], sizes = [1, 2], strides = [1, 1]} : vector<2x2xf32> to vector<1x2xf32>
    %12 = vector.extract_strided_slice %10 {offsets = [1, 0], sizes = [1, 2], strides = [1, 1]} : vector<2x2xf32> to vector<1x2xf32>
    %13 = arith.addf %11, %12 : vector<1x2xf32>
    %cst_10 = arith.constant dense<0.000000e+00> : vector<1x32xf32>
    %14 = tpu.matmul %13, %6, %cst_10 {dimension_numbers = #tpu.dot_dimension_numbers<[1], [0], [0], [1], [0, 0, 1, 1], [], []>, precision = #tpu.contract_precision<fp32>} : vector<1x2xf32>, vector<2x32xf32>, vector<1x32xf32> -> vector<1x32xf32>
    %15 = arith.negf %14 : vector<1x32xf32>
    %16 = math.exp %15 : vector<1x32xf32>
    %cst_11 = arith.constant 1.000000e+00 : f32
    %17 = vector.broadcast %cst_11 : f32 to vector<1x32xf32>
    %18 = arith.addf %17, %16 : vector<1x32xf32>
    %19 = arith.divf %17, %18 : vector<1x32xf32>
    %20 = vector.shape_cast %19 : vector<1x32xf32> to vector<1x32x1xf32>
    %21 = vector.broadcast %20 : vector<1x32x1xf32> to vector<1x32x256xf32>
    %22 = arith.mulf %0, %21 : vector<1x32x256xf32>
    %cst_12 = arith.constant dense<0.000000e+00> : vector<1x256xf32>
    %23 = vector.multi_reduction <add>, %22, %cst_12 [1] : vector<1x32x256xf32> to vector<1x256xf32>
    %cst_13 = arith.constant 3.200000e+01 : f32
    %24 = vector.broadcast %cst_13 : f32 to vector<1x256xf32>
    %25 = arith.divf %23, %24 : vector<1x256xf32>
    %cst_14 = arith.constant dense<0xFF800000> : vector<1x256xf32>
    %26 = vector.multi_reduction <maximumf>, %22, %cst_14 [1] : vector<1x32x256xf32> to vector<1x256xf32>
    %c0_15 = arith.constant 0 : index
    %c0_16 = arith.constant 0 : index
    %27 = vector.load %arg4[%c0_15, %c0_16] : memref<256x256xf32, #tpu.memory_space<vmem>>, vector<256x256xf32>
    %cst_17 = arith.constant dense<0.000000e+00> : vector<1x256xf32>
    %28 = tpu.matmul %25, %27, %cst_17 {dimension_numbers = #tpu.dot_dimension_numbers<[1], [0], [0], [1], [0, 0, 1, 1], [], []>, precision = #tpu.contract_precision<fp32>} : vector<1x256xf32>, vector<256x256xf32>, vector<1x256xf32> -> vector<1x256xf32>
    %c0_18 = arith.constant 0 : index
    %c0_19 = arith.constant 0 : index
    %29 = vector.load %arg5[%c0_18, %c0_19] : memref<256x256xf32, #tpu.memory_space<vmem>>, vector<256x256xf32>
    %cst_20 = arith.constant dense<0.000000e+00> : vector<1x256xf32>
    %30 = tpu.matmul %26, %29, %cst_20 {dimension_numbers = #tpu.dot_dimension_numbers<[1], [0], [0], [1], [0, 0, 1, 1], [], []>, precision = #tpu.contract_precision<fp32>} : vector<1x256xf32>, vector<256x256xf32>, vector<1x256xf32> -> vector<1x256xf32>
    %31 = arith.addf %28, %30 : vector<1x256xf32>
    %32 = arith.negf %31 : vector<1x256xf32>
    %33 = math.exp %32 : vector<1x256xf32>
    %cst_21 = arith.constant 1.000000e+00 : f32
    %34 = vector.broadcast %cst_21 : f32 to vector<1x256xf32>
    %35 = arith.addf %34, %33 : vector<1x256xf32>
    %36 = arith.divf %34, %35 : vector<1x256xf32>
    %37 = vector.shape_cast %36 : vector<1x256xf32> to vector<1x1x256xf32>
    %38 = vector.broadcast %37 : vector<1x1x256xf32> to vector<1x32x256xf32>
    %39 = arith.mulf %22, %38 : vector<1x32x256xf32>
    %c0_22 = arith.constant 0 : index
    %c0_23 = arith.constant 0 : index
    %c0_24 = arith.constant 0 : index
    %40 = vector.load %arg6[%c0_22, %c0_23, %c0_24] : memref<1x32x256xf32, #tpu.memory_space<vmem>>, vector<1x32x256xf32>
    tpu.vector_store %arg6[%c0_22, %c0_23, %c0_24], %39 {strides = array<i32>} : memref<1x32x256xf32, #tpu.memory_space<vmem>>, vector<1x32x256xf32>,
    return
  }
  func.func @transform_0(%arg0: i32) -> (i32, i32, i32) {
    %c0_i32 = arith.constant 0 : i32
    %c0_i32_0 = arith.constant 0 : i32
    %c0_i32_1 = arith.constant 0 : i32
    return %arg0, %c0_i32, %c0_i32_0 : i32, i32, i32
  }
  func.func @transform_1(%arg0: i32) -> (i32, i32) {
    %c0_i32 = arith.constant 0 : i32
    %c0_i32_0 = arith.constant 0 : i32
    %c0_i32_1 = arith.constant 0 : i32
    return %c0_i32, %c0_i32_0 : i32, i32
  }
  func.func @transform_2(%arg0: i32) -> (i32, i32) {
    %c0_i32 = arith.constant 0 : i32
    %c0_i32_0 = arith.constant 0 : i32
    %c0_i32_1 = arith.constant 0 : i32
    return %c0_i32, %c0_i32_0 : i32, i32
  }
  func.func @transform_3(%arg0: i32) -> (i32, i32) {
    %c0_i32 = arith.constant 0 : i32
    %c0_i32_0 = arith.constant 0 : i32
    %c0_i32_1 = arith.constant 0 : i32
    return %c0_i32, %c0_i32_0 : i32, i32
  }
  func.func @transform_4(%arg0: i32) -> (i32, i32) {
    %c0_i32 = arith.constant 0 : i32
    %c0_i32_0 = arith.constant 0 : i32
    %c0_i32_1 = arith.constant 0 : i32
    return %c0_i32, %c0_i32_0 : i32, i32
  }
  func.func @transform_5(%arg0: i32) -> (i32, i32, i32) {
    %c0_i32 = arith.constant 0 : i32
    %c0_i32_0 = arith.constant 0 : i32
    %c0_i32_1 = arith.constant 0 : i32
    return %arg0, %c0_i32, %c0_i32_0 : i32, i32, i32
  }
}

</mosaic_0001>

<llo_original>
// kernel: cbam_forward.1
$region0: #{cbam_forward.1}
  #allocation0 [shape = 'u32[]', space=smem, size = 0x4, offset = 0x4, fixed_abs, tag = 'smem constant byte address 0x4 - core index']
  #allocation1 [shape = 'u32[72,128]{1,0:T(1,128)}', space=vmem, size = 0x9000, scoped, tag = 'internal scratch']
  %s0 = inlined_call_operand.vmem [shape: f32[2,32,256], index: 0, kind: input, shape index: {}]
  %s1 = inlined_call_operand.vmem [shape: f32[32,2], index: 1, kind: input, shape index: {}]
  %s2 = inlined_call_operand.vmem [shape: f32[2,32], index: 2, kind: input, shape index: {}]
  %s3 = inlined_call_operand.vmem [shape: f32[256,256], index: 3, kind: input, shape index: {}]
  %s4 = inlined_call_operand.hbm [shape: f32[256,256], index: 4, kind: input, shape index: {}]
  %s5 = inlined_call_operand.vmem [shape: f32[2,32,256], index: 5, kind: output, shape index: {}]
  %s6 = sld [smem:[#allocation0]]
  $region57: #{cbam_forward.1} parent=0
    _
  %s8 = ssub.s32 1, %s6
  %s9 = scalar_select 0, %s8, %s6
  $region1: #{cbam_forward.1} parent=0
    #allocation2 [shape = 'u8[262144]{0}', space=vmem, size = 0x40000, scoped, tag = 'input window, operand 4, single buffered']
    #allocation3 [shape = 's32[2]{0}', space=sflag, size = 0x8, scoped, tag = 'scoped memory for cbam_forward.1']
    %10 = vsyncpa [#allocation3], 0
    loop: start=0, step=1, limit=4
    $region2: #{cbam_forward.1} parent=1 // loop_pre_header
      _
    $region3: #{cbam_forward.1} parent=1 // loop_header
      %s12 = sphi 0, %s16
      %p13 = scmp.ge.s32.totalorder %s12, 4
      %s22 = sphi 0, %s24
      %s25 = sphi 0, %s22
      %s26 = sphi 0, %s25
      %s42 = sphi 0, %s26
      %s46 = sphi 0, %s46
      %s48 = sphi 0, %s46
      %s49 = sphi 0, %s48
      %s63 = sphi 0, %s49
      %s67 = sphi 0, %s67
      %s69 = sphi 0, %s67
      %s70 = sphi 0, %s69
      %s84 = sphi 0, %s70
      %s88 = sphi 0, %s88
      %s90 = sphi 0, %s88
      %s91 = sphi 0, %s90
      %s105 = sphi 0, %s91
      %s109 = sphi 0, %s109
      %s111 = sphi 0, %s109
      %s112 = sphi 0, %s111
      %s126 = sphi 0, %s112
      %s132 = sphi 0, %s134
      %s135 = sphi 0, %s132
      %s136 = sphi 0, %s135
      %s152 = sphi 0, %s136
    $region4: #{cbam_forward.1} parent=1 // loop_header_branch
      %15 = sbr.rel (%p13) target = $region8
    $region5: #{cbam_forward.1} parent=1 // loop_body
      %s17 = ssub.s32 %s12, 1
      %s18 = ssub.s32 %s12, 2
      %s19 = sadd.s32 %s12, 1
      %s20 = ssub.s32 %s12, %s19
      %p21 = scmp.eq.s32.totalorder %s20, 0
      %s23 = sadd.s32 %s22, 1
      %s24 = scalar_select %p21, %s22, %s23
      %p27 = pneg %p21
      %p28 = scmp.eq.s32.totalorder %s12, 1
      %p29 = por %p27, %p28
      %p30 = scmp.ne.s32.totalorder %s22, %s25
      %p31 = scmp.eq.s32.totalorder %s12, 0
      %p32 = por %p30, %p31
      %p33 = scmp.ne.s32.totalorder %s22, %s25
      %p34 = scmp.eq.s32.totalorder %s17, 1
      %p35 = por %p33, %p34
      %p36 = scmp.ne.s32.totalorder %s25, %s26
      %p37 = scmp.eq.s32.totalorder %s17, 0
      %p38 = por %p36, %p37
      %p39 = scmp.ne.s32.totalorder %s25, %s26
      %p40 = scmp.eq.s32.totalorder %s18, 1
      %p41 = por %p39, %p40
      %p43 = scmp.ne.s32.totalorder %s26, %s42
      %p44 = scmp.eq.s32.totalorder %s18, 0
      %p45 = por %p43, %p44
      %s47 = sadd.s32 %s46, 1
      %p50 = scmp.eq.s32.totalorder %s12, 1
      %p51 = scmp.ne.s32.totalorder %s46, %s48
      %p52 = scmp.eq.s32.totalorder %s12, 0
      %p53 = por %p51, %p52
      %p54 = scmp.ne.s32.totalorder %s46, %s48
      %p55 = scmp.eq.s32.totalorder %s17, 1
      %p56 = por %p54, %p55
      %p57 = scmp.ne.s32.totalorder %s48, %s49
      %p58 = scmp.eq.s32.totalorder %s17, 0
      %p59 = por %p57, %p58
      %p60 = scmp.ne.s32.totalorder %s48, %s49
      %p61 = scmp.eq.s32.totalorder %s18, 1
      %p62 = por %p60, %p61
      %p64 = scmp.ne.s32.totalorder %s49, %s63
      %p65 = scmp.eq.s32.totalorder %s18, 0
      %p66 = por %p64, %p65
      %s68 = sadd.s32 %s67, 1
      %p71 = scmp.eq.s32.totalorder %s12, 1
      %p72 = scmp.ne.s32.totalorder %s67, %s69
      %p73 = scmp.eq.s32.totalorder %s12, 0
      %p74 = por %p72, %p73
      %p75 = scmp.ne.s32.totalorder %s67, %s69
      %p76 = scmp.eq.s32.totalorder %s17, 1
      %p77 = por %p75, %p76
      %p78 = scmp.ne.s32.totalorder %s69, %s70
      %p79 = scmp.eq.s32.totalorder %s17, 0
      %p80 = por %p78, %p79
      %p81 = scmp.ne.s32.totalorder %s69, %s70
      %p82 = scmp.eq.s32.totalorder %s18, 1
      %p83 = por %p81, %p82
      %p85 = scmp.ne.s32.totalorder %s70, %s84
      %p86 = scmp.eq.s32.totalorder %s18, 0
      %p87 = por %p85, %p86
      %s89 = sadd.s32 %s88, 1
      %p92 = scmp.eq.s32.totalorder %s12, 1
      %p93 = scmp.ne.s32.totalorder %s88, %s90
      %p94 = scmp.eq.s32.totalorder %s12, 0
      %p95 = por %p93, %p94
      %p96 = scmp.ne.s32.totalorder %s88, %s90
      %p97 = scmp.eq.s32.totalorder %s17, 1
      %p98 = por %p96, %p97
      %p99 = scmp.ne.s32.totalorder %s90, %s91
      %p100 = scmp.eq.s32.totalorder %s17, 0
      %p101 = por %p99, %p100
      %p102 = scmp.ne.s32.totalorder %s90, %s91
      %p103 = scmp.eq.s32.totalorder %s18, 1
      %p104 = por %p102, %p103
      %p106 = scmp.ne.s32.totalorder %s91, %s105
      %p107 = scmp.eq.s32.totalorder %s18, 0
      %p108 = por %p106, %p107
      %s110 = sadd.s32 %s109, 1
      %p113 = scmp.eq.s32.totalorder %s12, 1
      %p114 = scmp.ne.s32.totalorder %s109, %s111
      %p115 = scmp.eq.s32.totalorder %s12, 0
      %p116 = por %p114, %p115
      %p117 = scmp.ne.s32.totalorder %s109, %s111
      %p118 = scmp.eq.s32.totalorder %s17, 1
      %p119 = por %p117, %p118
      %p120 = scmp.ne.s32.totalorder %s111, %s112
      %p121 = scmp.eq.s32.totalorder %s17, 0
      %p122 = por %p120, %p121
      %p123 = scmp.ne.s32.totalorder %s111, %s112
      %p124 = scmp.eq.s32.totalorder %s18, 1
      %p125 = por %p123, %p124
      %p127 = scmp.ne.s32.totalorder %s112, %s126
      %p128 = scmp.eq.s32.totalorder %s18, 0
      %p129 = por %p127, %p128
      %s130 = ssub.s32 %s12, %s19
      %p131 = scmp.eq.s32.totalorder %s130, 0
      %s133 = sadd.s32 %s132, 1
      %s134 = scalar_select %p131, %s132, %s133
      %p137 = pneg %p131
      %p138 = scmp.eq.s32.totalorder %s12, 1
      %p139 = por %p137, %p138
      %p140 = scmp.ne.s32.totalorder %s132, %s135
      %p141 = scmp.eq.s32.totalorder %s12, 0
      %p142 = por %p140, %p141
      %p143 = scmp.ne.s32.totalorder %s132, %s135
      %p144 = scmp.eq.s32.totalorder %s17, 1
      %p145 = por %p143, %p144
      %p146 = scmp.ne.s32.totalorder %s135, %s136
      %p147 = scmp.eq.s32.totalorder %s17, 0
      %p148 = por %p146, %p147
      %p149 = scmp.ne.s32.totalorder %s135, %s136
      %p150 = scmp.eq.s32.totalorder %s18, 1
      %p151 = por %p149, %p150
      %p153 = scmp.ne.s32.totalorder %s136, %s152
      %p154 = scmp.eq.s32.totalorder %s18, 0
      %p155 = por %p153, %p154
      %p156 = scmp.le.s32.totalorder 1, %s12
      %p157 = scmp.lt.s32.totalorder %s12, 3
      %p158 = pnand %p156, %p157
      %p159 = pneg %p158
      // Predicated region
      $region9: #{cbam_forward.1} parent=5 // pred_check
        _
      $region10: #{cbam_forward.1} parent=5 // pred_check_branch
        %161 = sbr.rel (%p158) target = $region12
      $region11: #{cbam_forward.1} parent=5 // pred_region
        %s162 = ssub.s32 %s12, 1
        // Predicated region
        $region13: #{cbam_forward.1} parent=11 // pred_check
          %p163 = pneg %p59
        $region14: #{cbam_forward.1} parent=11 // pred_check_branch
          %165 = sbr.rel (%p163) target = $region16
        $region15: #{cbam_forward.1} parent=11 // pred_region
          _
        $region16: #{cbam_forward.1} parent=11 // pred_fallthru
          _
        // Predicated region
        $region17: #{cbam_forward.1} parent=11 // pred_check
          %p166 = pneg %p80
        $region18: #{cbam_forward.1} parent=11 // pred_check_branch
          %168 = sbr.rel (%p166) target = $region20
        $region19: #{cbam_forward.1} parent=11 // pred_region
          _
        $region20: #{cbam_forward.1} parent=11 // pred_fallthru
          _
        // Predicated region
        $region21: #{cbam_forward.1} parent=11 // pred_check
          %p169 = pneg %p101
        $region22: #{cbam_forward.1} parent=11 // pred_check_branch
          %171 = sbr.rel (%p169) target = $region24
        $region23: #{cbam_forward.1} parent=11 // pred_region
          _
        $region24: #{cbam_forward.1} parent=11 // pred_fallthru
          _
        // Predicated region
        $region25: #{cbam_forward.1} parent=11 // pred_check
          %p172 = pneg %p122
        $region26: #{cbam_forward.1} parent=11 // pred_check_branch
          %174 = sbr.rel (%p172) target = $region28
        $region27: #{cbam_forward.1} parent=11 // pred_region
          %176 = vsyncadd [#allocation3], 0
          %s177 = sshll.u32 %s4, 4
          %s178 = int_to_ptr.hbm [resolvable:$true] %s177
          %s179 = sshll.u32 [#allocation2], 4
          %s180 = int_to_ptr.vmem [resolvable:$true] %s179
          %185 = dma.hbm_to_vmem [thread:$0]  %s178, 8192, %s180, [#allocation3], 256, 256, 16
        $region28: #{cbam_forward.1} parent=11 // pred_fallthru
          _
      $region12: #{cbam_forward.1} parent=5 // pred_fallthru
        _
      %p186 = scmp.lt.s32.totalorder %s12, 2
      // Predicated region
      $region29: #{cbam_forward.1} parent=5 // pred_check
        %p187 = pneg %p186
      $region30: #{cbam_forward.1} parent=5 // pred_check_branch
        %189 = sbr.rel (%p187) target = $region32
      $region31: #{cbam_forward.1} parent=5 // pred_region
        // Predicated region
        $region33: #{cbam_forward.1} parent=31 // pred_check
          %p190 = pneg %p32
        $region34: #{cbam_forward.1} parent=31 // pred_check_branch
          %192 = sbr.rel (%p190) target = $region36
        $region35: #{cbam_forward.1} parent=31 // pred_region
          %p193 = scmp.lt.s32.totalorder %s12, 1
          %s194 = scalar_select %p193, %s12, 1
          %s195 = smul.addr %s194, 8
          %s196 = smul.addr %s195, 8
          %s197 = scalar_lea.vmem %s0, %s196
        $region36: #{cbam_forward.1} parent=31 // pred_fallthru
          _
      $region32: #{cbam_forward.1} parent=5 // pred_fallthru
        _
      %p198 = scmp.le.s32.totalorder 1, %s12
      %p199 = scmp.lt.s32.totalorder %s12, 3
      %p200 = pnand %p198, %p199
      %p201 = pneg %p200
      // Predicated region
      $region37: #{cbam_forward.1} parent=5 // pred_check
        _
      $region38: #{cbam_forward.1} parent=5 // pred_check_branch
        %203 = sbr.rel (%p200) target = $region40
      $region39: #{cbam_forward.1} parent=5 // pred_region
        %s204 = ssub.s32 %s12, 1
        // Predicated region
        $region41: #{cbam_forward.1} parent=39 // pred_check
          %p205 = pneg %p122
        $region42: #{cbam_forward.1} parent=39 // pred_check_branch
          %207 = sbr.rel (%p205) target = $region44
        $region43: #{cbam_forward.1} parent=39 // pred_region
          %209 = dma.done [#allocation3], 8192
        $region44: #{cbam_forward.1} parent=39 // pred_fallthru
          _
        %p210 = scmp.lt.s32.totalorder %s17, 1
        %s211 = scalar_select %p210, %s17, 1
        %s212 = smul.addr %s211, 8
        %s213 = smul.addr %s212, 8
        %s214 = scalar_lea.vmem %s0, %s213
        %p215 = pneg %p38
        %p216 = pneg %p35
        %p217 = pneg %p59
        %p218 = pneg %p56
        %p219 = pneg %p80
        %p220 = pneg %p77
        %p221 = pneg %p101
        %p222 = pneg %p98
        %p223 = pneg %p122
        %p224 = pneg %p119
        %p225 = pneg %p148
        %p226 = pneg %p145
        %p227 = scmp.lt.s32.totalorder %s17, 1
        %s228 = scalar_select %p227, %s17, 1
        %s229 = smul.addr %s228, 8
        %s230 = smul.addr %s229, 8
        %s231 = scalar_lea.vmem %s5, %s230
        %p232 = scmp.lt.s32.totalorder %s17, 1
        %s233 = scalar_select %p232, %s17, 1
        %s234 = smul.addr %s233, 8
        %s235 = smul.addr %s234, 8
        %s236 = scalar_lea.vmem %s0, %s235
        %p237 = scmp.lt.s32.totalorder %s17, 1
        %s238 = scalar_select %p237, %s17, 1
        %s239 = smul.addr %s238, 8
        %s240 = smul.addr %s239, 8
        %s241 = scalar_lea.vmem %s5, %s240
        %v242 = vld [vmem:[%s236] sm:$0xff]
        %v243 = vld [vmem:[%s236 + $0x8] sm:$0xff]
        %v244 = vld [vmem:[%s236 + $0x10] sm:$0xff]
        %v245 = vld [vmem:[%s236 + $0x18] sm:$0xff]
        %v246 = vld [vmem:[%s236 + $0x20] sm:$0xff]
        %v247 = vld [vmem:[%s236 + $0x28] sm:$0xff]
        %v248 = vld [vmem:[%s236 + $0x30] sm:$0xff]
        %v249 = vld [vmem:[%s236 + $0x38] sm:$0xff]
        %v250 = vadd.f32 %v242, %v243
        %251 = vadd.xlane.f32.xlu0 %v250
        %v252 = vpop.xlane.xlu0 %251
        %v253 = vadd.f32 %v244, %v245
        %254 = vadd.xlane.f32.xlu0 %v253
        %v255 = vpop.xlane.xlu0 %254
        %v256 = vadd.f32 %v246, %v247
        %257 = vadd.xlane.f32.xlu0 %v256
        %v258 = vpop.xlane.xlu0 %257
        %v259 = vadd.f32 %v248, %v249
        %260 = vadd.xlane.f32.xlu0 %v259
        %v261 = vpop.xlane.xlu0 %260
        %v262 = vmul.f32 %v252, 0.00390625
        %v263 = vmul.f32 %v255, 0.00390625
        %v264 = vmul.f32 %v258, 0.00390625
        %v265 = vmul.f32 %v261, 0.00390625
        %v266 = vmax.f32 %v242, %v243
        %267 = vmax.xlane.f32.xlu0 %v266
        %v268 = vpop.xlane.xlu0 %267
        %v269 = vmax.f32 %v244, %v245
        %270 = vmax.xlane.f32.xlu0 %v269
        %v271 = vpop.xlane.xlu0 %270
        %v272 = vmax.f32 %v246, %v247
        %273 = vmax.xlane.f32.xlu0 %v272
        %v274 = vpop.xlane.xlu0 %273
        %v275 = vmax.f32 %v248, %v249
        %276 = vmax.xlane.f32.xlu0 %v275
        %v277 = vpop.xlane.xlu0 %276
        %v278 = vld [vmem:[%s1] sm:$0xff]
        %v279 = vld [vmem:[%s1 + $0x8] sm:$0xff]
        %v280 = vld [vmem:[%s1 + $0x10] sm:$0xff]
        %v281 = vld [vmem:[%s1 + $0x18] sm:$0xff]
        %v282 = vld [vmem:[%s2] sm:$0x3]
        %v287 = vlaneseq
        %v288 = vand.u32 %v287, 127
        %v289 = vperm.slane %v262, %v288
        %v290 = vadd.s32 %v288, 4294967288
        %v291 = vperm.slane %v263, %v290
        %vm292 = vcmask 130112
        %v293 = vsel %vm292, %v291, %v289
        %v294 = vadd.s32 %v288, 4294967280
        %v295 = vperm.slane %v264, %v294
        %vm296 = vcmask 195712
        %v297 = vsel %vm296, %v295, %v293
        %v298 = vadd.s32 %v288, 4294967272
        %v299 = vperm.slane %v265, %v298
        %vm300 = vcmask 261312
        %v301 = vsel %vm300, %v299, %v297
        %v307 = vperm.slane %v268, %v288
        %v308 = vperm.slane %v271, %v290
        %v309 = vsel %vm292, %v308, %v307
        %v310 = vperm.slane %v274, %v294
        %v311 = vsel %vm296, %v310, %v309
        %v312 = vperm.slane %v277, %v298
        %v313 = vsel %vm300, %v312, %v311
        %vm315 = vcmask 1040384
        %v316 = vsel %vm315, %v301, %v313
        %vm317 = vcmask 261120
        %v319 = vsel %vm317, %v316, 0
        %321 = vmatpush.msra.mxu0 0.0
        %322 = vmatpush.msra.mxu0 0.0
        %323 = vmatpush.msra.mxu0 0.0
        %324 = vmatpush.msra.mxu0 0.0
        %325 = vmatpush.msra.mxu0 0.0
        %326 = vmatpush.msra.mxu0 0.0
        %327 = vmatpush.msra.mxu0 0.0
        %328 = vmatpush.msra.mxu0 0.0
        %329 = vmatpush.msra.mxu0 0.0
        %330 = vmatpush.msra.mxu0 0.0
        %331 = vmatpush.msra.mxu0 0.0
        %332 = vmatpush.msra.mxu0 0.0
        %v333 = vand.u32 %v281, 4294901760
        %334 = vmatpush.msra.mxu0 %v333
        %v335 = vand.u32 %v280, 4294901760
        %336 = vmatpush.msra.mxu0 %v335
        %v337 = vand.u32 %v279, 4294901760
        %338 = vmatpush.msra.mxu0 %v337
        %v339 = vand.u32 %v278, 4294901760
        %340 = vmatpush.msra.mxu0 %v339
        %v341 = vand.u32 %v319, 4294901760
        %v342 = vsub.f32 %v319, %v341
        %v343 = vand.u32 %v342, 4294901760
        %v344 = vsub.f32 %v342, %v343
        %v345 = vand.u32 %v344, 4294901760
        %346 = vmatmul.f32.gmra.mxu0 %v345
        %v347 = vpop.f32.mrf.mxu0
        %v348 = vadd.f32 0.0, %v347
        %349 = vdwg.mxu0
        %350 = vmatpush.msra.mxu0 0.0
        %351 = vmatpush.msra.mxu0 0.0
        %352 = vmatpush.msra.mxu0 0.0
        %353 = vmatpush.msra.mxu0 0.0
        %354 = vmatpush.msra.mxu0 0.0
        %355 = vmatpush.msra.mxu0 0.0
        %356 = vmatpush.msra.mxu0 0.0
        %357 = vmatpush.msra.mxu0 0.0
        %358 = vmatpush.msra.mxu0 0.0
        %359 = vmatpush.msra.mxu0 0.0
        %360 = vmatpush.msra.mxu0 0.0
        %361 = vmatpush.msra.mxu0 0.0
        %v362 = vand.u32 %v281, 4294901760
        %v363 = vsub.f32 %v281, %v362
        %v364 = vand.u32 %v363, 4294901760
        %v365 = vsub.f32 %v363, %v364
        %v366 = vand.u32 %v365, 4294901760
        %367 = vmatpush.msra.mxu0 %v366
        %v368 = vand.u32 %v280, 4294901760
        %v369 = vsub.f32 %v280, %v368
        %v370 = vand.u32 %v369, 4294901760
        %v371 = vsub.f32 %v369, %v370
        %v372 = vand.u32 %v371, 4294901760
        %373 = vmatpush.msra.mxu0 %v372
        %v374 = vand.u32 %v279, 4294901760
        %v375 = vsub.f32 %v279, %v374
        %v376 = vand.u32 %v375, 4294901760
        %v377 = vsub.f32 %v375, %v376
        %v378 = vand.u32 %v377, 4294901760
        %379 = vmatpush.msra.mxu0 %v378
        %v380 = vand.u32 %v278, 4294901760
        %v381 = vsub.f32 %v278, %v380
        %v382 = vand.u32 %v381, 4294901760
        %v383 = vsub.f32 %v381, %v382
        %v384 = vand.u32 %v383, 4294901760
        %385 = vmatpush.msra.mxu0 %v384
        %v386 = vand.u32 %v319, 4294901760
        %387 = vmatmul.f32.gmra.mxu0 %v386
        %v388 = vpop.f32.mrf.mxu0
        %v389 = vadd.f32 %v348, %v388
        %390 = vdwg.mxu0
        %391 = vmatpush.msra.mxu0 0.0
        %392 = vmatpush.msra.mxu0 0.0
        %393 = vmatpush.msra.mxu0 0.0
        %394 = vmatpush.msra.mxu0 0.0
        %395 = vmatpush.msra.mxu0 0.0
        %396 = vmatpush.msra.mxu0 0.0
        %397 = vmatpush.msra.mxu0 0.0
        %398 = vmatpush.msra.mxu0 0.0
        %399 = vmatpush.msra.mxu0 0.0
        %400 = vmatpush.msra.mxu0 0.0
        %401 = vmatpush.msra.mxu0 0.0
        %402 = vmatpush.msra.mxu0 0.0
        %v403 = vand.u32 %v281, 4294901760
        %v404 = vsub.f32 %v281, %v403
        %405 = vmatpush.msra.mxu0 %v404
        %v406 = vand.u32 %v280, 4294901760
        %v407 = vsub.f32 %v280, %v406
        %408 = vmatpush.msra.mxu0 %v407
        %v409 = vand.u32 %v279, 4294901760
        %v410 = vsub.f32 %v279, %v409
        %411 = vmatpush.msra.mxu0 %v410
        %v412 = vand.u32 %v278, 4294901760
        %v413 = vsub.f32 %v278, %v412
        %414 = vmatpush.msra.mxu0 %v413
        %v415 = vand.u32 %v319, 4294901760
        %v416 = vsub.f32 %v319, %v415
        %417 = vmatmul.f32.gmra.mxu0 %v416
        %v418 = vpop.f32.mrf.mxu0
        %v419 = vadd.f32 %v389, %v418
        %420 = vdwg.mxu0
        %421 = vmatpush.msra.mxu0 0.0
        %422 = vmatpush.msra.mxu0 0.0
        %423 = vmatpush.msra.mxu0 0.0
        %424 = vmatpush.msra.mxu0 0.0
        %425 = vmatpush.msra.mxu0 0.0
        %426 = vmatpush.msra.mxu0 0.0
        %427 = vmatpush.msra.mxu0 0.0
        %428 = vmatpush.msra.mxu0 0.0
        %429 = vmatpush.msra.mxu0 0.0
        %430 = vmatpush.msra.mxu0 0.0
        %431 = vmatpush.msra.mxu0 0.0
        %432 = vmatpush.msra.mxu0 0.0
        %v433 = vand.u32 %v281, 4294901760
        %434 = vmatpush.msra.mxu0 %v433
        %v435 = vand.u32 %v280, 4294901760
        %436 = vmatpush.msra.mxu0 %v435
        %v437 = vand.u32 %v279, 4294901760
        %438 = vmatpush.msra.mxu0 %v437
        %v439 = vand.u32 %v278, 4294901760
        %440 = vmatpush.msra.mxu0 %v439
        %v441 = vand.u32 %v319, 4294901760
        %v442 = vsub.f32 %v319, %v441
        %v443 = vand.u32 %v442, 4294901760
        %444 = vmatmul.f32.gmra.mxu0 %v443
        %v445 = vpop.f32.mrf.mxu0
        %v446 = vadd.f32 %v419, %v445
        %447 = vdwg.mxu0
        %448 = vmatpush.msra.mxu0 0.0
        %449 = vmatpush.msra.mxu0 0.0
        %450 = vmatpush.msra.mxu0 0.0
        %451 = vmatpush.msra.mxu0 0.0
        %452 = vmatpush.msra.mxu0 0.0
        %453 = vmatpush.msra.mxu0 0.0
        %454 = vmatpush.msra.mxu0 0.0
        %455 = vmatpush.msra.mxu0 0.0
        %456 = vmatpush.msra.mxu0 0.0
        %457 = vmatpush.msra.mxu0 0.0
        %458 = vmatpush.msra.mxu0 0.0
        %459 = vmatpush.msra.mxu0 0.0
        %v460 = vand.u32 %v281, 4294901760
        %v461 = vsub.f32 %v281, %v460
        %v462 = vand.u32 %v461, 4294901760
        %463 = vmatpush.msra.mxu0 %v462
        %v464 = vand.u32 %v280, 4294901760
        %v465 = vsub.f32 %v280, %v464
        %v466 = vand.u32 %v465, 4294901760
        %467 = vmatpush.msra.mxu0 %v466
        %v468 = vand.u32 %v279, 4294901760
        %v469 = vsub.f32 %v279, %v468
        %v470 = vand.u32 %v469, 4294901760
        %471 = vmatpush.msra.mxu0 %v470
        %v472 = vand.u32 %v278, 4294901760
        %v473 = vsub.f32 %v278, %v472
        %v474 = vand.u32 %v473, 4294901760
        %475 = vmatpush.msra.mxu0 %v474
        %v476 = vand.u32 %v319, 4294901760
        %477 = vmatmul.f32.gmra.mxu0 %v476
        %v478 = vpop.f32.mrf.mxu0
        %v479 = vadd.f32 %v446, %v478
        %480 = vdwg.mxu0
        %481 = vmatpush.msra.mxu0 0.0
        %482 = vmatpush.msra.mxu0 0.0
        %483 = vmatpush.msra.mxu0 0.0
        %484 = vmatpush.msra.mxu0 0.0
        %485 = vmatpush.msra.mxu0 0.0
        %486 = vmatpush.msra.mxu0 0.0
        %487 = vmatpush.msra.mxu0 0.0
        %488 = vmatpush.msra.mxu0 0.0
        %489 = vmatpush.msra.mxu0 0.0
        %490 = vmatpush.msra.mxu0 0.0
        %491 = vmatpush.msra.mxu0 0.0
        %492 = vmatpush.msra.mxu0 0.0
        %v493 = vand.u32 %v281, 4294901760
        %494 = vmatpush.msra.mxu0 %v493
        %v495 = vand.u32 %v280, 4294901760
        %496 = vmatpush.msra.mxu0 %v495
        %v497 = vand.u32 %v279, 4294901760
        %498 = vmatpush.msra.mxu0 %v497
        %v499 = vand.u32 %v278, 4294901760
        %500 = vmatpush.msra.mxu0 %v499
        %v501 = vand.u32 %v319, 4294901760
        %502 = vmatmul.f32.gmra.mxu0 %v501
        %v503 = vpop.f32.mrf.mxu0
        %v504 = vadd.f32 %v479, %v503
        %505 = vdwg.mxu0
        %v506 = vmax.f32 %v504, 0.0
        %v508 = vrot.slane %v506, 1
        %v510 = vadd.f32 %v506, %v508
        %vm511 = vcmask 15360
        %v513 = vsel %vm511, %v510, 0
        %vm515 = vcmask 1041408
        %v517 = vsel %vm515, %v282, 0
        %519 = vmatpush.msra.mxu0 0.0
        %520 = vmatpush.msra.mxu0 0.0
        %521 = vmatpush.msra.mxu0 0.0
        %522 = vmatpush.msra.mxu0 0.0
        %523 = vmatpush.msra.mxu0 0.0
        %524 = vmatpush.msra.mxu0 0.0
        %525 = vmatpush.msra.mxu0 0.0
        %526 = vmatpush.msra.mxu0 0.0
        %527 = vmatpush.msra.mxu0 0.0
        %528 = vmatpush.msra.mxu0 0.0
        %529 = vmatpush.msra.mxu0 0.0
        %530 = vmatpush.msra.mxu0 0.0
        %531 = vmatpush.msra.mxu0 0.0
        %532 = vmatpush.msra.mxu0 0.0
        %533 = vmatpush.msra.mxu0 0.0
        %v534 = vand.u32 %v517, 4294901760
        %535 = vmatpush.msra.mxu0 %v534
        %v536 = vand.u32 %v513, 4294901760
        %v537 = vsub.f32 %v513, %v536
        %v538 = vand.u32 %v537, 4294901760
        %v539 = vsub.f32 %v537, %v538
        %v540 = vand.u32 %v539, 4294901760
        %541 = vmatmul.f32.gmra.mxu0 %v540
        %v542 = vpop.f32.mrf.mxu0
        %v543 = vadd.f32 0.0, %v542
        %544 = vdwg.mxu0
        %545 = vmatpush.msra.mxu0 0.0
        %546 = vmatpush.msra.mxu0 0.0
        %547 = vmatpush.msra.mxu0 0.0
        %548 = vmatpush.msra.mxu0 0.0
        %549 = vmatpush.msra.mxu0 0.0
        %550 = vmatpush.msra.mxu0 0.0
        %551 = vmatpush.msra.mxu0 0.0
        %552 = vmatpush.msra.mxu0 0.0
        %553 = vmatpush.msra.mxu0 0.0
        %554 = vmatpush.msra.mxu0 0.0
        %555 = vmatpush.msra.mxu0 0.0
        %556 = vmatpush.msra.mxu0 0.0
        %557 = vmatpush.msra.mxu0 0.0
        %558 = vmatpush.msra.mxu0 0.0
        %559 = vmatpush.msra.mxu0 0.0
        %v560 = vand.u32 %v517, 4294901760
        %v561 = vsub.f32 %v517, %v560
        %v562 = vand.u32 %v561, 4294901760
        %v563 = vsub.f32 %v561, %v562
        %v564 = vand.u32 %v563, 4294901760
        %565 = vmatpush.msra.mxu0 %v564
        %v566 = vand.u32 %v513, 4294901760
        %567 = vmatmul.f32.gmra.mxu0 %v566
        %v568 = vpop.f32.mrf.mxu0
        %v569 = vadd.f32 %v543, %v568
        %570 = vdwg.mxu0
        %571 = vmatpush.msra.mxu0 0.0
        %572 = vmatpush.msra.mxu0 0.0
        %573 = vmatpush.msra.mxu0 0.0
        %574 = vmatpush.msra.mxu0 0.0
        %575 = vmatpush.msra.mxu0 0.0
        %576 = vmatpush.msra.mxu0 0.0
        %577 = vmatpush.msra.mxu0 0.0
        %578 = vmatpush.msra.mxu0 0.0
        %579 = vmatpush.msra.mxu0 0.0
        %580 = vmatpush.msra.mxu0 0.0
        %581 = vmatpush.msra.mxu0 0.0
        %582 = vmatpush.msra.mxu0 0.0
        %583 = vmatpush.msra.mxu0 0.0
        %584 = vmatpush.msra.mxu0 0.0
        %585 = vmatpush.msra.mxu0 0.0
        %v586 = vand.u32 %v517, 4294901760
        %v587 = vsub.f32 %v517, %v586
        %588 = vmatpush.msra.mxu0 %v587
        %v589 = vand.u32 %v513, 4294901760
        %v590 = vsub.f32 %v513, %v589
        %591 = vmatmul.f32.gmra.mxu0 %v590
        %v592 = vpop.f32.mrf.mxu0
        %v593 = vadd.f32 %v569, %v592
        %594 = vdwg.mxu0
        %595 = vmatpush.msra.mxu0 0.0
        %596 = vmatpush.msra.mxu0 0.0
        %597 = vmatpush.msra.mxu0 0.0
        %598 = vmatpush.msra.mxu0 0.0
        %599 = vmatpush.msra.mxu0 0.0
        %600 = vmatpush.msra.mxu0 0.0
        %601 = vmatpush.msra.mxu0 0.0
        %602 = vmatpush.msra.mxu0 0.0
        %603 = vmatpush.msra.mxu0 0.0
        %604 = vmatpush.msra.mxu0 0.0
        %605 = vmatpush.msra.mxu0 0.0
        %606 = vmatpush.msra.mxu0 0.0
        %607 = vmatpush.msra.mxu0 0.0
        %608 = vmatpush.msra.mxu0 0.0
        %609 = vmatpush.msra.mxu0 0.0
        %v610 = vand.u32 %v517, 4294901760
        %611 = vmatpush.msra.mxu0 %v610
        %v612 = vand.u32 %v513, 4294901760
        %v613 = vsub.f32 %v513, %v612
        %v614 = vand.u32 %v613, 4294901760
        %615 = vmatmul.f32.gmra.mxu0 %v614
        %v616 = vpop.f32.mrf.mxu0
        %v617 = vadd.f32 %v593, %v616
        %618 = vdwg.mxu0
        %619 = vmatpush.msra.mxu0 0.0
        %620 = vmatpush.msra.mxu0 0.0
        %621 = vmatpush.msra.mxu0 0.0
        %622 = vmatpush.msra.mxu0 0.0
        %623 = vmatpush.msra.mxu0 0.0
        %624 = vmatpush.msra.mxu0 0.0
        %625 = vmatpush.msra.mxu0 0.0
        %626 = vmatpush.msra.mxu0 0.0
        %627 = vmatpush.msra.mxu0 0.0
        %628 = vmatpush.msra.mxu0 0.0
        %629 = vmatpush.msra.mxu0 0.0
        %630 = vmatpush.msra.mxu0 0.0
        %631 = vmatpush.msra.mxu0 0.0
        %632 = vmatpush.msra.mxu0 0.0
        %633 = vmatpush.msra.mxu0 0.0
        %v634 = vand.u32 %v517, 4294901760
        %v635 = vsub.f32 %v517, %v634
        %v636 = vand.u32 %v635, 4294901760
        %637 = vmatpush.msra.mxu0 %v636
        %v638 = vand.u32 %v513, 4294901760
        %639 = vmatmul.f32.gmra.mxu0 %v638
        %v640 = vpop.f32.mrf.mxu0
        %v641 = vadd.f32 %v617, %v640
        %642 = vdwg.mxu0
        %643 = vmatpush.msra.mxu0 0.0
        %644 = vmatpush.msra.mxu0 0.0
        %645 = vmatpush.msra.mxu0 0.0
        %646 = vmatpush.msra.mxu0 0.0
        %647 = vmatpush.msra.mxu0 0.0
        %648 = vmatpush.msra.mxu0 0.0
        %649 = vmatpush.msra.mxu0 0.0
        %650 = vmatpush.msra.mxu0 0.0
        %651 = vmatpush.msra.mxu0 0.0
        %652 = vmatpush.msra.mxu0 0.0
        %653 = vmatpush.msra.mxu0 0.0
        %654 = vmatpush.msra.mxu0 0.0
        %655 = vmatpush.msra.mxu0 0.0
        %656 = vmatpush.msra.mxu0 0.0
        %657 = vmatpush.msra.mxu0 0.0
        %v658 = vand.u32 %v517, 4294901760
        %659 = vmatpush.msra.mxu0 %v658
        %v660 = vand.u32 %v513, 4294901760
        %661 = vmatmul.f32.gmra.mxu0 %v660
        %v662 = vpop.f32.mrf.mxu0
        %v663 = vadd.f32 %v641, %v662
        %664 = vdwg.mxu0
        %v665 = vxor.u32 %v663, 2147483648
        %v666 = vmul.f32 %v665, 1.442695
        %v667 = vpow.pop %v666
        %v668 = vadd.f32 %v667, 1.0
        %v669 = vrcp.pop %v668
        %v670 = vmul.f32 %v668, %v669
        %v671 = vsub.f32 1.0, %v670
        %v672 = vmul.f32 %v669, %v671
        %v673 = vadd.f32 %v669, %v672
        %vm674 = vweird.f32 %v668
        %vm675 = vweird.f32 %v669
        %vm676 = vmor %vm674, %vm675
        %v677 = vsel %vm676, %v669, %v673
        %v678 = vand.u32 2147483647, %v668
        %vm679 = vcmp.eq.f32.partialorder %v678, 8.507059e+37
        %v680 = vand.u32 %v668, 2147483648
        %v681 = vor.u32 1.1754944e-38, %v680
        %v682 = vsel %vm679, %v681, %v677
        %v683 = vmul.f32 1.0, %v682
        %v684 = vperm.slane %v683, 0
        %v685 = vlaneseq
        %v686 = vshrl.u32 %v685, 7
        %688 = vset.pattern.permute.xlu0 %v686
        %689 = vperm.xlu0 %688, %v684
        %v690 = vpop.permute.xlu0 %689
        %v691 = vlaneseq
        %v692 = vshrl.u32 %v691, 7
        %v693 = vadd.s32 %v692, 8
        %694 = vset.pattern.permute.xlu0 %v693
        %695 = vperm.xlu0 %694, %v684
        %v696 = vpop.permute.xlu0 %695
        %v697 = vlaneseq
        %v698 = vshrl.u32 %v697, 7
        %v699 = vadd.s32 %v698, 16
        %700 = vset.pattern.permute.xlu0 %v699
        %701 = vperm.xlu0 %700, %v684
        %v702 = vpop.permute.xlu0 %701
        %v703 = vlaneseq
        %v704 = vshrl.u32 %v703, 7
        %v705 = vadd.s32 %v704, 24
        %706 = vset.pattern.permute.xlu0 %v705
        %707 = vperm.xlu0 %706, %v684
        %v708 = vpop.permute.xlu0 %707
        %v709 = vmul.f32 %v242, %v690
        %v710 = vmul.f32 %v243, %v690
        %v711 = vmul.f32 %v244, %v696
        %v712 = vmul.f32 %v245, %v696
        %v713 = vmul.f32 %v246, %v702
        %v714 = vmul.f32 %v247, %v702
        %v715 = vmul.f32 %v248, %v708
        %v716 = vmul.f32 %v249, %v708
        %v717 = vadd.f32 %v709, %v711
        %v718 = vadd.f32 %v717, %v713
        %v719 = vadd.f32 %v718, %v715
        %v720 = vrot.slane %v719, 4
        %v721 = vadd.f32 %v719, %v720
        %v722 = vrot.slane %v721, 2
        %v723 = vadd.f32 %v721, %v722
        %v724 = vrot.slane %v723, 1
        %v725 = vadd.f32 %v723, %v724
        %v726 = vadd.f32 %v710, %v712
        %v727 = vadd.f32 %v726, %v714
        %v728 = vadd.f32 %v727, %v716
        %v729 = vrot.slane %v728, 4
        %v730 = vadd.f32 %v728, %v729
        %v731 = vrot.slane %v730, 2
        %v732 = vadd.f32 %v730, %v731
        %v733 = vrot.slane %v732, 1
        %v734 = vadd.f32 %v732, %v733
        %v735 = vrcp.pop 32.0
        %v736 = vmul.f32 32.0, %v735
        %v737 = vsub.f32 1.0, %v736
        %v738 = vmul.f32 %v735, %v737
        %v739 = vadd.f32 %v735, %v738
        %vm740 = vweird.f32 %v735
        %v741 = vsel %vm740, %v735, %v739
        %v742 = vmul.f32 %v725, %v741
        %v743 = vmul.f32 %v734, %v741
        %v744 = vmax.f32 %v709, %v713
        %v745 = vmax.f32 %v711, %v715
        %v746 = vmax.f32 %v744, %v745
        %v747 = vrot.slane %v746, 4
        %v748 = vmax.f32 %v746, %v747
        %v749 = vrot.slane %v748, 2
        %v750 = vmax.f32 %v748, %v749
        %v751 = vrot.slane %v750, 1
        %v752 = vmax.f32 %v750, %v751
        %v753 = vmax.f32 %v710, %v714
        %v754 = vmax.f32 %v712, %v716
        %v755 = vmax.f32 %v753, %v754
        %v756 = vrot.slane %v755, 4
        %v757 = vmax.f32 %v755, %v756
        %v758 = vrot.slane %v757, 2
        %v759 = vmax.f32 %v757, %v758
        %v760 = vrot.slane %v759, 1
        %v761 = vmax.f32 %v759, %v760
        %v762 = vld [vmem:[%s3] sm:$0xff]
        %v763 = vld [vmem:[%s3 + $0x8] sm:$0xff]
        %v764 = vld [vmem:[%s3 + $0x10] sm:$0xff]
        %v765 = vld [vmem:[%s3 + $0x18] sm:$0xff]
        %v766 = vld [vmem:[%s3 + $0x20] sm:$0xff]
        %v767 = vld [vmem:[%s3 + $0x28] sm:$0xff]
        %v768 = vld [vmem:[%s3 + $0x30] sm:$0xff]
        %v769 = vld [vmem:[%s3 + $0x38] sm:$0xff]
        %v770 = vld [vmem:[%s3 + $0x40] sm:$0xff]
        %v771 = vld [vmem:[%s3 + $0x48] sm:$0xff]
        %v772 = vld [vmem:[%s3 + $0x50] sm:$0xff]
        %v773 = vld [vmem:[%s3 + $0x58] sm:$0xff]
        %v774 = vld [vmem:[%s3 + $0x60] sm:$0xff]
        %v775 = vld [vmem:[%s3 + $0x68] sm:$0xff]
        %v776 = vld [vmem:[%s3 + $0x70] sm:$0xff]
        %v777 = vld [vmem:[%s3 + $0x78] sm:$0xff]
        %v778 = vld [vmem:[%s3 + $0x80] sm:$0xff]
        %v779 = vld [vmem:[%s3 + $0x88] sm:$0xff]
        %v780 = vld [vmem:[%s3 + $0x90] sm:$0xff]
        %v781 = vld [vmem:[%s3 + $0x98] sm:$0xff]
        %v782 = vld [vmem:[%s3 + $0xa0] sm:$0xff]
        %v783 = vld [vmem:[%s3 + $0xa8] sm:$0xff]
        %v784 = vld [vmem:[%s3 + $0xb0] sm:$0xff]
        %v785 = vld [vmem:[%s3 + $0xb8] sm:$0xff]
        %v786 = vld [vmem:[%s3 + $0xc0] sm:$0xff]
        %v787 = vld [vmem:[%s3 + $0xc8] sm:$0xff]
        %v788 = vld [vmem:[%s3 + $0xd0] sm:$0xff]
        %v789 = vld [vmem:[%s3 + $0xd8] sm:$0xff]
        %v790 = vld [vmem:[%s3 + $0xe0] sm:$0xff]
        %v791 = vld [vmem:[%s3 + $0xe8] sm:$0xff]
        %v792 = vld [vmem:[%s3 + $0xf0] sm:$0xff]
        %v793 = vld [vmem:[%s3 + $0xf8] sm:$0xff]
        %v794 = vld [vmem:[%s3 + $0x100] sm:$0xff]
        %v795 = vld [vmem:[%s3 + $0x108] sm:$0xff]
        %v796 = vld [vmem:[%s3 + $0x110] sm:$0xff]
        %v797 = vld [vmem:[%s3 + $0x118] sm:$0xff]
        %v798 = vld [vmem:[%s3 + $0x120] sm:$0xff]
        %v799 = vld [vmem:[%s3 + $0x128] sm:$0xff]
        %v800 = vld [vmem:[%s3 + $0x130] sm:$0xff]
        %v801 = vld [vmem:[%s3 + $0x138] sm:$0xff]
        %v802 = vld [vmem:[%s3 + $0x140] sm:$0xff]
        %v803 = vld [vmem:[%s3 + $0x148] sm:$0xff]
        %v804 = vld [vmem:[%s3 + $0x150] sm:$0xff]
        %v805 = vld [vmem:[%s3 + $0x158] sm:$0xff]
        %v806 = vld [vmem:[%s3 + $0x160] sm:$0xff]
        %v807 = vld [vmem:[%s3 + $0x168] sm:$0xff]
        %v808 = vld [vmem:[%s3 + $0x170] sm:$0xff]
        %v809 = vld [vmem:[%s3 + $0x178] sm:$0xff]
        %v810 = vld [vmem:[%s3 + $0x180] sm:$0xff]
        %v811 = vld [vmem:[%s3 + $0x188] sm:$0xff]
        %v812 = vld [vmem:[%s3 + $0x190] sm:$0xff]
        %v813 = vld [vmem:[%s3 + $0x198] sm:$0xff]
        %v814 = vld [vmem:[%s3 + $0x1a0] sm:$0xff]
        %v815 = vld [vmem:[%s3 + $0x1a8] sm:$0xff]
        %v816 = vld [vmem:[%s3 + $0x1b0] sm:$0xff]
        %v817 = vld [vmem:[%s3 + $0x1b8] sm:$0xff]
        %v818 = vld [vmem:[%s3 + $0x1c0] sm:$0xff]
        %v819 = vld [vmem:[%s3 + $0x1c8] sm:$0xff]
        %v820 = vld [vmem:[%s3 + $0x1d0] sm:$0xff]
        %v821 = vld [vmem:[%s3 + $0x1d8] sm:$0xff]
        %v822 = vld [vmem:[%s3 + $0x1e0] sm:$0xff]
        %v823 = vld [vmem:[%s3 + $0x1e8] sm:$0xff]
        %v824 = vld [vmem:[%s3 + $0x1f0] sm:$0xff]
        %v825 = vld [vmem:[%s3 + $0x1f8] sm:$0xff]
        %v826 = vld [vmem:[#allocation2] sm:$0xff]
        %v827 = vld [vmem:[#allocation2 + $0x8] sm:$0xff]
        %v828 = vld [vmem:[#allocation2 + $0x10] sm:$0xff]
        %v829 = vld [vmem:[#allocation2 + $0x18] sm:$0xff]
        %v830 = vld [vmem:[#allocation2 + $0x20] sm:$0xff]
        %v831 = vld [vmem:[#allocation2 + $0x28] sm:$0xff]
        %v832 = vld [vmem:[#allocation2 + $0x30] sm:$0xff]
        %v833 = vld [vmem:[#allocation2 + $0x38] sm:$0xff]
        %v834 = vld [vmem:[#allocation2 + $0x40] sm:$0xff]
        %v835 = vld [vmem:[#allocation2 + $0x48] sm:$0xff]
        %v836 = vld [vmem:[#allocation2 + $0x50] sm:$0xff]
        %v837 = vld [vmem:[#allocation2 + $0x58] sm:$0xff]
        %v838 = vld [vmem:[#allocation2 + $0x60] sm:$0xff]
        %v839 = vld [vmem:[#allocation2 + $0x68] sm:$0xff]
        %v840 = vld [vmem:[#allocation2 + $0x70] sm:$0xff]
        %v841 = vld [vmem:[#allocation2 + $0x78] sm:$0xff]
        %v842 = vld [vmem:[#allocation2 + $0x80] sm:$0xff]
        %v843 = vld [vmem:[#allocation2 + $0x88] sm:$0xff]
        %v844 = vld [vmem:[#allocation2 + $0x90] sm:$0xff]
        %v845 = vld [vmem:[#allocation2 + $0x98] sm:$0xff]
        %v846 = vld [vmem:[#allocation2 + $0xa0] sm:$0xff]
        %v847 = vld [vmem:[#allocation2 + $0xa8] sm:$0xff]
        %v848 = vld [vmem:[#allocation2 + $0xb0] sm:$0xff]
        %v849 = vld [vmem:[#allocation2 + $0xb8] sm:$0xff]
        %v850 = vld [vmem:[#allocation2 + $0xc0] sm:$0xff]
        %v851 = vld [vmem:[#allocation2 + $0xc8] sm:$0xff]
        %v852 = vld [vmem:[#allocation2 + $0xd0] sm:$0xff]
        %v853 = vld [vmem:[#allocation2 + $0xd8] sm:$0xff]
        %v854 = vld [vmem:[#allocation2 + $0xe0] sm:$0xff]
        %v855 = vld [vmem:[#allocation2 + $0xe8] sm:$0xff]
        %v856 = vld [vmem:[#allocation2 + $0xf0] sm:$0xff]
        %v857 = vld [vmem:[#allocation2 + $0xf8] sm:$0xff]
        %v858 = vld [vmem:[#allocation2 + $0x100] sm:$0xff]
        %v859 = vld [vmem:[#allocation2 + $0x108] sm:$0xff]
        %v860 = vld [vmem:[#allocation2 + $0x110] sm:$0xff]
        %v861 = vld [vmem:[#allocation2 + $0x118] sm:$0xff]
        %v862 = vld [vmem:[#allocation2 + $0x120] sm:$0xff]
        %v863 = vld [vmem:[#allocation2 + $0x128] sm:$0xff]
        %v864 = vld [vmem:[#allocation2 + $0x130] sm:$0xff]
        %v865 = vld [vmem:[#allocation2 + $0x138] sm:$0xff]
        %v866 = vld [vmem:[#allocation2 + $0x140] sm:$0xff]
        %v867 = vld [vmem:[#allocation2 + $0x148] sm:$0xff]
        %v868 = vld [vmem:[#allocation2 + $0x150] sm:$0xff]
        %v869 = vld [vmem:[#allocation2 + $0x158] sm:$0xff]
        %v870 = vld [vmem:[#allocation2 + $0x160] sm:$0xff]
        %v871 = vld [vmem:[#allocation2 + $0x168] sm:$0xff]
        %v872 = vld [vmem:[#allocation2 + $0x170] sm:$0xff]
        %v873 = vld [vmem:[#allocation2 + $0x178] sm:$0xff]
        %v874 = vld [vmem:[#allocation2 + $0x180] sm:$0xff]
        %v875 = vld [vmem:[#allocation2 + $0x188] sm:$0xff]
        %v876 = vld [vmem:[#allocation2 + $0x190] sm:$0xff]
        %v877 = vld [vmem:[#allocation2 + $0x198] sm:$0xff]
        %v878 = vld [vmem:[#allocation2 + $0x1a0] sm:$0xff]
        %v879 = vld [vmem:[#allocation2 + $0x1a8] sm:$0xff]
        %v880 = vld [vmem:[#allocation2 + $0x1b0] sm:$0xff]
        %v881 = vld [vmem:[#allocation2 + $0x1b8] sm:$0xff]
        %v882 = vld [vmem:[#allocation2 + $0x1c0] sm:$0xff]
        %v883 = vld [vmem:[#allocation2 + $0x1c8] sm:$0xff]
        %v884 = vld [vmem:[#allocation2 + $0x1d0] sm:$0xff]
        %v885 = vld [vmem:[#allocation2 + $0x1d8] sm:$0xff]
        %v886 = vld [vmem:[#allocation2 + $0x1e0] sm:$0xff]
        %v887 = vld [vmem:[#allocation2 + $0x1e8] sm:$0xff]
        %v888 = vld [vmem:[#allocation2 + $0x1f0] sm:$0xff]
        %v889 = vld [vmem:[#allocation2 + $0x1f8] sm:$0xff]
        %v890 = vand.u32 %v856, 4294901760
        %891 = vmatpush.msra.mxu0 %v890
        %v892 = vand.u32 %v854, 4294901760
        %893 = vmatpush.msra.mxu0 %v892
        %v894 = vand.u32 %v852, 4294901760
        %895 = vmatpush.msra.mxu0 %v894
        %v896 = vand.u32 %v850, 4294901760
        %897 = vmatpush.msra.mxu0 %v896
        %v898 = vand.u32 %v848, 4294901760
        %899 = vmatpush.msra.mxu0 %v898
        %v900 = vand.u32 %v846, 4294901760
        %901 = vmatpush.msra.mxu0 %v900
        %v902 = vand.u32 %v844, 4294901760
        %903 = vmatpush.msra.mxu0 %v902
        %v904 = vand.u32 %v842, 4294901760
        %905 = vmatpush.msra.mxu0 %v904
        %v906 = vand.u32 %v840, 4294901760
        %907 = vmatpush.msra.mxu0 %v906
        %v908 = vand.u32 %v838, 4294901760
        %909 = vmatpush.msra.mxu0 %v908
        %v910 = vand.u32 %v836, 4294901760
        %911 = vmatpush.msra.mxu0 %v910
        %v912 = vand.u32 %v834, 4294901760
        %913 = vmatpush.msra.mxu0 %v912
        %v914 = vand.u32 %v832, 4294901760
        %915 = vmatpush.msra.mxu0 %v914
        %v916 = vand.u32 %v830, 4294901760
        %917 = vmatpush.msra.mxu0 %v916
        %v918 = vand.u32 %v828, 4294901760
        %919 = vmatpush.msra.mxu0 %v918
        %v920 = vand.u32 %v826, 4294901760
        %921 = vmatpush.msra.mxu0 %v920
        %v922 = vand.u32 %v752, 4294901760
        %v923 = vsub.f32 %v752, %v922
        %v924 = vand.u32 %v923, 4294901760
        %v925 = vsub.f32 %v923, %v924
        %v926 = vand.u32 %v925, 4294901760
        %927 = vmatmul.f32.gmra.mxu0 %v926
        %v928 = vpop.f32.mrf.mxu0
        %v929 = vadd.f32 0.0, %v928
        %930 = vdwg.mxu0
        %v931 = vand.u32 %v856, 4294901760
        %v932 = vsub.f32 %v856, %v931
        %v933 = vand.u32 %v932, 4294901760
        %v934 = vsub.f32 %v932, %v933
        %v935 = vand.u32 %v934, 4294901760
        %936 = vmatpush.msra.mxu0 %v935
        %v937 = vand.u32 %v854, 4294901760
        %v938 = vsub.f32 %v854, %v937
        %v939 = vand.u32 %v938, 4294901760
        %v940 = vsub.f32 %v938, %v939
        %v941 = vand.u32 %v940, 4294901760
        %942 = vmatpush.msra.mxu0 %v941
        %v943 = vand.u32 %v852, 4294901760
        %v944 = vsub.f32 %v852, %v943
        %v945 = vand.u32 %v944, 4294901760
        %v946 = vsub.f32 %v944, %v945
        %v947 = vand.u32 %v946, 4294901760
        %948 = vmatpush.msra.mxu0 %v947
        %v949 = vand.u32 %v850, 4294901760
        %v950 = vsub.f32 %v850, %v949
        %v951 = vand.u32 %v950, 4294901760
        %v952 = vsub.f32 %v950, %v951
        %v953 = vand.u32 %v952, 4294901760
        %954 = vmatpush.msra.mxu0 %v953
        %v955 = vand.u32 %v848, 4294901760
        %v956 = vsub.f32 %v848, %v955
        %v957 = vand.u32 %v956, 4294901760
        %v958 = vsub.f32 %v956, %v957
        %v959 = vand.u32 %v958, 4294901760
        %960 = vmatpush.msra.mxu0 %v959
        %v961 = vand.u32 %v846, 4294901760
        %v962 = vsub.f32 %v846, %v961
        %v963 = vand.u32 %v962, 4294901760
        %v964 = vsub.f32 %v962, %v963
        %v965 = vand.u32 %v964, 4294901760
        %966 = vmatpush.msra.mxu0 %v965
        %v967 = vand.u32 %v844, 4294901760
        %v968 = vsub.f32 %v844, %v967
        %v969 = vand.u32 %v968, 4294901760
        %v970 = vsub.f32 %v968, %v969
        %v971 = vand.u32 %v970, 4294901760
        %972 = vmatpush.msra.mxu0 %v971
        %v973 = vand.u32 %v842, 4294901760
        %v974 = vsub.f32 %v842, %v973
        %v975 = vand.u32 %v974, 4294901760
        %v976 = vsub.f32 %v974, %v975
        %v977 = vand.u32 %v976, 4294901760
        %978 = vmatpush.msra.mxu0 %v977
        %v979 = vand.u32 %v840, 4294901760
        %v980 = vsub.f32 %v840, %v979
        %v981 = vand.u32 %v980, 4294901760
        %v982 = vsub.f32 %v980, %v981
        %v983 = vand.u32 %v982, 4294901760
        %984 = vmatpush.msra.mxu0 %v983
        %v985 = vand.u32 %v838, 4294901760
        %v986 = vsub.f32 %v838, %v985
        %v987 = vand.u32 %v986, 4294901760
        %v988 = vsub.f32 %v986, %v987
        %v989 = vand.u32 %v988, 4294901760
        %990 = vmatpush.msra.mxu0 %v989
        %v991 = vand.u32 %v836, 4294901760
        %v992 = vsub.f32 %v836, %v991
        %v993 = vand.u32 %v992, 4294901760
        %v994 = vsub.f32 %v992, %v993
        %v995 = vand.u32 %v994, 4294901760
        %996 = vmatpush.msra.mxu0 %v995
        %v997 = vand.u32 %v834, 4294901760
        %v998 = vsub.f32 %v834, %v997
        %v999 = vand.u32 %v998, 4294901760
        %v1000 = vsub.f32 %v998, %v999
        %v1001 = vand.u32 %v1000, 4294901760
        %1002 = vmatpush.msra.mxu0 %v1001
        %v1003 = vand.u32 %v832, 4294901760
        %v1004 = vsub.f32 %v832, %v1003
        %v1005 = vand.u32 %v1004, 4294901760
        %v1006 = vsub.f32 %v1004, %v1005
        %v1007 = vand.u32 %v1006, 4294901760
        %1008 = vmatpush.msra.mxu0 %v1007
        %v1009 = vand.u32 %v830, 4294901760
        %v1010 = vsub.f32 %v830, %v1009
        %v1011 = vand.u32 %v1010, 4294901760
        %v1012 = vsub.f32 %v1010, %v1011
        %v1013 = vand.u32 %v1012, 4294901760
        %1014 = vmatpush.msra.mxu0 %v1013
        %v1015 = vand.u32 %v828, 4294901760
        %v1016 = vsub.f32 %v828, %v1015
        %v1017 = vand.u32 %v1016, 4294901760
        %v1018 = vsub.f32 %v1016, %v1017
        %v1019 = vand.u32 %v1018, 4294901760
        %1020 = vmatpush.msra.mxu0 %v1019
        %v1021 = vand.u32 %v826, 4294901760
        %v1022 = vsub.f32 %v826, %v1021
        %v1023 = vand.u32 %v1022, 4294901760
        %v1024 = vsub.f32 %v1022, %v1023
        %v1025 = vand.u32 %v1024, 4294901760
        %1026 = vmatpush.msra.mxu0 %v1025
        %v1027 = vand.u32 %v752, 4294901760
        %1028 = vmatmul.f32.gmra.mxu0 %v1027
        %v1029 = vpop.f32.mrf.mxu0
        %v1030 = vadd.f32 %v929, %v1029
        %1031 = vdwg.mxu0
        %v1032 = vand.u32 %v856, 4294901760
        %v1033 = vsub.f32 %v856, %v1032
        %1034 = vmatpush.msra.mxu0 %v1033
        %v1035 = vand.u32 %v854, 4294901760
        %v1036 = vsub.f32 %v854, %v1035
        %1037 = vmatpush.msra.mxu0 %v1036
        %v1038 = vand.u32 %v852, 4294901760
        %v1039 = vsub.f32 %v852, %v1038
        %1040 = vmatpush.msra.mxu0 %v1039
        %v1041 = vand.u32 %v850, 4294901760
        %v1042 = vsub.f32 %v850, %v1041
        %1043 = vmatpush.msra.mxu0 %v1042
        %v1044 = vand.u32 %v848, 4294901760
        %v1045 = vsub.f32 %v848, %v1044
        %1046 = vmatpush.msra.mxu0 %v1045
        %v1047 = vand.u32 %v846, 4294901760
        %v1048 = vsub.f32 %v846, %v1047
        %1049 = vmatpush.msra.mxu0 %v1048
        %v1050 = vand.u32 %v844, 4294901760
        %v1051 = vsub.f32 %v844, %v1050
        %1052 = vmatpush.msra.mxu0 %v1051
        %v1053 = vand.u32 %v842, 4294901760
        %v1054 = vsub.f32 %v842, %v1053
        %1055 = vmatpush.msra.mxu0 %v1054
        %v1056 = vand.u32 %v840, 4294901760
        %v1057 = vsub.f32 %v840, %v1056
        %1058 = vmatpush.msra.mxu0 %v1057
        %v1059 = vand.u32 %v838, 4294901760
        %v1060 = vsub.f32 %v838, %v1059
        %1061 = vmatpush.msra.mxu0 %v1060
        %v1062 = vand.u32 %v836, 4294901760
        %v1063 = vsub.f32 %v836, %v1062
        %1064 = vmatpush.msra.mxu0 %v1063
        %v1065 = vand.u32 %v834, 4294901760
        %v1066 = vsub.f32 %v834, %v1065
        %1067 = vmatpush.msra.mxu0 %v1066
        %v1068 = vand.u32 %v832, 4294901760
        %v1069 = vsub.f32 %v832, %v1068
        %1070 = vmatpush.msra.mxu0 %v1069
        %v1071 = vand.u32 %v830, 4294901760
        %v1072 = vsub.f32 %v830, %v1071
        %1073 = vmatpush.msra.mxu0 %v1072
        %v1074 = vand.u32 %v828, 4294901760
        %v1075 = vsub.f32 %v828, %v1074
        %1076 = vmatpush.msra.mxu0 %v1075
        %v1077 = vand.u32 %v826, 4294901760
        %v1078 = vsub.f32 %v826, %v1077
        %1079 = vmatpush.msra.mxu0 %v1078
        %v1080 = vand.u32 %v752, 4294901760
        %v1081 = vsub.f32 %v752, %v1080
        %1082 = vmatmul.f32.gmra.mxu0 %v1081
        %v1083 = vpop.f32.mrf.mxu0
        %v1084 = vadd.f32 %v1030, %v1083
        %1085 = vdwg.mxu0
        %v1086 = vand.u32 %v856, 4294901760
        %1087 = vmatpush.msra.mxu0 %v1086
        %v1088 = vand.u32 %v854, 4294901760
        %1089 = vmatpush.msra.mxu0 %v1088
        %v1090 = vand.u32 %v852, 4294901760
        %1091 = vmatpush.msra.mxu0 %v1090
        %v1092 = vand.u32 %v850, 4294901760
        %1093 = vmatpush.msra.mxu0 %v1092
        %v1094 = vand.u32 %v848, 4294901760
        %1095 = vmatpush.msra.mxu0 %v1094
        %v1096 = vand.u32 %v846, 4294901760
        %1097 = vmatpush.msra.mxu0 %v1096
        %v1098 = vand.u32 %v844, 4294901760
        %1099 = vmatpush.msra.mxu0 %v1098
        %v1100 = vand.u32 %v842, 4294901760
        %1101 = vmatpush.msra.mxu0 %v1100
        %v1102 = vand.u32 %v840, 4294901760
        %1103 = vmatpush.msra.mxu0 %v1102
        %v1104 = vand.u32 %v838, 4294901760
        %1105 = vmatpush.msra.mxu0 %v1104
        %v1106 = vand.u32 %v836, 4294901760
        %1107 = vmatpush.msra.mxu0 %v1106
        %v1108 = vand.u32 %v834, 4294901760
        %1109 = vmatpush.msra.mxu0 %v1108
        %v1110 = vand.u32 %v832, 4294901760
        %1111 = vmatpush.msra.mxu0 %v1110
        %v1112 = vand.u32 %v830, 4294901760
        %1113 = vmatpush.msra.mxu0 %v1112
        %v1114 = vand.u32 %v828, 4294901760
        %1115 = vmatpush.msra.mxu0 %v1114
        %v1116 = vand.u32 %v826, 4294901760
        %1117 = vmatpush.msra.mxu0 %v1116
        %v1118 = vand.u32 %v752, 4294901760
        %v1119 = vsub.f32 %v752, %v1118
        %v1120 = vand.u32 %v1119, 4294901760
        %1121 = vmatmul.f32.gmra.mxu0 %v1120
        %v1122 = vpop.f32.mrf.mxu0
        %v1123 = vadd.f32 %v1084, %v1122
        %1124 = vdwg.mxu0
        %v1125 = vand.u32 %v856, 4294901760
        %v1126 = vsub.f32 %v856, %v1125
        %v1127 = vand.u32 %v1126, 4294901760
        %1128 = vmatpush.msra.mxu0 %v1127
        %v1129 = vand.u32 %v854, 4294901760
        %v1130 = vsub.f32 %v854, %v1129
        %v1131 = vand.u32 %v1130, 4294901760
        %1132 = vmatpush.msra.mxu0 %v1131
        %v1133 = vand.u32 %v852, 4294901760
        %v1134 = vsub.f32 %v852, %v1133
        %v1135 = vand.u32 %v1134, 4294901760
        %1136 = vmatpush.msra.mxu0 %v1135
        %v1137 = vand.u32 %v850, 4294901760
        %v1138 = vsub.f32 %v850, %v1137
        %v1139 = vand.u32 %v1138, 4294901760
        %1140 = vmatpush.msra.mxu0 %v1139
        %v1141 = vand.u32 %v848, 4294901760
        %v1142 = vsub.f32 %v848, %v1141
        %v1143 = vand.u32 %v1142, 4294901760
        %1144 = vmatpush.msra.mxu0 %v1143
        %v1145 = vand.u32 %v846, 4294901760
        %v1146 = vsub.f32 %v846, %v1145
        %v1147 = vand.u32 %v1146, 4294901760
        %1148 = vmatpush.msra.mxu0 %v1147
        %v1149 = vand.u32 %v844, 4294901760
        %v1150 = vsub.f32 %v844, %v1149
        %v1151 = vand.u32 %v1150, 4294901760
        %1152 = vmatpush.msra.mxu0 %v1151
        %v1153 = vand.u32 %v842, 4294901760
        %v1154 = vsub.f32 %v842, %v1153
        %v1155 = vand.u32 %v1154, 4294901760
        %1156 = vmatpush.msra.mxu0 %v1155
        %v1157 = vand.u32 %v840, 4294901760
        %v1158 = vsub.f32 %v840, %v1157
        %v1159 = vand.u32 %v1158, 4294901760
        %1160 = vmatpush.msra.mxu0 %v1159
        %v1161 = vand.u32 %v838, 4294901760
        %v1162 = vsub.f32 %v838, %v1161
        %v1163 = vand.u32 %v1162, 4294901760
        %1164 = vmatpush.msra.mxu0 %v1163
        %v1165 = vand.u32 %v836, 4294901760
        %v1166 = vsub.f32 %v836, %v1165
        %v1167 = vand.u32 %v1166, 4294901760
        %1168 = vmatpush.msra.mxu0 %v1167
        %v1169 = vand.u32 %v834, 4294901760
        %v1170 = vsub.f32 %v834, %v1169
        %v1171 = vand.u32 %v1170, 4294901760
        %1172 = vmatpush.msra.mxu0 %v1171
        %v1173 = vand.u32 %v832, 4294901760
        %v1174 = vsub.f32 %v832, %v1173
        %v1175 = vand.u32 %v1174, 4294901760
        %1176 = vmatpush.msra.mxu0 %v1175
        %v1177 = vand.u32 %v830, 4294901760
        %v1178 = vsub.f32 %v830, %v1177
        %v1179 = vand.u32 %v1178, 4294901760
        %1180 = vmatpush.msra.mxu0 %v1179
        %v1181 = vand.u32 %v828, 4294901760
        %v1182 = vsub.f32 %v828, %v1181
        %v1183 = vand.u32 %v1182, 4294901760
        %1184 = vmatpush.msra.mxu0 %v1183
        %v1185 = vand.u32 %v826, 4294901760
        %v1186 = vsub.f32 %v826, %v1185
        %v1187 = vand.u32 %v1186, 4294901760
        %1188 = vmatpush.msra.mxu0 %v1187
        %v1189 = vand.u32 %v752, 4294901760
        %1190 = vmatmul.f32.gmra.mxu0 %v1189
        %v1191 = vpop.f32.mrf.mxu0
        %v1192 = vadd.f32 %v1123, %v1191
        %1193 = vdwg.mxu0
        %v1194 = vand.u32 %v856, 4294901760
        %1195 = vmatpush.msra.mxu0 %v1194
        %v1196 = vand.u32 %v854, 4294901760
        %1197 = vmatpush.msra.mxu0 %v1196
        %v1198 = vand.u32 %v852, 4294901760
        %1199 = vmatpush.msra.mxu0 %v1198
        %v1200 = vand.u32 %v850, 4294901760
        %1201 = vmatpush.msra.mxu0 %v1200
        %v1202 = vand.u32 %v848, 4294901760
        %1203 = vmatpush.msra.mxu0 %v1202
        %v1204 = vand.u32 %v846, 4294901760
        %1205 = vmatpush.msra.mxu0 %v1204
        %v1206 = vand.u32 %v844, 4294901760
        %1207 = vmatpush.msra.mxu0 %v1206
        %v1208 = vand.u32 %v842, 4294901760
        %1209 = vmatpush.msra.mxu0 %v1208
        %v1210 = vand.u32 %v840, 4294901760
        %1211 = vmatpush.msra.mxu0 %v1210
        %v1212 = vand.u32 %v838, 4294901760
        %1213 = vmatpush.msra.mxu0 %v1212
        %v1214 = vand.u32 %v836, 4294901760
        %1215 = vmatpush.msra.mxu0 %v1214
        %v1216 = vand.u32 %v834, 4294901760
        %1217 = vmatpush.msra.mxu0 %v1216
        %v1218 = vand.u32 %v832, 4294901760
        %1219 = vmatpush.msra.mxu0 %v1218
        %v1220 = vand.u32 %v830, 4294901760
        %1221 = vmatpush.msra.mxu0 %v1220
        %v1222 = vand.u32 %v828, 4294901760
        %1223 = vmatpush.msra.mxu0 %v1222
        %v1224 = vand.u32 %v826, 4294901760
        %1225 = vmatpush.msra.mxu0 %v1224
        %v1226 = vand.u32 %v752, 4294901760
        %1227 = vmatmul.f32.gmra.mxu0 %v1226
        %v1228 = vpop.f32.mrf.mxu0
        %v1229 = vadd.f32 %v1192, %v1228
        %1230 = vdwg.mxu0
        %v1231 = vand.u32 %v888, 4294901760
        %1232 = vmatpush.msra.mxu0 %v1231
        %v1233 = vand.u32 %v886, 4294901760
        %1234 = vmatpush.msra.mxu0 %v1233
        %v1235 = vand.u32 %v884, 4294901760
        %1236 = vmatpush.msra.mxu0 %v1235
        %v1237 = vand.u32 %v882, 4294901760
        %1238 = vmatpush.msra.mxu0 %v1237
        %v1239 = vand.u32 %v880, 4294901760
        %1240 = vmatpush.msra.mxu0 %v1239
        %v1241 = vand.u32 %v878, 4294901760
        %1242 = vmatpush.msra.mxu0 %v1241
        %v1243 = vand.u32 %v876, 4294901760
        %1244 = vmatpush.msra.mxu0 %v1243
        %v1245 = vand.u32 %v874, 4294901760
        %1246 = vmatpush.msra.mxu0 %v1245
        %v1247 = vand.u32 %v872, 4294901760
        %1248 = vmatpush.msra.mxu0 %v1247
        %v1249 = vand.u32 %v870, 4294901760
        %1250 = vmatpush.msra.mxu0 %v1249
        %v1251 = vand.u32 %v868, 4294901760
        %1252 = vmatpush.msra.mxu0 %v1251
        %v1253 = vand.u32 %v866, 4294901760
        %1254 = vmatpush.msra.mxu0 %v1253
        %v1255 = vand.u32 %v864, 4294901760
        %1256 = vmatpush.msra.mxu0 %v1255
        %v1257 = vand.u32 %v862, 4294901760
        %1258 = vmatpush.msra.mxu0 %v1257
        %v1259 = vand.u32 %v860, 4294901760
        %1260 = vmatpush.msra.mxu0 %v1259
        %v1261 = vand.u32 %v858, 4294901760
        %1262 = vmatpush.msra.mxu0 %v1261
        %v1263 = vand.u32 %v761, 4294901760
        %v1264 = vsub.f32 %v761, %v1263
        %v1265 = vand.u32 %v1264, 4294901760
        %v1266 = vsub.f32 %v1264, %v1265
        %v1267 = vand.u32 %v1266, 4294901760
        %1268 = vmatmul.f32.gmra.mxu0 %v1267
        %v1269 = vpop.f32.mrf.mxu0
        %v1270 = vadd.f32 %v1229, %v1269
        %1271 = vdwg.mxu0
        %v1272 = vand.u32 %v888, 4294901760
        %v1273 = vsub.f32 %v888, %v1272
        %v1274 = vand.u32 %v1273, 4294901760
        %v1275 = vsub.f32 %v1273, %v1274
        %v1276 = vand.u32 %v1275, 4294901760
        %1277 = vmatpush.msra.mxu0 %v1276
        %v1278 = vand.u32 %v886, 4294901760
        %v1279 = vsub.f32 %v886, %v1278
        %v1280 = vand.u32 %v1279, 4294901760
        %v1281 = vsub.f32 %v1279, %v1280
        %v1282 = vand.u32 %v1281, 4294901760
        %1283 = vmatpush.msra.mxu0 %v1282
        %v1284 = vand.u32 %v884, 4294901760
        %v1285 = vsub.f32 %v884, %v1284
        %v1286 = vand.u32 %v1285, 4294901760
        %v1287 = vsub.f32 %v1285, %v1286
        %v1288 = vand.u32 %v1287, 4294901760
        %1289 = vmatpush.msra.mxu0 %v1288
        %v1290 = vand.u32 %v882, 4294901760
        %v1291 = vsub.f32 %v882, %v1290
        %v1292 = vand.u32 %v1291, 4294901760
        %v1293 = vsub.f32 %v1291, %v1292
        %v1294 = vand.u32 %v1293, 4294901760
        %1295 = vmatpush.msra.mxu0 %v1294
        %v1296 = vand.u32 %v880, 4294901760
        %v1297 = vsub.f32 %v880, %v1296
        %v1298 = vand.u32 %v1297, 4294901760
        %v1299 = vsub.f32 %v1297, %v1298
        %v1300 = vand.u32 %v1299, 4294901760
        %1301 = vmatpush.msra.mxu0 %v1300
        %v1302 = vand.u32 %v878, 4294901760
        %v1303 = vsub.f32 %v878, %v1302
        %v1304 = vand.u32 %v1303, 4294901760
        %v1305 = vsub.f32 %v1303, %v1304
        %v1306 = vand.u32 %v1305, 4294901760
        %1307 = vmatpush.msra.mxu0 %v1306
        %v1308 = vand.u32 %v876, 4294901760
        %v1309 = vsub.f32 %v876, %v1308
        %v1310 = vand.u32 %v1309, 4294901760
        %v1311 = vsub.f32 %v1309, %v1310
        %v1312 = vand.u32 %v1311, 4294901760
        %1313 = vmatpush.msra.mxu0 %v1312
        %v1314 = vand.u32 %v874, 4294901760
        %v1315 = vsub.f32 %v874, %v1314
        %v1316 = vand.u32 %v1315, 4294901760
        %v1317 = vsub.f32 %v1315, %v1316
        %v1318 = vand.u32 %v1317, 4294901760
        %1319 = vmatpush.msra.mxu0 %v1318
        %v1320 = vand.u32 %v872, 4294901760
        %v1321 = vsub.f32 %v872, %v1320
        %v1322 = vand.u32 %v1321, 4294901760
        %v1323 = vsub.f32 %v1321, %v1322
        %v1324 = vand.u32 %v1323, 4294901760
        %1325 = vmatpush.msra.mxu0 %v1324
        %v1326 = vand.u32 %v870, 4294901760
        %v1327 = vsub.f32 %v870, %v1326
        %v1328 = vand.u32 %v1327, 4294901760
        %v1329 = vsub.f32 %v1327, %v1328
        %v1330 = vand.u32 %v1329, 4294901760
        %1331 = vmatpush.msra.mxu0 %v1330
        %v1332 = vand.u32 %v868, 4294901760
        %v1333 = vsub.f32 %v868, %v1332
        %v1334 = vand.u32 %v1333, 4294901760
        %v1335 = vsub.f32 %v1333, %v1334
        %v1336 = vand.u32 %v1335, 4294901760
        %1337 = vmatpush.msra.mxu0 %v1336
        %v1338 = vand.u32 %v866, 4294901760
        %v1339 = vsub.f32 %v866, %v1338
        %v1340 = vand.u32 %v1339, 4294901760
        %v1341 = vsub.f32 %v1339, %v1340
        %v1342 = vand.u32 %v1341, 4294901760
        %1343 = vmatpush.msra.mxu0 %v1342
        %v1344 = vand.u32 %v864, 4294901760
        %v1345 = vsub.f32 %v864, %v1344
        %v1346 = vand.u32 %v1345, 4294901760
        %v1347 = vsub.f32 %v1345, %v1346
        %v1348 = vand.u32 %v1347, 4294901760
        %1349 = vmatpush.msra.mxu0 %v1348
        %v1350 = vand.u32 %v862, 4294901760
        %v1351 = vsub.f32 %v862, %v1350
        %v1352 = vand.u32 %v1351, 4294901760
        %v1353 = vsub.f32 %v1351, %v1352
        %v1354 = vand.u32 %v1353, 4294901760
        %1355 = vmatpush.msra.mxu0 %v1354
        %v1356 = vand.u32 %v860, 4294901760
        %v1357 = vsub.f32 %v860, %v1356
        %v1358 = vand.u32 %v1357, 4294901760
        %v1359 = vsub.f32 %v1357, %v1358
        %v1360 = vand.u32 %v1359, 4294901760
        %1361 = vmatpush.msra.mxu0 %v1360
        %v1362 = vand.u32 %v858, 4294901760
        %v1363 = vsub.f32 %v858, %v1362
        %v1364 = vand.u32 %v1363, 4294901760
        %v1365 = vsub.f32 %v1363, %v1364
        %v1366 = vand.u32 %v1365, 4294901760
        %1367 = vmatpush.msra.mxu0 %v1366
        %v1368 = vand.u32 %v761, 4294901760
        %1369 = vmatmul.f32.gmra.mxu0 %v1368
        %v1370 = vpop.f32.mrf.mxu0
        %v1371 = vadd.f32 %v1270, %v1370
        %1372 = vdwg.mxu0
        %v1373 = vand.u32 %v888, 4294901760
        %v1374 = vsub.f32 %v888, %v1373
        %1375 = vmatpush.msra.mxu0 %v1374
        %v1376 = vand.u32 %v886, 4294901760
        %v1377 = vsub.f32 %v886, %v1376
        %1378 = vmatpush.msra.mxu0 %v1377
        %v1379 = vand.u32 %v884, 4294901760
        %v1380 = vsub.f32 %v884, %v1379
        %1381 = vmatpush.msra.mxu0 %v1380
        %v1382 = vand.u32 %v882, 4294901760
        %v1383 = vsub.f32 %v882, %v1382
        %1384 = vmatpush.msra.mxu0 %v1383
        %v1385 = vand.u32 %v880, 4294901760
        %v1386 = vsub.f32 %v880, %v1385
        %1387 = vmatpush.msra.mxu0 %v1386
        %v1388 = vand.u32 %v878, 4294901760
        %v1389 = vsub.f32 %v878, %v1388
        %1390 = vmatpush.msra.mxu0 %v1389
        %v1391 = vand.u32 %v876, 4294901760
        %v1392 = vsub.f32 %v876, %v1391
        %1393 = vmatpush.msra.mxu0 %v1392
        %v1394 = vand.u32 %v874, 4294901760
        %v1395 = vsub.f32 %v874, %v1394
        %1396 = vmatpush.msra.mxu0 %v1395
        %v1397 = vand.u32 %v872, 4294901760
        %v1398 = vsub.f32 %v872, %v1397
        %1399 = vmatpush.msra.mxu0 %v1398
        %v1400 = vand.u32 %v870, 4294901760
        %v1401 = vsub.f32 %v870, %v1400
        %1402 = vmatpush.msra.mxu0 %v1401
        %v1403 = vand.u32 %v868, 4294901760
        %v1404 = vsub.f32 %v868, %v1403
        %1405 = vmatpush.msra.mxu0 %v1404
        %v1406 = vand.u32 %v866, 4294901760
        %v1407 = vsub.f32 %v866, %v1406
        %1408 = vmatpush.msra.mxu0 %v1407
        %v1409 = vand.u32 %v864, 4294901760
        %v1410 = vsub.f32 %v864, %v1409
        %1411 = vmatpush.msra.mxu0 %v1410
        %v1412 = vand.u32 %v862, 4294901760
        %v1413 = vsub.f32 %v862, %v1412
        %1414 = vmatpush.msra.mxu0 %v1413
        %v1415 = vand.u32 %v860, 4294901760
        %v1416 = vsub.f32 %v860, %v1415
        %1417 = vmatpush.msra.mxu0 %v1416
        %v1418 = vand.u32 %v858, 4294901760
        %v1419 = vsub.f32 %v858, %v1418
        %1420 = vmatpush.msra.mxu0 %v1419
        %v1421 = vand.u32 %v761, 4294901760
        %v1422 = vsub.f32 %v761, %v1421
        %1423 = vmatmul.f32.gmra.mxu0 %v1422
        %v1424 = vpop.f32.mrf.mxu0
        %v1425 = vadd.f32 %v1371, %v1424
        %1426 = vdwg.mxu0
        %v1427 = vand.u32 %v888, 4294901760
        %1428 = vmatpush.msra.mxu0 %v1427
        %v1429 = vand.u32 %v886, 4294901760
        %1430 = vmatpush.msra.mxu0 %v1429
        %v1431 = vand.u32 %v884, 4294901760
        %1432 = vmatpush.msra.mxu0 %v1431
        %v1433 = vand.u32 %v882, 4294901760
        %1434 = vmatpush.msra.mxu0 %v1433
        %v1435 = vand.u32 %v880, 4294901760
        %1436 = vmatpush.msra.mxu0 %v1435
        %v1437 = vand.u32 %v878, 4294901760
        %1438 = vmatpush.msra.mxu0 %v1437
        %v1439 = vand.u32 %v876, 4294901760
        %1440 = vmatpush.msra.mxu0 %v1439
        %v1441 = vand.u32 %v874, 4294901760
        %1442 = vmatpush.msra.mxu0 %v1441
        %v1443 = vand.u32 %v872, 4294901760
        %1444 = vmatpush.msra.mxu0 %v1443
        %v1445 = vand.u32 %v870, 4294901760
        %1446 = vmatpush.msra.mxu0 %v1445
        %v1447 = vand.u32 %v868, 4294901760
        %1448 = vmatpush.msra.mxu0 %v1447
        %v1449 = vand.u32 %v866, 4294901760
        %1450 = vmatpush.msra.mxu0 %v1449
        %v1451 = vand.u32 %v864, 4294901760
        %1452 = vmatpush.msra.mxu0 %v1451
        %v1453 = vand.u32 %v862, 4294901760
        %1454 = vmatpush.msra.mxu0 %v1453
        %v1455 = vand.u32 %v860, 4294901760
        %1456 = vmatpush.msra.mxu0 %v1455
        %v1457 = vand.u32 %v858, 4294901760
        %1458 = vmatpush.msra.mxu0 %v1457
        %v1459 = vand.u32 %v761, 4294901760
        %v1460 = vsub.f32 %v761, %v1459
        %v1461 = vand.u32 %v1460, 4294901760
        %1462 = vmatmul.f32.gmra.mxu0 %v1461
        %v1463 = vpop.f32.mrf.mxu0
        %v1464 = vadd.f32 %v1425, %v1463
        %1465 = vdwg.mxu0
        %v1466 = vand.u32 %v888, 4294901760
        %v1467 = vsub.f32 %v888, %v1466
        %v1468 = vand.u32 %v1467, 4294901760
        %1469 = vmatpush.msra.mxu0 %v1468
        %v1470 = vand.u32 %v886, 4294901760
        %v1471 = vsub.f32 %v886, %v1470
        %v1472 = vand.u32 %v1471, 4294901760
        %1473 = vmatpush.msra.mxu0 %v1472
        %v1474 = vand.u32 %v884, 4294901760
        %v1475 = vsub.f32 %v884, %v1474
        %v1476 = vand.u32 %v1475, 4294901760
        %1477 = vmatpush.msra.mxu0 %v1476
        %v1478 = vand.u32 %v882, 4294901760
        %v1479 = vsub.f32 %v882, %v1478
        %v1480 = vand.u32 %v1479, 4294901760
        %1481 = vmatpush.msra.mxu0 %v1480
        %v1482 = vand.u32 %v880, 4294901760
        %v1483 = vsub.f32 %v880, %v1482
        %v1484 = vand.u32 %v1483, 4294901760
        %1485 = vmatpush.msra.mxu0 %v1484
        %v1486 = vand.u32 %v878, 4294901760
        %v1487 = vsub.f32 %v878, %v1486
        %v1488 = vand.u32 %v1487, 4294901760
        %1489 = vmatpush.msra.mxu0 %v1488
        %v1490 = vand.u32 %v876, 4294901760
        %v1491 = vsub.f32 %v876, %v1490
        %v1492 = vand.u32 %v1491, 4294901760
        %1493 = vmatpush.msra.mxu0 %v1492
        %v1494 = vand.u32 %v874, 4294901760
        %v1495 = vsub.f32 %v874, %v1494
        %v1496 = vand.u32 %v1495, 4294901760
        %1497 = vmatpush.msra.mxu0 %v1496
        %v1498 = vand.u32 %v872, 4294901760
        %v1499 = vsub.f32 %v872, %v1498
        %v1500 = vand.u32 %v1499, 4294901760
        %1501 = vmatpush.msra.mxu0 %v1500
        %v1502 = vand.u32 %v870, 4294901760
        %v1503 = vsub.f32 %v870, %v1502
        %v1504 = vand.u32 %v1503, 4294901760
        %1505 = vmatpush.msra.mxu0 %v1504
        %v1506 = vand.u32 %v868, 4294901760
        %v1507 = vsub.f32 %v868, %v1506
        %v1508 = vand.u32 %v1507, 4294901760
        %1509 = vmatpush.msra.mxu0 %v1508
        %v1510 = vand.u32 %v866, 4294901760
        %v1511 = vsub.f32 %v866, %v1510
        %v1512 = vand.u32 %v1511, 4294901760
        %1513 = vmatpush.msra.mxu0 %v1512
        %v1514 = vand.u32 %v864, 4294901760
        %v1515 = vsub.f32 %v864, %v1514
        %v1516 = vand.u32 %v1515, 4294901760
        %1517 = vmatpush.msra.mxu0 %v1516
        %v1518 = vand.u32 %v862, 4294901760
        %v1519 = vsub.f32 %v862, %v1518
        %v1520 = vand.u32 %v1519, 4294901760
        %1521 = vmatpush.msra.mxu0 %v1520
        %v1522 = vand.u32 %v860, 4294901760
        %v1523 = vsub.f32 %v860, %v1522
        %v1524 = vand.u32 %v1523, 4294901760
        %1525 = vmatpush.msra.mxu0 %v1524
        %v1526 = vand.u32 %v858, 4294901760
        %v1527 = vsub.f32 %v858, %v1526
        %v1528 = vand.u32 %v1527, 4294901760
        %1529 = vmatpush.msra.mxu0 %v1528
        %v1530 = vand.u32 %v761, 4294901760
        %1531 = vmatmul.f32.gmra.mxu0 %v1530
        %v1532 = vpop.f32.mrf.mxu0
        %v1533 = vadd.f32 %v1464, %v1532
        %1534 = vdwg.mxu0
        %v1535 = vand.u32 %v888, 4294901760
        %1536 = vmatpush.msra.mxu0 %v1535
        %v1537 = vand.u32 %v886, 4294901760
        %1538 = vmatpush.msra.mxu0 %v1537
        %v1539 = vand.u32 %v884, 4294901760
        %1540 = vmatpush.msra.mxu0 %v1539
        %v1541 = vand.u32 %v882, 4294901760
        %1542 = vmatpush.msra.mxu0 %v1541
        %v1543 = vand.u32 %v880, 4294901760
        %1544 = vmatpush.msra.mxu0 %v1543
        %v1545 = vand.u32 %v878, 4294901760
        %1546 = vmatpush.msra.mxu0 %v1545
        %v1547 = vand.u32 %v876, 4294901760
        %1548 = vmatpush.msra.mxu0 %v1547
        %v1549 = vand.u32 %v874, 4294901760
        %1550 = vmatpush.msra.mxu0 %v1549
        %v1551 = vand.u32 %v872, 4294901760
        %1552 = vmatpush.msra.mxu0 %v1551
        %v1553 = vand.u32 %v870, 4294901760
        %1554 = vmatpush.msra.mxu0 %v1553
        %v1555 = vand.u32 %v868, 4294901760
        %1556 = vmatpush.msra.mxu0 %v1555
        %v1557 = vand.u32 %v866, 4294901760
        %1558 = vmatpush.msra.mxu0 %v1557
        %v1559 = vand.u32 %v864, 4294901760
        %1560 = vmatpush.msra.mxu0 %v1559
        %v1561 = vand.u32 %v862, 4294901760
        %1562 = vmatpush.msra.mxu0 %v1561
        %v1563 = vand.u32 %v860, 4294901760
        %1564 = vmatpush.msra.mxu0 %v1563
        %v1565 = vand.u32 %v858, 4294901760
        %1566 = vmatpush.msra.mxu0 %v1565
        %v1567 = vand.u32 %v761, 4294901760
        %1568 = vmatmul.f32.gmra.mxu0 %v1567
        %v1569 = vpop.f32.mrf.mxu0
        %v1570 = vadd.f32 %v1533, %v1569
        %1571 = vdwg.mxu0
        %v1572 = vand.u32 %v857, 4294901760
        %1573 = vmatpush.msra.mxu0 %v1572
        %v1574 = vand.u32 %v855, 4294901760
        %1575 = vmatpush.msra.mxu0 %v1574
        %v1576 = vand.u32 %v853, 4294901760
        %1577 = vmatpush.msra.mxu0 %v1576
        %v1578 = vand.u32 %v851, 4294901760
        %1579 = vmatpush.msra.mxu0 %v1578
        %v1580 = vand.u32 %v849, 4294901760
        %1581 = vmatpush.msra.mxu0 %v1580
        %v1582 = vand.u32 %v847, 4294901760
        %1583 = vmatpush.msra.mxu0 %v1582
        %v1584 = vand.u32 %v845, 4294901760
        %1585 = vmatpush.msra.mxu0 %v1584
        %v1586 = vand.u32 %v843, 4294901760
        %1587 = vmatpush.msra.mxu0 %v1586
        %v1588 = vand.u32 %v841, 4294901760
        %1589 = vmatpush.msra.mxu0 %v1588
        %v1590 = vand.u32 %v839, 4294901760
        %1591 = vmatpush.msra.mxu0 %v1590
        %v1592 = vand.u32 %v837, 4294901760
        %1593 = vmatpush.msra.mxu0 %v1592
        %v1594 = vand.u32 %v835, 4294901760
        %1595 = vmatpush.msra.mxu0 %v1594
        %v1596 = vand.u32 %v833, 4294901760
        %1597 = vmatpush.msra.mxu0 %v1596
        %v1598 = vand.u32 %v831, 4294901760
        %1599 = vmatpush.msra.mxu0 %v1598
        %v1600 = vand.u32 %v829, 4294901760
        %1601 = vmatpush.msra.mxu0 %v1600
        %v1602 = vand.u32 %v827, 4294901760
        %1603 = vmatpush.msra.mxu0 %v1602
        %v1604 = vand.u32 %v752, 4294901760
        %v1605 = vsub.f32 %v752, %v1604
        %v1606 = vand.u32 %v1605, 4294901760
        %v1607 = vsub.f32 %v1605, %v1606
        %v1608 = vand.u32 %v1607, 4294901760
        %1609 = vmatmul.f32.gmra.mxu0 %v1608
        %v1610 = vpop.f32.mrf.mxu0
        %v1611 = vadd.f32 0.0, %v1610
        %1612 = vdwg.mxu0
        %v1613 = vand.u32 %v857, 4294901760
        %v1614 = vsub.f32 %v857, %v1613
        %v1615 = vand.u32 %v1614, 4294901760
        %v1616 = vsub.f32 %v1614, %v1615
        %v1617 = vand.u32 %v1616, 4294901760
        %1618 = vmatpush.msra.mxu0 %v1617
        %v1619 = vand.u32 %v855, 4294901760
        %v1620 = vsub.f32 %v855, %v1619
        %v1621 = vand.u32 %v1620, 4294901760
        %v1622 = vsub.f32 %v1620, %v1621
        %v1623 = vand.u32 %v1622, 4294901760
        %1624 = vmatpush.msra.mxu0 %v1623
        %v1625 = vand.u32 %v853, 4294901760
        %v1626 = vsub.f32 %v853, %v1625
        %v1627 = vand.u32 %v1626, 4294901760
        %v1628 = vsub.f32 %v1626, %v1627
        %v1629 = vand.u32 %v1628, 4294901760
        %1630 = vmatpush.msra.mxu0 %v1629
        %v1631 = vand.u32 %v851, 4294901760
        %v1632 = vsub.f32 %v851, %v1631
        %v1633 = vand.u32 %v1632, 4294901760
        %v1634 = vsub.f32 %v1632, %v1633
        %v1635 = vand.u32 %v1634, 4294901760
        %1636 = vmatpush.msra.mxu0 %v1635
        %v1637 = vand.u32 %v849, 4294901760
        %v1638 = vsub.f32 %v849, %v1637
        %v1639 = vand.u32 %v1638, 4294901760
        %v1640 = vsub.f32 %v1638, %v1639
        %v1641 = vand.u32 %v1640, 4294901760
        %1642 = vmatpush.msra.mxu0 %v1641
        %v1643 = vand.u32 %v847, 4294901760
        %v1644 = vsub.f32 %v847, %v1643
        %v1645 = vand.u32 %v1644, 4294901760
        %v1646 = vsub.f32 %v1644, %v1645
        %v1647 = vand.u32 %v1646, 4294901760
        %1648 = vmatpush.msra.mxu0 %v1647
        %v1649 = vand.u32 %v845, 4294901760
        %v1650 = vsub.f32 %v845, %v1649
        %v1651 = vand.u32 %v1650, 4294901760
        %v1652 = vsub.f32 %v1650, %v1651
        %v1653 = vand.u32 %v1652, 4294901760
        %1654 = vmatpush.msra.mxu0 %v1653
        %v1655 = vand.u32 %v843, 4294901760
        %v1656 = vsub.f32 %v843, %v1655
        %v1657 = vand.u32 %v1656, 4294901760
        %v1658 = vsub.f32 %v1656, %v1657
        %v1659 = vand.u32 %v1658, 4294901760
        %1660 = vmatpush.msra.mxu0 %v1659
        %v1661 = vand.u32 %v841, 4294901760
        %v1662 = vsub.f32 %v841, %v1661
        %v1663 = vand.u32 %v1662, 4294901760
        %v1664 = vsub.f32 %v1662, %v1663
        %v1665 = vand.u32 %v1664, 4294901760
        %1666 = vmatpush.msra.mxu0 %v1665
        %v1667 = vand.u32 %v839, 4294901760
        %v1668 = vsub.f32 %v839, %v1667
        %v1669 = vand.u32 %v1668, 4294901760
        %v1670 = vsub.f32 %v1668, %v1669
        %v1671 = vand.u32 %v1670, 4294901760
        %1672 = vmatpush.msra.mxu0 %v1671
        %v1673 = vand.u32 %v837, 4294901760
        %v1674 = vsub.f32 %v837, %v1673
        %v1675 = vand.u32 %v1674, 4294901760
        %v1676 = vsub.f32 %v1674, %v1675
        %v1677 = vand.u32 %v1676, 4294901760
        %1678 = vmatpush.msra.mxu0 %v1677
        %v1679 = vand.u32 %v835, 4294901760
        %v1680 = vsub.f32 %v835, %v1679
        %v1681 = vand.u32 %v1680, 4294901760
        %v1682 = vsub.f32 %v1680, %v1681
        %v1683 = vand.u32 %v1682, 4294901760
        %1684 = vmatpush.msra.mxu0 %v1683
        %v1685 = vand.u32 %v833, 4294901760
        %v1686 = vsub.f32 %v833, %v1685
        %v1687 = vand.u32 %v1686, 4294901760
        %v1688 = vsub.f32 %v1686, %v1687
        %v1689 = vand.u32 %v1688, 4294901760
        %1690 = vmatpush.msra.mxu0 %v1689
        %v1691 = vand.u32 %v831, 4294901760
        %v1692 = vsub.f32 %v831, %v1691
        %v1693 = vand.u32 %v1692, 4294901760
        %v1694 = vsub.f32 %v1692, %v1693
        %v1695 = vand.u32 %v1694, 4294901760
        %1696 = vmatpush.msra.mxu0 %v1695
        %v1697 = vand.u32 %v829, 4294901760
        %v1698 = vsub.f32 %v829, %v1697
        %v1699 = vand.u32 %v1698, 4294901760
        %v1700 = vsub.f32 %v1698, %v1699
        %v1701 = vand.u32 %v1700, 4294901760
        %1702 = vmatpush.msra.mxu0 %v1701
        %v1703 = vand.u32 %v827, 4294901760
        %v1704 = vsub.f32 %v827, %v1703
        %v1705 = vand.u32 %v1704, 4294901760
        %v1706 = vsub.f32 %v1704, %v1705
        %v1707 = vand.u32 %v1706, 4294901760
        %1708 = vmatpush.msra.mxu0 %v1707
        %v1709 = vand.u32 %v752, 4294901760
        %1710 = vmatmul.f32.gmra.mxu0 %v1709
        %v1711 = vpop.f32.mrf.mxu0
        %v1712 = vadd.f32 %v1611, %v1711
        %1713 = vdwg.mxu0
        %v1714 = vand.u32 %v857, 4294901760
        %v1715 = vsub.f32 %v857, %v1714
        %1716 = vmatpush.msra.mxu0 %v1715
        %v1717 = vand.u32 %v855, 4294901760
        %v1718 = vsub.f32 %v855, %v1717
        %1719 = vmatpush.msra.mxu0 %v1718
        %v1720 = vand.u32 %v853, 4294901760
        %v1721 = vsub.f32 %v853, %v1720
        %1722 = vmatpush.msra.mxu0 %v1721
        %v1723 = vand.u32 %v851, 4294901760
        %v1724 = vsub.f32 %v851, %v1723
        %1725 = vmatpush.msra.mxu0 %v1724
        %v1726 = vand.u32 %v849, 4294901760
        %v1727 = vsub.f32 %v849, %v1726
        %1728 = vmatpush.msra.mxu0 %v1727
        %v1729 = vand.u32 %v847, 4294901760
        %v1730 = vsub.f32 %v847, %v1729
        %1731 = vmatpush.msra.mxu0 %v1730
        %v1732 = vand.u32 %v845, 4294901760
        %v1733 = vsub.f32 %v845, %v1732
        %1734 = vmatpush.msra.mxu0 %v1733
        %v1735 = vand.u32 %v843, 4294901760
        %v1736 = vsub.f32 %v843, %v1735
        %1737 = vmatpush.msra.mxu0 %v1736
        %v1738 = vand.u32 %v841, 4294901760
        %v1739 = vsub.f32 %v841, %v1738
        %1740 = vmatpush.msra.mxu0 %v1739
        %v1741 = vand.u32 %v839, 4294901760
        %v1742 = vsub.f32 %v839, %v1741
        %1743 = vmatpush.msra.mxu0 %v1742
        %v1744 = vand.u32 %v837, 4294901760
        %v1745 = vsub.f32 %v837, %v1744
        %1746 = vmatpush.msra.mxu0 %v1745
        %v1747 = vand.u32 %v835, 4294901760
        %v1748 = vsub.f32 %v835, %v1747
        %1749 = vmatpush.msra.mxu0 %v1748
        %v1750 = vand.u32 %v833, 4294901760
        %v1751 = vsub.f32 %v833, %v1750
        %1752 = vmatpush.msra.mxu0 %v1751
        %v1753 = vand.u32 %v831, 4294901760
        %v1754 = vsub.f32 %v831, %v1753
        %1755 = vmatpush.msra.mxu0 %v1754
        %v1756 = vand.u32 %v829, 4294901760
        %v1757 = vsub.f32 %v829, %v1756
        %1758 = vmatpush.msra.mxu0 %v1757
        %v1759 = vand.u32 %v827, 4294901760
        %v1760 = vsub.f32 %v827, %v1759
        %1761 = vmatpush.msra.mxu0 %v1760
        %v1762 = vand.u32 %v752, 4294901760
        %v1763 = vsub.f32 %v752, %v1762
        %1764 = vmatmul.f32.gmra.mxu0 %v1763
        %v1765 = vpop.f32.mrf.mxu0
        %v1766 = vadd.f32 %v1712, %v1765
        %1767 = vdwg.mxu0
        %v1768 = vand.u32 %v857, 4294901760
        %1769 = vmatpush.msra.mxu0 %v1768
        %v1770 = vand.u32 %v855, 4294901760
        %1771 = vmatpush.msra.mxu0 %v1770
        %v1772 = vand.u32 %v853, 4294901760
        %1773 = vmatpush.msra.mxu0 %v1772
        %v1774 = vand.u32 %v851, 4294901760
        %1775 = vmatpush.msra.mxu0 %v1774
        %v1776 = vand.u32 %v849, 4294901760
        %1777 = vmatpush.msra.mxu0 %v1776
        %v1778 = vand.u32 %v847, 4294901760
        %1779 = vmatpush.msra.mxu0 %v1778
        %v1780 = vand.u32 %v845, 4294901760
        %1781 = vmatpush.msra.mxu0 %v1780
        %v1782 = vand.u32 %v843, 4294901760
        %1783 = vmatpush.msra.mxu0 %v1782
        %v1784 = vand.u32 %v841, 4294901760
        %1785 = vmatpush.msra.mxu0 %v1784
        %v1786 = vand.u32 %v839, 4294901760
        %1787 = vmatpush.msra.mxu0 %v1786
        %v1788 = vand.u32 %v837, 4294901760
        %1789 = vmatpush.msra.mxu0 %v1788
        %v1790 = vand.u32 %v835, 4294901760
        %1791 = vmatpush.msra.mxu0 %v1790
        %v1792 = vand.u32 %v833, 4294901760
        %1793 = vmatpush.msra.mxu0 %v1792
        %v1794 = vand.u32 %v831, 4294901760
        %1795 = vmatpush.msra.mxu0 %v1794
        %v1796 = vand.u32 %v829, 4294901760
        %1797 = vmatpush.msra.mxu0 %v1796
        %v1798 = vand.u32 %v827, 4294901760
        %1799 = vmatpush.msra.mxu0 %v1798
        %v1800 = vand.u32 %v752, 4294901760
        %v1801 = vsub.f32 %v752, %v1800
        %v1802 = vand.u32 %v1801, 4294901760
        %1803 = vmatmul.f32.gmra.mxu0 %v1802
        %v1804 = vpop.f32.mrf.mxu0
        %v1805 = vadd.f32 %v1766, %v1804
        %1806 = vdwg.mxu0
        %v1807 = vand.u32 %v857, 4294901760
        %v1808 = vsub.f32 %v857, %v1807
        %v1809 = vand.u32 %v1808, 4294901760
        %1810 = vmatpush.msra.mxu0 %v1809
        %v1811 = vand.u32 %v855, 4294901760
        %v1812 = vsub.f32 %v855, %v1811
        %v1813 = vand.u32 %v1812, 4294901760
        %1814 = vmatpush.msra.mxu0 %v1813
        %v1815 = vand.u32 %v853, 4294901760
        %v1816 = vsub.f32 %v853, %v1815
        %v1817 = vand.u32 %v1816, 4294901760
        %1818 = vmatpush.msra.mxu0 %v1817
        %v1819 = vand.u32 %v851, 4294901760
        %v1820 = vsub.f32 %v851, %v1819
        %v1821 = vand.u32 %v1820, 4294901760
        %1822 = vmatpush.msra.mxu0 %v1821
        %v1823 = vand.u32 %v849, 4294901760
        %v1824 = vsub.f32 %v849, %v1823
        %v1825 = vand.u32 %v1824, 4294901760
        %1826 = vmatpush.msra.mxu0 %v1825
        %v1827 = vand.u32 %v847, 4294901760
        %v1828 = vsub.f32 %v847, %v1827
        %v1829 = vand.u32 %v1828, 4294901760
        %1830 = vmatpush.msra.mxu0 %v1829
        %v1831 = vand.u32 %v845, 4294901760
        %v1832 = vsub.f32 %v845, %v1831
        %v1833 = vand.u32 %v1832, 4294901760
        %1834 = vmatpush.msra.mxu0 %v1833
        %v1835 = vand.u32 %v843, 4294901760
        %v1836 = vsub.f32 %v843, %v1835
        %v1837 = vand.u32 %v1836, 4294901760
        %1838 = vmatpush.msra.mxu0 %v1837
        %v1839 = vand.u32 %v841, 4294901760
        %v1840 = vsub.f32 %v841, %v1839
        %v1841 = vand.u32 %v1840, 4294901760
        %1842 = vmatpush.msra.mxu0 %v1841
        %v1843 = vand.u32 %v839, 4294901760
        %v1844 = vsub.f32 %v839, %v1843
        %v1845 = vand.u32 %v1844, 4294901760
        %1846 = vmatpush.msra.mxu0 %v1845
        %v1847 = vand.u32 %v837, 4294901760
        %v1848 = vsub.f32 %v837, %v1847
        %v1849 = vand.u32 %v1848, 4294901760
        %1850 = vmatpush.msra.mxu0 %v1849
        %v1851 = vand.u32 %v835, 4294901760
        %v1852 = vsub.f32 %v835, %v1851
        %v1853 = vand.u32 %v1852, 4294901760
        %1854 = vmatpush.msra.mxu0 %v1853
        %v1855 = vand.u32 %v833, 4294901760
        %v1856 = vsub.f32 %v833, %v1855
        %v1857 = vand.u32 %v1856, 4294901760
        %1858 = vmatpush.msra.mxu0 %v1857
        %v1859 = vand.u32 %v831, 4294901760
        %v1860 = vsub.f32 %v831, %v1859
        %v1861 = vand.u32 %v1860, 4294901760
        %1862 = vmatpush.msra.mxu0 %v1861
        %v1863 = vand.u32 %v829, 4294901760
        %v1864 = vsub.f32 %v829, %v1863
        %v1865 = vand.u32 %v1864, 4294901760
        %1866 = vmatpush.msra.mxu0 %v1865
        %v1867 = vand.u32 %v827, 4294901760
        %v1868 = vsub.f32 %v827, %v1867
        %v1869 = vand.u32 %v1868, 4294901760
        %1870 = vmatpush.msra.mxu0 %v1869
        %v1871 = vand.u32 %v752, 4294901760
        %1872 = vmatmul.f32.gmra.mxu0 %v1871
        %v1873 = vpop.f32.mrf.mxu0
        %v1874 = vadd.f32 %v1805, %v1873
        %1875 = vdwg.mxu0
        %v1876 = vand.u32 %v857, 4294901760
        %1877 = vmatpush.msra.mxu0 %v1876
        %v1878 = vand.u32 %v855, 4294901760
        %1879 = vmatpush.msra.mxu0 %v1878
        %v1880 = vand.u32 %v853, 4294901760
        %1881 = vmatpush.msra.mxu0 %v1880
        %v1882 = vand.u32 %v851, 4294901760
        %1883 = vmatpush.msra.mxu0 %v1882
        %v1884 = vand.u32 %v849, 4294901760
        %1885 = vmatpush.msra.mxu0 %v1884
        %v1886 = vand.u32 %v847, 4294901760
        %1887 = vmatpush.msra.mxu0 %v1886
        %v1888 = vand.u32 %v845, 4294901760
        %1889 = vmatpush.msra.mxu0 %v1888
        %v1890 = vand.u32 %v843, 4294901760
        %1891 = vmatpush.msra.mxu0 %v1890
        %v1892 = vand.u32 %v841, 4294901760
        %1893 = vmatpush.msra.mxu0 %v1892
        %v1894 = vand.u32 %v839, 4294901760
        %1895 = vmatpush.msra.mxu0 %v1894
        %v1896 = vand.u32 %v837, 4294901760
        %1897 = vmatpush.msra.mxu0 %v1896
        %v1898 = vand.u32 %v835, 4294901760
        %1899 = vmatpush.msra.mxu0 %v1898
        %v1900 = vand.u32 %v833, 4294901760
        %1901 = vmatpush.msra.mxu0 %v1900
        %v1902 = vand.u32 %v831, 4294901760
        %1903 = vmatpush.msra.mxu0 %v1902
        %v1904 = vand.u32 %v829, 4294901760
        %1905 = vmatpush.msra.mxu0 %v1904
        %v1906 = vand.u32 %v827, 4294901760
        %1907 = vmatpush.msra.mxu0 %v1906
        %v1908 = vand.u32 %v752, 4294901760
        %1909 = vmatmul.f32.gmra.mxu0 %v1908
        %v1910 = vpop.f32.mrf.mxu0
        %v1911 = vadd.f32 %v1874, %v1910
        %1912 = vdwg.mxu0
        %v1913 = vand.u32 %v889, 4294901760
        %1914 = vmatpush.msra.mxu0 %v1913
        %v1915 = vand.u32 %v887, 4294901760
        %1916 = vmatpush.msra.mxu0 %v1915
        %v1917 = vand.u32 %v885, 4294901760
        %1918 = vmatpush.msra.mxu0 %v1917
        %v1919 = vand.u32 %v883, 4294901760
        %1920 = vmatpush.msra.mxu0 %v1919
        %v1921 = vand.u32 %v881, 4294901760
        %1922 = vmatpush.msra.mxu0 %v1921
        %v1923 = vand.u32 %v879, 4294901760
        %1924 = vmatpush.msra.mxu0 %v1923
        %v1925 = vand.u32 %v877, 4294901760
        %1926 = vmatpush.msra.mxu0 %v1925
        %v1927 = vand.u32 %v875, 4294901760
        %1928 = vmatpush.msra.mxu0 %v1927
        %v1929 = vand.u32 %v873, 4294901760
        %1930 = vmatpush.msra.mxu0 %v1929
        %v1931 = vand.u32 %v871, 4294901760
        %1932 = vmatpush.msra.mxu0 %v1931
        %v1933 = vand.u32 %v869, 4294901760
        %1934 = vmatpush.msra.mxu0 %v1933
        %v1935 = vand.u32 %v867, 4294901760
        %1936 = vmatpush.msra.mxu0 %v1935
        %v1937 = vand.u32 %v865, 4294901760
        %1938 = vmatpush.msra.mxu0 %v1937
        %v1939 = vand.u32 %v863, 4294901760
        %1940 = vmatpush.msra.mxu0 %v1939
        %v1941 = vand.u32 %v861, 4294901760
        %1942 = vmatpush.msra.mxu0 %v1941
        %v1943 = vand.u32 %v859, 4294901760
        %1944 = vmatpush.msra.mxu0 %v1943
        %v1945 = vand.u32 %v761, 4294901760
        %v1946 = vsub.f32 %v761, %v1945
        %v1947 = vand.u32 %v1946, 4294901760
        %v1948 = vsub.f32 %v1946, %v1947
        %v1949 = vand.u32 %v1948, 4294901760
        %1950 = vmatmul.f32.gmra.mxu0 %v1949
        %v1951 = vpop.f32.mrf.mxu0
        %v1952 = vadd.f32 %v1911, %v1951
        %1953 = vdwg.mxu0
        %v1954 = vand.u32 %v889, 4294901760
        %v1955 = vsub.f32 %v889, %v1954
        %v1956 = vand.u32 %v1955, 4294901760
        %v1957 = vsub.f32 %v1955, %v1956
        %v1958 = vand.u32 %v1957, 4294901760
        %1959 = vmatpush.msra.mxu0 %v1958
        %v1960 = vand.u32 %v887, 4294901760
        %v1961 = vsub.f32 %v887, %v1960
        %v1962 = vand.u32 %v1961, 4294901760
        %v1963 = vsub.f32 %v1961, %v1962
        %v1964 = vand.u32 %v1963, 4294901760
        %1965 = vmatpush.msra.mxu0 %v1964
        %v1966 = vand.u32 %v885, 4294901760
        %v1967 = vsub.f32 %v885, %v1966
        %v1968 = vand.u32 %v1967, 4294901760
        %v1969 = vsub.f32 %v1967, %v1968
        %v1970 = vand.u32 %v1969, 4294901760
        %1971 = vmatpush.msra.mxu0 %v1970
        %v1972 = vand.u32 %v883, 4294901760
        %v1973 = vsub.f32 %v883, %v1972
        %v1974 = vand.u32 %v1973, 4294901760
        %v1975 = vsub.f32 %v1973, %v1974
        %v1976 = vand.u32 %v1975, 4294901760
        %1977 = vmatpush.msra.mxu0 %v1976
        %v1978 = vand.u32 %v881, 4294901760
        %v1979 = vsub.f32 %v881, %v1978
        %v1980 = vand.u32 %v1979, 4294901760
        %v1981 = vsub.f32 %v1979, %v1980
        %v1982 = vand.u32 %v1981, 4294901760
        %1983 = vmatpush.msra.mxu0 %v1982
        %v1984 = vand.u32 %v879, 4294901760
        %v1985 = vsub.f32 %v879, %v1984
        %v1986 = vand.u32 %v1985, 4294901760
        %v1987 = vsub.f32 %v1985, %v1986
        %v1988 = vand.u32 %v1987, 4294901760
        %1989 = vmatpush.msra.mxu0 %v1988
        %v1990 = vand.u32 %v877, 4294901760
        %v1991 = vsub.f32 %v877, %v1990
        %v1992 = vand.u32 %v1991, 4294901760
        %v1993 = vsub.f32 %v1991, %v1992
        %v1994 = vand.u32 %v1993, 4294901760
        %1995 = vmatpush.msra.mxu0 %v1994
        %v1996 = vand.u32 %v875, 4294901760
        %v1997 = vsub.f32 %v875, %v1996
        %v1998 = vand.u32 %v1997, 4294901760
        %v1999 = vsub.f32 %v1997, %v1998
        %v2000 = vand.u32 %v1999, 4294901760
        %2001 = vmatpush.msra.mxu0 %v2000
        %v2002 = vand.u32 %v873, 4294901760
        %v2003 = vsub.f32 %v873, %v2002
        %v2004 = vand.u32 %v2003, 4294901760
        %v2005 = vsub.f32 %v2003, %v2004
        %v2006 = vand.u32 %v2005, 4294901760
        %2007 = vmatpush.msra.mxu0 %v2006
        %v2008 = vand.u32 %v871, 4294901760
        %v2009 = vsub.f32 %v871, %v2008
        %v2010 = vand.u32 %v2009, 4294901760
        %v2011 = vsub.f32 %v2009, %v2010
        %v2012 = vand.u32 %v2011, 4294901760
        %2013 = vmatpush.msra.mxu0 %v2012
        %v2014 = vand.u32 %v869, 4294901760
        %v2015 = vsub.f32 %v869, %v2014
        %v2016 = vand.u32 %v2015, 4294901760
        %v2017 = vsub.f32 %v2015, %v2016
        %v2018 = vand.u32 %v2017, 4294901760
        %2019 = vmatpush.msra.mxu0 %v2018
        %v2020 = vand.u32 %v867, 4294901760
        %v2021 = vsub.f32 %v867, %v2020
        %v2022 = vand.u32 %v2021, 4294901760
        %v2023 = vsub.f32 %v2021, %v2022
        %v2024 = vand.u32 %v2023, 4294901760
        %2025 = vmatpush.msra.mxu0 %v2024
        %v2026 = vand.u32 %v865, 4294901760
        %v2027 = vsub.f32 %v865, %v2026
        %v2028 = vand.u32 %v2027, 4294901760
        %v2029 = vsub.f32 %v2027, %v2028
        %v2030 = vand.u32 %v2029, 4294901760
        %2031 = vmatpush.msra.mxu0 %v2030
        %v2032 = vand.u32 %v863, 4294901760
        %v2033 = vsub.f32 %v863, %v2032
        %v2034 = vand.u32 %v2033, 4294901760
        %v2035 = vsub.f32 %v2033, %v2034
        %v2036 = vand.u32 %v2035, 4294901760
        %2037 = vmatpush.msra.mxu0 %v2036
        %v2038 = vand.u32 %v861, 4294901760
        %v2039 = vsub.f32 %v861, %v2038
        %v2040 = vand.u32 %v2039, 4294901760
        %v2041 = vsub.f32 %v2039, %v2040
        %v2042 = vand.u32 %v2041, 4294901760
        %2043 = vmatpush.msra.mxu0 %v2042
        %v2044 = vand.u32 %v859, 4294901760
        %v2045 = vsub.f32 %v859, %v2044
        %v2046 = vand.u32 %v2045, 4294901760
        %v2047 = vsub.f32 %v2045, %v2046
        %v2048 = vand.u32 %v2047, 4294901760
        %2049 = vmatpush.msra.mxu0 %v2048
        %v2050 = vand.u32 %v761, 4294901760
        %2051 = vmatmul.f32.gmra.mxu0 %v2050
        %v2052 = vpop.f32.mrf.mxu0
        %v2053 = vadd.f32 %v1952, %v2052
        %2054 = vdwg.mxu0
        %v2055 = vand.u32 %v889, 4294901760
        %v2056 = vsub.f32 %v889, %v2055
        %2057 = vmatpush.msra.mxu0 %v2056
        %v2058 = vand.u32 %v887, 4294901760
        %v2059 = vsub.f32 %v887, %v2058
        %2060 = vmatpush.msra.mxu0 %v2059
        %v2061 = vand.u32 %v885, 4294901760
        %v2062 = vsub.f32 %v885, %v2061
        %2063 = vmatpush.msra.mxu0 %v2062
        %v2064 = vand.u32 %v883, 4294901760
        %v2065 = vsub.f32 %v883, %v2064
        %2066 = vmatpush.msra.mxu0 %v2065
        %v2067 = vand.u32 %v881, 4294901760
        %v2068 = vsub.f32 %v881, %v2067
        %2069 = vmatpush.msra.mxu0 %v2068
        %v2070 = vand.u32 %v879, 4294901760
        %v2071 = vsub.f32 %v879, %v2070
        %2072 = vmatpush.msra.mxu0 %v2071
        %v2073 = vand.u32 %v877, 4294901760
        %v2074 = vsub.f32 %v877, %v2073
        %2075 = vmatpush.msra.mxu0 %v2074
        %v2076 = vand.u32 %v875, 4294901760
        %v2077 = vsub.f32 %v875, %v2076
        %2078 = vmatpush.msra.mxu0 %v2077
        %v2079 = vand.u32 %v873, 4294901760
        %v2080 = vsub.f32 %v873, %v2079
        %2081 = vmatpush.msra.mxu0 %v2080
        %v2082 = vand.u32 %v871, 4294901760
        %v2083 = vsub.f32 %v871, %v2082
        %2084 = vmatpush.msra.mxu0 %v2083
        %v2085 = vand.u32 %v869, 4294901760
        %v2086 = vsub.f32 %v869, %v2085
        %2087 = vmatpush.msra.mxu0 %v2086
        %v2088 = vand.u32 %v867, 4294901760
        %v2089 = vsub.f32 %v867, %v2088
        %2090 = vmatpush.msra.mxu0 %v2089
        %v2091 = vand.u32 %v865, 4294901760
        %v2092 = vsub.f32 %v865, %v2091
        %2093 = vmatpush.msra.mxu0 %v2092
        %v2094 = vand.u32 %v863, 4294901760
        %v2095 = vsub.f32 %v863, %v2094
        %2096 = vmatpush.msra.mxu0 %v2095
        %v2097 = vand.u32 %v861, 4294901760
        %v2098 = vsub.f32 %v861, %v2097
        %2099 = vmatpush.msra.mxu0 %v2098
        %v2100 = vand.u32 %v859, 4294901760
        %v2101 = vsub.f32 %v859, %v2100
        %2102 = vmatpush.msra.mxu0 %v2101
        %v2103 = vand.u32 %v761, 4294901760
        %v2104 = vsub.f32 %v761, %v2103
        %2105 = vmatmul.f32.gmra.mxu0 %v2104
        %v2106 = vpop.f32.mrf.mxu0
        %v2107 = vadd.f32 %v2053, %v2106
        %2108 = vdwg.mxu0
        %v2109 = vand.u32 %v889, 4294901760
        %2110 = vmatpush.msra.mxu0 %v2109
        %v2111 = vand.u32 %v887, 4294901760
        %2112 = vmatpush.msra.mxu0 %v2111
        %v2113 = vand.u32 %v885, 4294901760
        %2114 = vmatpush.msra.mxu0 %v2113
        %v2115 = vand.u32 %v883, 4294901760
        %2116 = vmatpush.msra.mxu0 %v2115
        %v2117 = vand.u32 %v881, 4294901760
        %2118 = vmatpush.msra.mxu0 %v2117
        %v2119 = vand.u32 %v879, 4294901760
        %2120 = vmatpush.msra.mxu0 %v2119
        %v2121 = vand.u32 %v877, 4294901760
        %2122 = vmatpush.msra.mxu0 %v2121
        %v2123 = vand.u32 %v875, 4294901760
        %2124 = vmatpush.msra.mxu0 %v2123
        %v2125 = vand.u32 %v873, 4294901760
        %2126 = vmatpush.msra.mxu0 %v2125
        %v2127 = vand.u32 %v871, 4294901760
        %2128 = vmatpush.msra.mxu0 %v2127
        %v2129 = vand.u32 %v869, 4294901760
        %2130 = vmatpush.msra.mxu0 %v2129
        %v2131 = vand.u32 %v867, 4294901760
        %2132 = vmatpush.msra.mxu0 %v2131
        %v2133 = vand.u32 %v865, 4294901760
        %2134 = vmatpush.msra.mxu0 %v2133
        %v2135 = vand.u32 %v863, 4294901760
        %2136 = vmatpush.msra.mxu0 %v2135
        %v2137 = vand.u32 %v861, 4294901760
        %2138 = vmatpush.msra.mxu0 %v2137
        %v2139 = vand.u32 %v859, 4294901760
        %2140 = vmatpush.msra.mxu0 %v2139
        %v2141 = vand.u32 %v761, 4294901760
        %v2142 = vsub.f32 %v761, %v2141
        %v2143 = vand.u32 %v2142, 4294901760
        %2144 = vmatmul.f32.gmra.mxu0 %v2143
        %v2145 = vpop.f32.mrf.mxu0
        %v2146 = vadd.f32 %v2107, %v2145
        %2147 = vdwg.mxu0
        %v2148 = vand.u32 %v889, 4294901760
        %v2149 = vsub.f32 %v889, %v2148
        %v2150 = vand.u32 %v2149, 4294901760
        %2151 = vmatpush.msra.mxu0 %v2150
        %v2152 = vand.u32 %v887, 4294901760
        %v2153 = vsub.f32 %v887, %v2152
        %v2154 = vand.u32 %v2153, 4294901760
        %2155 = vmatpush.msra.mxu0 %v2154
        %v2156 = vand.u32 %v885, 4294901760
        %v2157 = vsub.f32 %v885, %v2156
        %v2158 = vand.u32 %v2157, 4294901760
        %2159 = vmatpush.msra.mxu0 %v2158
        %v2160 = vand.u32 %v883, 4294901760
        %v2161 = vsub.f32 %v883, %v2160
        %v2162 = vand.u32 %v2161, 4294901760
        %2163 = vmatpush.msra.mxu0 %v2162
        %v2164 = vand.u32 %v881, 4294901760
        %v2165 = vsub.f32 %v881, %v2164
        %v2166 = vand.u32 %v2165, 4294901760
        %2167 = vmatpush.msra.mxu0 %v2166
        %v2168 = vand.u32 %v879, 4294901760
        %v2169 = vsub.f32 %v879, %v2168
        %v2170 = vand.u32 %v2169, 4294901760
        %2171 = vmatpush.msra.mxu0 %v2170
        %v2172 = vand.u32 %v877, 4294901760
        %v2173 = vsub.f32 %v877, %v2172
        %v2174 = vand.u32 %v2173, 4294901760
        %2175 = vmatpush.msra.mxu0 %v2174
        %v2176 = vand.u32 %v875, 4294901760
        %v2177 = vsub.f32 %v875, %v2176
        %v2178 = vand.u32 %v2177, 4294901760
        %2179 = vmatpush.msra.mxu0 %v2178
        %v2180 = vand.u32 %v873, 4294901760
        %v2181 = vsub.f32 %v873, %v2180
        %v2182 = vand.u32 %v2181, 4294901760
        %2183 = vmatpush.msra.mxu0 %v2182
        %v2184 = vand.u32 %v871, 4294901760
        %v2185 = vsub.f32 %v871, %v2184
        %v2186 = vand.u32 %v2185, 4294901760
        %2187 = vmatpush.msra.mxu0 %v2186
        %v2188 = vand.u32 %v869, 4294901760
        %v2189 = vsub.f32 %v869, %v2188
        %v2190 = vand.u32 %v2189, 4294901760
        %2191 = vmatpush.msra.mxu0 %v2190
        %v2192 = vand.u32 %v867, 4294901760
        %v2193 = vsub.f32 %v867, %v2192
        %v2194 = vand.u32 %v2193, 4294901760
        %2195 = vmatpush.msra.mxu0 %v2194
        %v2196 = vand.u32 %v865, 4294901760
        %v2197 = vsub.f32 %v865, %v2196
        %v2198 = vand.u32 %v2197, 4294901760
        %2199 = vmatpush.msra.mxu0 %v2198
        %v2200 = vand.u32 %v863, 4294901760
        %v2201 = vsub.f32 %v863, %v2200
        %v2202 = vand.u32 %v2201, 4294901760
        %2203 = vmatpush.msra.mxu0 %v2202
        %v2204 = vand.u32 %v861, 4294901760
        %v2205 = vsub.f32 %v861, %v2204
        %v2206 = vand.u32 %v2205, 4294901760
        %2207 = vmatpush.msra.mxu0 %v2206
        %v2208 = vand.u32 %v859, 4294901760
        %v2209 = vsub.f32 %v859, %v2208
        %v2210 = vand.u32 %v2209, 4294901760
        %2211 = vmatpush.msra.mxu0 %v2210
        %v2212 = vand.u32 %v761, 4294901760
        %2213 = vmatmul.f32.gmra.mxu0 %v2212
        %v2214 = vpop.f32.mrf.mxu0
        %v2215 = vadd.f32 %v2146, %v2214
        %2216 = vdwg.mxu0
        %v2217 = vand.u32 %v889, 4294901760
        %2218 = vmatpush.msra.mxu0 %v2217
        %v2219 = vand.u32 %v887, 4294901760
        %2220 = vmatpush.msra.mxu0 %v2219
        %v2221 = vand.u32 %v885, 4294901760
        %2222 = vmatpush.msra.mxu0 %v2221
        %v2223 = vand.u32 %v883, 4294901760
        %2224 = vmatpush.msra.mxu0 %v2223
        %v2225 = vand.u32 %v881, 4294901760
        %2226 = vmatpush.msra.mxu0 %v2225
        %v2227 = vand.u32 %v879, 4294901760
        %2228 = vmatpush.msra.mxu0 %v2227
        %v2229 = vand.u32 %v877, 4294901760
        %2230 = vmatpush.msra.mxu0 %v2229
        %v2231 = vand.u32 %v875, 4294901760
        %2232 = vmatpush.msra.mxu0 %v2231
        %v2233 = vand.u32 %v873, 4294901760
        %2234 = vmatpush.msra.mxu0 %v2233
        %v2235 = vand.u32 %v871, 4294901760
        %2236 = vmatpush.msra.mxu0 %v2235
        %v2237 = vand.u32 %v869, 4294901760
        %2238 = vmatpush.msra.mxu0 %v2237
        %v2239 = vand.u32 %v867, 4294901760
        %2240 = vmatpush.msra.mxu0 %v2239
        %v2241 = vand.u32 %v865, 4294901760
        %2242 = vmatpush.msra.mxu0 %v2241
        %v2243 = vand.u32 %v863, 4294901760
        %2244 = vmatpush.msra.mxu0 %v2243
        %v2245 = vand.u32 %v861, 4294901760
        %2246 = vmatpush.msra.mxu0 %v2245
        %v2247 = vand.u32 %v859, 4294901760
        %2248 = vmatpush.msra.mxu0 %v2247
        %v2249 = vand.u32 %v761, 4294901760
        %2250 = vmatmul.f32.gmra.mxu0 %v2249
        %v2251 = vpop.f32.mrf.mxu0
        %v2252 = vadd.f32 %v2215, %v2251
        %2253 = vdwg.mxu0
        %v2254 = vand.u32 %v792, 4294901760
        %2255 = vmatpush.msra.mxu0 %v2254
        %v2256 = vand.u32 %v790, 4294901760
        %2257 = vmatpush.msra.mxu0 %v2256
        %v2258 = vand.u32 %v788, 4294901760
        %2259 = vmatpush.msra.mxu0 %v2258
        %v2260 = vand.u32 %v786, 4294901760
        %2261 = vmatpush.msra.mxu0 %v2260
        %v2262 = vand.u32 %v784, 4294901760
        %2263 = vmatpush.msra.mxu0 %v2262
        %v2264 = vand.u32 %v782, 4294901760
        %2265 = vmatpush.msra.mxu0 %v2264
        %v2266 = vand.u32 %v780, 4294901760
        %2267 = vmatpush.msra.mxu0 %v2266
        %v2268 = vand.u32 %v778, 4294901760
        %2269 = vmatpush.msra.mxu0 %v2268
        %v2270 = vand.u32 %v776, 4294901760
        %2271 = vmatpush.msra.mxu0 %v2270
        %v2272 = vand.u32 %v774, 4294901760
        %2273 = vmatpush.msra.mxu0 %v2272
        %v2274 = vand.u32 %v772, 4294901760
        %2275 = vmatpush.msra.mxu0 %v2274
        %v2276 = vand.u32 %v770, 4294901760
        %2277 = vmatpush.msra.mxu0 %v2276
        %v2278 = vand.u32 %v768, 4294901760
        %2279 = vmatpush.msra.mxu0 %v2278
        %v2280 = vand.u32 %v766, 4294901760
        %2281 = vmatpush.msra.mxu0 %v2280
        %v2282 = vand.u32 %v764, 4294901760
        %2283 = vmatpush.msra.mxu0 %v2282
        %v2284 = vand.u32 %v762, 4294901760
        %2285 = vmatpush.msra.mxu0 %v2284
        %v2286 = vand.u32 %v742, 4294901760
        %v2287 = vsub.f32 %v742, %v2286
        %v2288 = vand.u32 %v2287, 4294901760
        %v2289 = vsub.f32 %v2287, %v2288
        %v2290 = vand.u32 %v2289, 4294901760
        %2291 = vmatmul.f32.gmra.mxu0 %v2290
        %v2292 = vpop.f32.mrf.mxu0
        %v2293 = vadd.f32 %v1570, %v2292
        %2294 = vdwg.mxu0
        %v2295 = vand.u32 %v792, 4294901760
        %v2296 = vsub.f32 %v792, %v2295
        %v2297 = vand.u32 %v2296, 4294901760
        %v2298 = vsub.f32 %v2296, %v2297
        %v2299 = vand.u32 %v2298, 4294901760
        %2300 = vmatpush.msra.mxu0 %v2299
        %v2301 = vand.u32 %v790, 4294901760
        %v2302 = vsub.f32 %v790, %v2301
        %v2303 = vand.u32 %v2302, 4294901760
        %v2304 = vsub.f32 %v2302, %v2303
        %v2305 = vand.u32 %v2304, 4294901760
        %2306 = vmatpush.msra.mxu0 %v2305
        %v2307 = vand.u32 %v788, 4294901760
        %v2308 = vsub.f32 %v788, %v2307
        %v2309 = vand.u32 %v2308, 4294901760
        %v2310 = vsub.f32 %v2308, %v2309
        %v2311 = vand.u32 %v2310, 4294901760
        %2312 = vmatpush.msra.mxu0 %v2311
        %v2313 = vand.u32 %v786, 4294901760
        %v2314 = vsub.f32 %v786, %v2313
        %v2315 = vand.u32 %v2314, 4294901760
        %v2316 = vsub.f32 %v2314, %v2315
        %v2317 = vand.u32 %v2316, 4294901760
        %2318 = vmatpush.msra.mxu0 %v2317
        %v2319 = vand.u32 %v784, 4294901760
        %v2320 = vsub.f32 %v784, %v2319
        %v2321 = vand.u32 %v2320, 4294901760
        %v2322 = vsub.f32 %v2320, %v2321
        %v2323 = vand.u32 %v2322, 4294901760
        %2324 = vmatpush.msra.mxu0 %v2323
        %v2325 = vand.u32 %v782, 4294901760
        %v2326 = vsub.f32 %v782, %v2325
        %v2327 = vand.u32 %v2326, 4294901760
        %v2328 = vsub.f32 %v2326, %v2327
        %v2329 = vand.u32 %v2328, 4294901760
        %2330 = vmatpush.msra.mxu0 %v2329
        %v2331 = vand.u32 %v780, 4294901760
        %v2332 = vsub.f32 %v780, %v2331
        %v2333 = vand.u32 %v2332, 4294901760
        %v2334 = vsub.f32 %v2332, %v2333
        %v2335 = vand.u32 %v2334, 4294901760
        %2336 = vmatpush.msra.mxu0 %v2335
        %v2337 = vand.u32 %v778, 4294901760
        %v2338 = vsub.f32 %v778, %v2337
        %v2339 = vand.u32 %v2338, 4294901760
        %v2340 = vsub.f32 %v2338, %v2339
        %v2341 = vand.u32 %v2340, 4294901760
        %2342 = vmatpush.msra.mxu0 %v2341
        %v2343 = vand.u32 %v776, 4294901760
        %v2344 = vsub.f32 %v776, %v2343
        %v2345 = vand.u32 %v2344, 4294901760
        %v2346 = vsub.f32 %v2344, %v2345
        %v2347 = vand.u32 %v2346, 4294901760
        %2348 = vmatpush.msra.mxu0 %v2347
        %v2349 = vand.u32 %v774, 4294901760
        %v2350 = vsub.f32 %v774, %v2349
        %v2351 = vand.u32 %v2350, 4294901760
        %v2352 = vsub.f32 %v2350, %v2351
        %v2353 = vand.u32 %v2352, 4294901760
        %2354 = vmatpush.msra.mxu0 %v2353
        %v2355 = vand.u32 %v772, 4294901760
        %v2356 = vsub.f32 %v772, %v2355
        %v2357 = vand.u32 %v2356, 4294901760
        %v2358 = vsub.f32 %v2356, %v2357
        %v2359 = vand.u32 %v2358, 4294901760
        %2360 = vmatpush.msra.mxu0 %v2359
        %v2361 = vand.u32 %v770, 4294901760
        %v2362 = vsub.f32 %v770, %v2361
        %v2363 = vand.u32 %v2362, 4294901760
        %v2364 = vsub.f32 %v2362, %v2363
        %v2365 = vand.u32 %v2364, 4294901760
        %2366 = vmatpush.msra.mxu0 %v2365
        %v2367 = vand.u32 %v768, 4294901760
        %v2368 = vsub.f32 %v768, %v2367
        %v2369 = vand.u32 %v2368, 4294901760
        %v2370 = vsub.f32 %v2368, %v2369
        %v2371 = vand.u32 %v2370, 4294901760
        %2372 = vmatpush.msra.mxu0 %v2371
        %v2373 = vand.u32 %v766, 4294901760
        %v2374 = vsub.f32 %v766, %v2373
        %v2375 = vand.u32 %v2374, 4294901760
        %v2376 = vsub.f32 %v2374, %v2375
        %v2377 = vand.u32 %v2376, 4294901760
        %2378 = vmatpush.msra.mxu0 %v2377
        %v2379 = vand.u32 %v764, 4294901760
        %v2380 = vsub.f32 %v764, %v2379
        %v2381 = vand.u32 %v2380, 4294901760
        %v2382 = vsub.f32 %v2380, %v2381
        %v2383 = vand.u32 %v2382, 4294901760
        %2384 = vmatpush.msra.mxu0 %v2383
        %v2385 = vand.u32 %v762, 4294901760
        %v2386 = vsub.f32 %v762, %v2385
        %v2387 = vand.u32 %v2386, 4294901760
        %v2388 = vsub.f32 %v2386, %v2387
        %v2389 = vand.u32 %v2388, 4294901760
        %2390 = vmatpush.msra.mxu0 %v2389
        %v2391 = vand.u32 %v742, 4294901760
        %2392 = vmatmul.f32.gmra.mxu0 %v2391
        %v2393 = vpop.f32.mrf.mxu0
        %v2394 = vadd.f32 %v2293, %v2393
        %2395 = vdwg.mxu0
        %v2396 = vand.u32 %v792, 4294901760
        %v2397 = vsub.f32 %v792, %v2396
        %2398 = vmatpush.msra.mxu0 %v2397
        %v2399 = vand.u32 %v790, 4294901760
        %v2400 = vsub.f32 %v790, %v2399
        %2401 = vmatpush.msra.mxu0 %v2400
        %v2402 = vand.u32 %v788, 4294901760
        %v2403 = vsub.f32 %v788, %v2402
        %2404 = vmatpush.msra.mxu0 %v2403
        %v2405 = vand.u32 %v786, 4294901760
        %v2406 = vsub.f32 %v786, %v2405
        %2407 = vmatpush.msra.mxu0 %v2406
        %v2408 = vand.u32 %v784, 4294901760
        %v2409 = vsub.f32 %v784, %v2408
        %2410 = vmatpush.msra.mxu0 %v2409
        %v2411 = vand.u32 %v782, 4294901760
        %v2412 = vsub.f32 %v782, %v2411
        %2413 = vmatpush.msra.mxu0 %v2412
        %v2414 = vand.u32 %v780, 4294901760
        %v2415 = vsub.f32 %v780, %v2414
        %2416 = vmatpush.msra.mxu0 %v2415
        %v2417 = vand.u32 %v778, 4294901760
        %v2418 = vsub.f32 %v778, %v2417
        %2419 = vmatpush.msra.mxu0 %v2418
        %v2420 = vand.u32 %v776, 4294901760
        %v2421 = vsub.f32 %v776, %v2420
        %2422 = vmatpush.msra.mxu0 %v2421
        %v2423 = vand.u32 %v774, 4294901760
        %v2424 = vsub.f32 %v774, %v2423
        %2425 = vmatpush.msra.mxu0 %v2424
        %v2426 = vand.u32 %v772, 4294901760
        %v2427 = vsub.f32 %v772, %v2426
        %2428 = vmatpush.msra.mxu0 %v2427
        %v2429 = vand.u32 %v770, 4294901760
        %v2430 = vsub.f32 %v770, %v2429
        %2431 = vmatpush.msra.mxu0 %v2430
        %v2432 = vand.u32 %v768, 4294901760
        %v2433 = vsub.f32 %v768, %v2432
        %2434 = vmatpush.msra.mxu0 %v2433
        %v2435 = vand.u32 %v766, 4294901760
        %v2436 = vsub.f32 %v766, %v2435
        %2437 = vmatpush.msra.mxu0 %v2436
        %v2438 = vand.u32 %v764, 4294901760
        %v2439 = vsub.f32 %v764, %v2438
        %2440 = vmatpush.msra.mxu0 %v2439
        %v2441 = vand.u32 %v762, 4294901760
        %v2442 = vsub.f32 %v762, %v2441
        %2443 = vmatpush.msra.mxu0 %v2442
        %v2444 = vand.u32 %v742, 4294901760
        %v2445 = vsub.f32 %v742, %v2444
        %2446 = vmatmul.f32.gmra.mxu0 %v2445
        %v2447 = vpop.f32.mrf.mxu0
        %v2448 = vadd.f32 %v2394, %v2447
        %2449 = vdwg.mxu0
        %v2450 = vand.u32 %v792, 4294901760
        %2451 = vmatpush.msra.mxu0 %v2450
        %v2452 = vand.u32 %v790, 4294901760
        %2453 = vmatpush.msra.mxu0 %v2452
        %v2454 = vand.u32 %v788, 4294901760
        %2455 = vmatpush.msra.mxu0 %v2454
        %v2456 = vand.u32 %v786, 4294901760
        %2457 = vmatpush.msra.mxu0 %v2456
        %v2458 = vand.u32 %v784, 4294901760
        %2459 = vmatpush.msra.mxu0 %v2458
        %v2460 = vand.u32 %v782, 4294901760
        %2461 = vmatpush.msra.mxu0 %v2460
        %v2462 = vand.u32 %v780, 4294901760
        %2463 = vmatpush.msra.mxu0 %v2462
        %v2464 = vand.u32 %v778, 4294901760
        %2465 = vmatpush.msra.mxu0 %v2464
        %v2466 = vand.u32 %v776, 4294901760
        %2467 = vmatpush.msra.mxu0 %v2466
        %v2468 = vand.u32 %v774, 4294901760
        %2469 = vmatpush.msra.mxu0 %v2468
        %v2470 = vand.u32 %v772, 4294901760
        %2471 = vmatpush.msra.mxu0 %v2470
        %v2472 = vand.u32 %v770, 4294901760
        %2473 = vmatpush.msra.mxu0 %v2472
        %v2474 = vand.u32 %v768, 4294901760
        %2475 = vmatpush.msra.mxu0 %v2474
        %v2476 = vand.u32 %v766, 4294901760
        %2477 = vmatpush.msra.mxu0 %v2476
        %v2478 = vand.u32 %v764, 4294901760
        %2479 = vmatpush.msra.mxu0 %v2478
        %v2480 = vand.u32 %v762, 4294901760
        %2481 = vmatpush.msra.mxu0 %v2480
        %v2482 = vand.u32 %v742, 4294901760
        %v2483 = vsub.f32 %v742, %v2482
        %v2484 = vand.u32 %v2483, 4294901760
        %2485 = vmatmul.f32.gmra.mxu0 %v2484
        %v2486 = vpop.f32.mrf.mxu0
        %v2487 = vadd.f32 %v2448, %v2486
        %2488 = vdwg.mxu0
        %v2489 = vand.u32 %v792, 4294901760
        %v2490 = vsub.f32 %v792, %v2489
        %v2491 = vand.u32 %v2490, 4294901760
        %2492 = vmatpush.msra.mxu0 %v2491
        %v2493 = vand.u32 %v790, 4294901760
        %v2494 = vsub.f32 %v790, %v2493
        %v2495 = vand.u32 %v2494, 4294901760
        %2496 = vmatpush.msra.mxu0 %v2495
        %v2497 = vand.u32 %v788, 4294901760
        %v2498 = vsub.f32 %v788, %v2497
        %v2499 = vand.u32 %v2498, 4294901760
        %2500 = vmatpush.msra.mxu0 %v2499
        %v2501 = vand.u32 %v786, 4294901760
        %v2502 = vsub.f32 %v786, %v2501
        %v2503 = vand.u32 %v2502, 4294901760
        %2504 = vmatpush.msra.mxu0 %v2503
        %v2505 = vand.u32 %v784, 4294901760
        %v2506 = vsub.f32 %v784, %v2505
        %v2507 = vand.u32 %v2506, 4294901760
        %2508 = vmatpush.msra.mxu0 %v2507
        %v2509 = vand.u32 %v782, 4294901760
        %v2510 = vsub.f32 %v782, %v2509
        %v2511 = vand.u32 %v2510, 4294901760
        %2512 = vmatpush.msra.mxu0 %v2511
        %v2513 = vand.u32 %v780, 4294901760
        %v2514 = vsub.f32 %v780, %v2513
        %v2515 = vand.u32 %v2514, 4294901760
        %2516 = vmatpush.msra.mxu0 %v2515
        %v2517 = vand.u32 %v778, 4294901760
        %v2518 = vsub.f32 %v778, %v2517
        %v2519 = vand.u32 %v2518, 4294901760
        %2520 = vmatpush.msra.mxu0 %v2519
        %v2521 = vand.u32 %v776, 4294901760
        %v2522 = vsub.f32 %v776, %v2521
        %v2523 = vand.u32 %v2522, 4294901760
        %2524 = vmatpush.msra.mxu0 %v2523
        %v2525 = vand.u32 %v774, 4294901760
        %v2526 = vsub.f32 %v774, %v2525
        %v2527 = vand.u32 %v2526, 4294901760
        %2528 = vmatpush.msra.mxu0 %v2527
        %v2529 = vand.u32 %v772, 4294901760
        %v2530 = vsub.f32 %v772, %v2529
        %v2531 = vand.u32 %v2530, 4294901760
        %2532 = vmatpush.msra.mxu0 %v2531
        %v2533 = vand.u32 %v770, 4294901760
        %v2534 = vsub.f32 %v770, %v2533
        %v2535 = vand.u32 %v2534, 4294901760
        %2536 = vmatpush.msra.mxu0 %v2535
        %v2537 = vand.u32 %v768, 4294901760
        %v2538 = vsub.f32 %v768, %v2537
        %v2539 = vand.u32 %v2538, 4294901760
        %2540 = vmatpush.msra.mxu0 %v2539
        %v2541 = vand.u32 %v766, 4294901760
        %v2542 = vsub.f32 %v766, %v2541
        %v2543 = vand.u32 %v2542, 4294901760
        %2544 = vmatpush.msra.mxu0 %v2543
        %v2545 = vand.u32 %v764, 4294901760
        %v2546 = vsub.f32 %v764, %v2545
        %v2547 = vand.u32 %v2546, 4294901760
        %2548 = vmatpush.msra.mxu0 %v2547
        %v2549 = vand.u32 %v762, 4294901760
        %v2550 = vsub.f32 %v762, %v2549
        %v2551 = vand.u32 %v2550, 4294901760
        %2552 = vmatpush.msra.mxu0 %v2551
        %v2553 = vand.u32 %v742, 4294901760
        %2554 = vmatmul.f32.gmra.mxu0 %v2553
        %v2555 = vpop.f32.mrf.mxu0
        %v2556 = vadd.f32 %v2487, %v2555
        %2557 = vdwg.mxu0
        %v2558 = vand.u32 %v792, 4294901760
        %2559 = vmatpush.msra.mxu0 %v2558
        %v2560 = vand.u32 %v790, 4294901760
        %2561 = vmatpush.msra.mxu0 %v2560
        %v2562 = vand.u32 %v788, 4294901760
        %2563 = vmatpush.msra.mxu0 %v2562
        %v2564 = vand.u32 %v786, 4294901760
        %2565 = vmatpush.msra.mxu0 %v2564
        %v2566 = vand.u32 %v784, 4294901760
        %2567 = vmatpush.msra.mxu0 %v2566
        %v2568 = vand.u32 %v782, 4294901760
        %2569 = vmatpush.msra.mxu0 %v2568
        %v2570 = vand.u32 %v780, 4294901760
        %2571 = vmatpush.msra.mxu0 %v2570
        %v2572 = vand.u32 %v778, 4294901760
        %2573 = vmatpush.msra.mxu0 %v2572
        %v2574 = vand.u32 %v776, 4294901760
        %2575 = vmatpush.msra.mxu0 %v2574
        %v2576 = vand.u32 %v774, 4294901760
        %2577 = vmatpush.msra.mxu0 %v2576
        %v2578 = vand.u32 %v772, 4294901760
        %2579 = vmatpush.msra.mxu0 %v2578
        %v2580 = vand.u32 %v770, 4294901760
        %2581 = vmatpush.msra.mxu0 %v2580
        %v2582 = vand.u32 %v768, 4294901760
        %2583 = vmatpush.msra.mxu0 %v2582
        %v2584 = vand.u32 %v766, 4294901760
        %2585 = vmatpush.msra.mxu0 %v2584
        %v2586 = vand.u32 %v764, 4294901760
        %2587 = vmatpush.msra.mxu0 %v2586
        %v2588 = vand.u32 %v762, 4294901760
        %2589 = vmatpush.msra.mxu0 %v2588
        %v2590 = vand.u32 %v742, 4294901760
        %2591 = vmatmul.f32.gmra.mxu0 %v2590
        %v2592 = vpop.f32.mrf.mxu0
        %v2593 = vadd.f32 %v2556, %v2592
        %2594 = vdwg.mxu0
        %v2595 = vand.u32 %v824, 4294901760
        %2596 = vmatpush.msra.mxu0 %v2595
        %v2597 = vand.u32 %v822, 4294901760
        %2598 = vmatpush.msra.mxu0 %v2597
        %v2599 = vand.u32 %v820, 4294901760
        %2600 = vmatpush.msra.mxu0 %v2599
        %v2601 = vand.u32 %v818, 4294901760
        %2602 = vmatpush.msra.mxu0 %v2601
        %v2603 = vand.u32 %v816, 4294901760
        %2604 = vmatpush.msra.mxu0 %v2603
        %v2605 = vand.u32 %v814, 4294901760
        %2606 = vmatpush.msra.mxu0 %v2605
        %v2607 = vand.u32 %v812, 4294901760
        %2608 = vmatpush.msra.mxu0 %v2607
        %v2609 = vand.u32 %v810, 4294901760
        %2610 = vmatpush.msra.mxu0 %v2609
        %v2611 = vand.u32 %v808, 4294901760
        %2612 = vmatpush.msra.mxu0 %v2611
        %v2613 = vand.u32 %v806, 4294901760
        %2614 = vmatpush.msra.mxu0 %v2613
        %v2615 = vand.u32 %v804, 4294901760
        %2616 = vmatpush.msra.mxu0 %v2615
        %v2617 = vand.u32 %v802, 4294901760
        %2618 = vmatpush.msra.mxu0 %v2617
        %v2619 = vand.u32 %v800, 4294901760
        %2620 = vmatpush.msra.mxu0 %v2619
        %v2621 = vand.u32 %v798, 4294901760
        %2622 = vmatpush.msra.mxu0 %v2621
        %v2623 = vand.u32 %v796, 4294901760
        %2624 = vmatpush.msra.mxu0 %v2623
        %v2625 = vand.u32 %v794, 4294901760
        %2626 = vmatpush.msra.mxu0 %v2625
        %v2627 = vand.u32 %v743, 4294901760
        %v2628 = vsub.f32 %v743, %v2627
        %v2629 = vand.u32 %v2628, 4294901760
        %v2630 = vsub.f32 %v2628, %v2629
        %v2631 = vand.u32 %v2630, 4294901760
        %2632 = vmatmul.f32.gmra.mxu0 %v2631
        %v2633 = vpop.f32.mrf.mxu0
        %v2634 = vadd.f32 %v2593, %v2633
        %2635 = vdwg.mxu0
        %v2636 = vand.u32 %v824, 4294901760
        %v2637 = vsub.f32 %v824, %v2636
        %v2638 = vand.u32 %v2637, 4294901760
        %v2639 = vsub.f32 %v2637, %v2638
        %v2640 = vand.u32 %v2639, 4294901760
        %2641 = vmatpush.msra.mxu0 %v2640
        %v2642 = vand.u32 %v822, 4294901760
        %v2643 = vsub.f32 %v822, %v2642
        %v2644 = vand.u32 %v2643, 4294901760
        %v2645 = vsub.f32 %v2643, %v2644
        %v2646 = vand.u32 %v2645, 4294901760
        %2647 = vmatpush.msra.mxu0 %v2646
        %v2648 = vand.u32 %v820, 4294901760
        %v2649 = vsub.f32 %v820, %v2648
        %v2650 = vand.u32 %v2649, 4294901760
        %v2651 = vsub.f32 %v2649, %v2650
        %v2652 = vand.u32 %v2651, 4294901760
        %2653 = vmatpush.msra.mxu0 %v2652
        %v2654 = vand.u32 %v818, 4294901760
        %v2655 = vsub.f32 %v818, %v2654
        %v2656 = vand.u32 %v2655, 4294901760
        %v2657 = vsub.f32 %v2655, %v2656
        %v2658 = vand.u32 %v2657, 4294901760
        %2659 = vmatpush.msra.mxu0 %v2658
        %v2660 = vand.u32 %v816, 4294901760
        %v2661 = vsub.f32 %v816, %v2660
        %v2662 = vand.u32 %v2661, 4294901760
        %v2663 = vsub.f32 %v2661, %v2662
        %v2664 = vand.u32 %v2663, 4294901760
        %2665 = vmatpush.msra.mxu0 %v2664
        %v2666 = vand.u32 %v814, 4294901760
        %v2667 = vsub.f32 %v814, %v2666
        %v2668 = vand.u32 %v2667, 4294901760
        %v2669 = vsub.f32 %v2667, %v2668
        %v2670 = vand.u32 %v2669, 4294901760
        %2671 = vmatpush.msra.mxu0 %v2670
        %v2672 = vand.u32 %v812, 4294901760
        %v2673 = vsub.f32 %v812, %v2672
        %v2674 = vand.u32 %v2673, 4294901760
        %v2675 = vsub.f32 %v2673, %v2674
        %v2676 = vand.u32 %v2675, 4294901760
        %2677 = vmatpush.msra.mxu0 %v2676
        %v2678 = vand.u32 %v810, 4294901760
        %v2679 = vsub.f32 %v810, %v2678
        %v2680 = vand.u32 %v2679, 4294901760
        %v2681 = vsub.f32 %v2679, %v2680
        %v2682 = vand.u32 %v2681, 4294901760
        %2683 = vmatpush.msra.mxu0 %v2682
        %v2684 = vand.u32 %v808, 4294901760
        %v2685 = vsub.f32 %v808, %v2684
        %v2686 = vand.u32 %v2685, 4294901760
        %v2687 = vsub.f32 %v2685, %v2686
        %v2688 = vand.u32 %v2687, 4294901760
        %2689 = vmatpush.msra.mxu0 %v2688
        %v2690 = vand.u32 %v806, 4294901760
        %v2691 = vsub.f32 %v806, %v2690
        %v2692 = vand.u32 %v2691, 4294901760
        %v2693 = vsub.f32 %v2691, %v2692
        %v2694 = vand.u32 %v2693, 4294901760
        %2695 = vmatpush.msra.mxu0 %v2694
        %v2696 = vand.u32 %v804, 4294901760
        %v2697 = vsub.f32 %v804, %v2696
        %v2698 = vand.u32 %v2697, 4294901760
        %v2699 = vsub.f32 %v2697, %v2698
        %v2700 = vand.u32 %v2699, 4294901760
        %2701 = vmatpush.msra.mxu0 %v2700
        %v2702 = vand.u32 %v802, 4294901760
        %v2703 = vsub.f32 %v802, %v2702
        %v2704 = vand.u32 %v2703, 4294901760
        %v2705 = vsub.f32 %v2703, %v2704
        %v2706 = vand.u32 %v2705, 4294901760
        %2707 = vmatpush.msra.mxu0 %v2706
        %v2708 = vand.u32 %v800, 4294901760
        %v2709 = vsub.f32 %v800, %v2708
        %v2710 = vand.u32 %v2709, 4294901760
        %v2711 = vsub.f32 %v2709, %v2710
        %v2712 = vand.u32 %v2711, 4294901760
        %2713 = vmatpush.msra.mxu0 %v2712
        %v2714 = vand.u32 %v798, 4294901760
        %v2715 = vsub.f32 %v798, %v2714
        %v2716 = vand.u32 %v2715, 4294901760
        %v2717 = vsub.f32 %v2715, %v2716
        %v2718 = vand.u32 %v2717, 4294901760
        %2719 = vmatpush.msra.mxu0 %v2718
        %v2720 = vand.u32 %v796, 4294901760
        %v2721 = vsub.f32 %v796, %v2720
        %v2722 = vand.u32 %v2721, 4294901760
        %v2723 = vsub.f32 %v2721, %v2722
        %v2724 = vand.u32 %v2723, 4294901760
        %2725 = vmatpush.msra.mxu0 %v2724
        %v2726 = vand.u32 %v794, 4294901760
        %v2727 = vsub.f32 %v794, %v2726
        %v2728 = vand.u32 %v2727, 4294901760
        %v2729 = vsub.f32 %v2727, %v2728
        %v2730 = vand.u32 %v2729, 4294901760
        %2731 = vmatpush.msra.mxu0 %v2730
        %v2732 = vand.u32 %v743, 4294901760
        %2733 = vmatmul.f32.gmra.mxu0 %v2732
        %v2734 = vpop.f32.mrf.mxu0
        %v2735 = vadd.f32 %v2634, %v2734
        %2736 = vdwg.mxu0
        %v2737 = vand.u32 %v824, 4294901760
        %v2738 = vsub.f32 %v824, %v2737
        %2739 = vmatpush.msra.mxu0 %v2738
        %v2740 = vand.u32 %v822, 4294901760
        %v2741 = vsub.f32 %v822, %v2740
        %2742 = vmatpush.msra.mxu0 %v2741
        %v2743 = vand.u32 %v820, 4294901760
        %v2744 = vsub.f32 %v820, %v2743
        %2745 = vmatpush.msra.mxu0 %v2744
        %v2746 = vand.u32 %v818, 4294901760
        %v2747 = vsub.f32 %v818, %v2746
        %2748 = vmatpush.msra.mxu0 %v2747
        %v2749 = vand.u32 %v816, 4294901760
        %v2750 = vsub.f32 %v816, %v2749
        %2751 = vmatpush.msra.mxu0 %v2750
        %v2752 = vand.u32 %v814, 4294901760
        %v2753 = vsub.f32 %v814, %v2752
        %2754 = vmatpush.msra.mxu0 %v2753
        %v2755 = vand.u32 %v812, 4294901760
        %v2756 = vsub.f32 %v812, %v2755
        %2757 = vmatpush.msra.mxu0 %v2756
        %v2758 = vand.u32 %v810, 4294901760
        %v2759 = vsub.f32 %v810, %v2758
        %2760 = vmatpush.msra.mxu0 %v2759
        %v2761 = vand.u32 %v808, 4294901760
        %v2762 = vsub.f32 %v808, %v2761
        %2763 = vmatpush.msra.mxu0 %v2762
        %v2764 = vand.u32 %v806, 4294901760
        %v2765 = vsub.f32 %v806, %v2764
        %2766 = vmatpush.msra.mxu0 %v2765
        %v2767 = vand.u32 %v804, 4294901760
        %v2768 = vsub.f32 %v804, %v2767
        %2769 = vmatpush.msra.mxu0 %v2768
        %v2770 = vand.u32 %v802, 4294901760
        %v2771 = vsub.f32 %v802, %v2770
        %2772 = vmatpush.msra.mxu0 %v2771
        %v2773 = vand.u32 %v800, 4294901760
        %v2774 = vsub.f32 %v800, %v2773
        %2775 = vmatpush.msra.mxu0 %v2774
        %v2776 = vand.u32 %v798, 4294901760
        %v2777 = vsub.f32 %v798, %v2776
        %2778 = vmatpush.msra.mxu0 %v2777
        %v2779 = vand.u32 %v796, 4294901760
        %v2780 = vsub.f32 %v796, %v2779
        %2781 = vmatpush.msra.mxu0 %v2780
        %v2782 = vand.u32 %v794, 4294901760
        %v2783 = vsub.f32 %v794, %v2782
        %2784 = vmatpush.msra.mxu0 %v2783
        %v2785 = vand.u32 %v743, 4294901760
        %v2786 = vsub.f32 %v743, %v2785
        %2787 = vmatmul.f32.gmra.mxu0 %v2786
        %v2788 = vpop.f32.mrf.mxu0
        %v2789 = vadd.f32 %v2735, %v2788
        %2790 = vdwg.mxu0
        %v2791 = vand.u32 %v824, 4294901760
        %2792 = vmatpush.msra.mxu0 %v2791
        %v2793 = vand.u32 %v822, 4294901760
        %2794 = vmatpush.msra.mxu0 %v2793
        %v2795 = vand.u32 %v820, 4294901760
        %2796 = vmatpush.msra.mxu0 %v2795
        %v2797 = vand.u32 %v818, 4294901760
        %2798 = vmatpush.msra.mxu0 %v2797
        %v2799 = vand.u32 %v816, 4294901760
        %2800 = vmatpush.msra.mxu0 %v2799
        %v2801 = vand.u32 %v814, 4294901760
        %2802 = vmatpush.msra.mxu0 %v2801
        %v2803 = vand.u32 %v812, 4294901760
        %2804 = vmatpush.msra.mxu0 %v2803
        %v2805 = vand.u32 %v810, 4294901760
        %2806 = vmatpush.msra.mxu0 %v2805
        %v2807 = vand.u32 %v808, 4294901760
        %2808 = vmatpush.msra.mxu0 %v2807
        %v2809 = vand.u32 %v806, 4294901760
        %2810 = vmatpush.msra.mxu0 %v2809
        %v2811 = vand.u32 %v804, 4294901760
        %2812 = vmatpush.msra.mxu0 %v2811
        %v2813 = vand.u32 %v802, 4294901760
        %2814 = vmatpush.msra.mxu0 %v2813
        %v2815 = vand.u32 %v800, 4294901760
        %2816 = vmatpush.msra.mxu0 %v2815
        %v2817 = vand.u32 %v798, 4294901760
        %2818 = vmatpush.msra.mxu0 %v2817
        %v2819 = vand.u32 %v796, 4294901760
        %2820 = vmatpush.msra.mxu0 %v2819
        %v2821 = vand.u32 %v794, 4294901760
        %2822 = vmatpush.msra.mxu0 %v2821
        %v2823 = vand.u32 %v743, 4294901760
        %v2824 = vsub.f32 %v743, %v2823
        %v2825 = vand.u32 %v2824, 4294901760
        %2826 = vmatmul.f32.gmra.mxu0 %v2825
        %v2827 = vpop.f32.mrf.mxu0
        %v2828 = vadd.f32 %v2789, %v2827
        %2829 = vdwg.mxu0
        %v2830 = vand.u32 %v824, 4294901760
        %v2831 = vsub.f32 %v824, %v2830
        %v2832 = vand.u32 %v2831, 4294901760
        %2833 = vmatpush.msra.mxu0 %v2832
        %v2834 = vand.u32 %v822, 4294901760
        %v2835 = vsub.f32 %v822, %v2834
        %v2836 = vand.u32 %v2835, 4294901760
        %2837 = vmatpush.msra.mxu0 %v2836
        %v2838 = vand.u32 %v820, 4294901760
        %v2839 = vsub.f32 %v820, %v2838
        %v2840 = vand.u32 %v2839, 4294901760
        %2841 = vmatpush.msra.mxu0 %v2840
        %v2842 = vand.u32 %v818, 4294901760
        %v2843 = vsub.f32 %v818, %v2842
        %v2844 = vand.u32 %v2843, 4294901760
        %2845 = vmatpush.msra.mxu0 %v2844
        %v2846 = vand.u32 %v816, 4294901760
        %v2847 = vsub.f32 %v816, %v2846
        %v2848 = vand.u32 %v2847, 4294901760
        %2849 = vmatpush.msra.mxu0 %v2848
        %v2850 = vand.u32 %v814, 4294901760
        %v2851 = vsub.f32 %v814, %v2850
        %v2852 = vand.u32 %v2851, 4294901760
        %2853 = vmatpush.msra.mxu0 %v2852
        %v2854 = vand.u32 %v812, 4294901760
        %v2855 = vsub.f32 %v812, %v2854
        %v2856 = vand.u32 %v2855, 4294901760
        %2857 = vmatpush.msra.mxu0 %v2856
        %v2858 = vand.u32 %v810, 4294901760
        %v2859 = vsub.f32 %v810, %v2858
        %v2860 = vand.u32 %v2859, 4294901760
        %2861 = vmatpush.msra.mxu0 %v2860
        %v2862 = vand.u32 %v808, 4294901760
        %v2863 = vsub.f32 %v808, %v2862
        %v2864 = vand.u32 %v2863, 4294901760
        %2865 = vmatpush.msra.mxu0 %v2864
        %v2866 = vand.u32 %v806, 4294901760
        %v2867 = vsub.f32 %v806, %v2866
        %v2868 = vand.u32 %v2867, 4294901760
        %2869 = vmatpush.msra.mxu0 %v2868
        %v2870 = vand.u32 %v804, 4294901760
        %v2871 = vsub.f32 %v804, %v2870
        %v2872 = vand.u32 %v2871, 4294901760
        %2873 = vmatpush.msra.mxu0 %v2872
        %v2874 = vand.u32 %v802, 4294901760
        %v2875 = vsub.f32 %v802, %v2874
        %v2876 = vand.u32 %v2875, 4294901760
        %2877 = vmatpush.msra.mxu0 %v2876
        %v2878 = vand.u32 %v800, 4294901760
        %v2879 = vsub.f32 %v800, %v2878
        %v2880 = vand.u32 %v2879, 4294901760
        %2881 = vmatpush.msra.mxu0 %v2880
        %v2882 = vand.u32 %v798, 4294901760
        %v2883 = vsub.f32 %v798, %v2882
        %v2884 = vand.u32 %v2883, 4294901760
        %2885 = vmatpush.msra.mxu0 %v2884
        %v2886 = vand.u32 %v796, 4294901760
        %v2887 = vsub.f32 %v796, %v2886
        %v2888 = vand.u32 %v2887, 4294901760
        %2889 = vmatpush.msra.mxu0 %v2888
        %v2890 = vand.u32 %v794, 4294901760
        %v2891 = vsub.f32 %v794, %v2890
        %v2892 = vand.u32 %v2891, 4294901760
        %2893 = vmatpush.msra.mxu0 %v2892
        %v2894 = vand.u32 %v743, 4294901760
        %2895 = vmatmul.f32.gmra.mxu0 %v2894
        %v2896 = vpop.f32.mrf.mxu0
        %v2897 = vadd.f32 %v2828, %v2896
        %2898 = vdwg.mxu0
        %v2899 = vand.u32 %v824, 4294901760
        %2900 = vmatpush.msra.mxu0 %v2899
        %v2901 = vand.u32 %v822, 4294901760
        %2902 = vmatpush.msra.mxu0 %v2901
        %v2903 = vand.u32 %v820, 4294901760
        %2904 = vmatpush.msra.mxu0 %v2903
        %v2905 = vand.u32 %v818, 4294901760
        %2906 = vmatpush.msra.mxu0 %v2905
        %v2907 = vand.u32 %v816, 4294901760
        %2908 = vmatpush.msra.mxu0 %v2907
        %v2909 = vand.u32 %v814, 4294901760
        %2910 = vmatpush.msra.mxu0 %v2909
        %v2911 = vand.u32 %v812, 4294901760
        %2912 = vmatpush.msra.mxu0 %v2911
        %v2913 = vand.u32 %v810, 4294901760
        %2914 = vmatpush.msra.mxu0 %v2913
        %v2915 = vand.u32 %v808, 4294901760
        %2916 = vmatpush.msra.mxu0 %v2915
        %v2917 = vand.u32 %v806, 4294901760
        %2918 = vmatpush.msra.mxu0 %v2917
        %v2919 = vand.u32 %v804, 4294901760
        %2920 = vmatpush.msra.mxu0 %v2919
        %v2921 = vand.u32 %v802, 4294901760
        %2922 = vmatpush.msra.mxu0 %v2921
        %v2923 = vand.u32 %v800, 4294901760
        %2924 = vmatpush.msra.mxu0 %v2923
        %v2925 = vand.u32 %v798, 4294901760
        %2926 = vmatpush.msra.mxu0 %v2925
        %v2927 = vand.u32 %v796, 4294901760
        %2928 = vmatpush.msra.mxu0 %v2927
        %v2929 = vand.u32 %v794, 4294901760
        %2930 = vmatpush.msra.mxu0 %v2929
        %v2931 = vand.u32 %v743, 4294901760
        %2932 = vmatmul.f32.gmra.mxu0 %v2931
        %v2933 = vpop.f32.mrf.mxu0
        %v2934 = vadd.f32 %v2897, %v2933
        %2935 = vdwg.mxu0
        %v2936 = vand.u32 %v793, 4294901760
        %2937 = vmatpush.msra.mxu0 %v2936
        %v2938 = vand.u32 %v791, 4294901760
        %2939 = vmatpush.msra.mxu0 %v2938
        %v2940 = vand.u32 %v789, 4294901760
        %2941 = vmatpush.msra.mxu0 %v2940
        %v2942 = vand.u32 %v787, 4294901760
        %2943 = vmatpush.msra.mxu0 %v2942
        %v2944 = vand.u32 %v785, 4294901760
        %2945 = vmatpush.msra.mxu0 %v2944
        %v2946 = vand.u32 %v783, 4294901760
        %2947 = vmatpush.msra.mxu0 %v2946
        %v2948 = vand.u32 %v781, 4294901760
        %2949 = vmatpush.msra.mxu0 %v2948
        %v2950 = vand.u32 %v779, 4294901760
        %2951 = vmatpush.msra.mxu0 %v2950
        %v2952 = vand.u32 %v777, 4294901760
        %2953 = vmatpush.msra.mxu0 %v2952
        %v2954 = vand.u32 %v775, 4294901760
        %2955 = vmatpush.msra.mxu0 %v2954
        %v2956 = vand.u32 %v773, 4294901760
        %2957 = vmatpush.msra.mxu0 %v2956
        %v2958 = vand.u32 %v771, 4294901760
        %2959 = vmatpush.msra.mxu0 %v2958
        %v2960 = vand.u32 %v769, 4294901760
        %2961 = vmatpush.msra.mxu0 %v2960
        %v2962 = vand.u32 %v767, 4294901760
        %2963 = vmatpush.msra.mxu0 %v2962
        %v2964 = vand.u32 %v765, 4294901760
        %2965 = vmatpush.msra.mxu0 %v2964
        %v2966 = vand.u32 %v763, 4294901760
        %2967 = vmatpush.msra.mxu0 %v2966
        %v2968 = vand.u32 %v742, 4294901760
        %v2969 = vsub.f32 %v742, %v2968
        %v2970 = vand.u32 %v2969, 4294901760
        %v2971 = vsub.f32 %v2969, %v2970
        %v2972 = vand.u32 %v2971, 4294901760
        %2973 = vmatmul.f32.gmra.mxu0 %v2972
        %v2974 = vpop.f32.mrf.mxu0
        %v2975 = vadd.f32 %v2252, %v2974
        %2976 = vdwg.mxu0
        %v2977 = vand.u32 %v793, 4294901760
        %v2978 = vsub.f32 %v793, %v2977
        %v2979 = vand.u32 %v2978, 4294901760
        %v2980 = vsub.f32 %v2978, %v2979
        %v2981 = vand.u32 %v2980, 4294901760
        %2982 = vmatpush.msra.mxu0 %v2981
        %v2983 = vand.u32 %v791, 4294901760
        %v2984 = vsub.f32 %v791, %v2983
        %v2985 = vand.u32 %v2984, 4294901760
        %v2986 = vsub.f32 %v2984, %v2985
        %v2987 = vand.u32 %v2986, 4294901760
        %2988 = vmatpush.msra.mxu0 %v2987
        %v2989 = vand.u32 %v789, 4294901760
        %v2990 = vsub.f32 %v789, %v2989
        %v2991 = vand.u32 %v2990, 4294901760
        %v2992 = vsub.f32 %v2990, %v2991
        %v2993 = vand.u32 %v2992, 4294901760
        %2994 = vmatpush.msra.mxu0 %v2993
        %v2995 = vand.u32 %v787, 4294901760
        %v2996 = vsub.f32 %v787, %v2995
        %v2997 = vand.u32 %v2996, 4294901760
        %v2998 = vsub.f32 %v2996, %v2997
        %v2999 = vand.u32 %v2998, 4294901760
        %3000 = vmatpush.msra.mxu0 %v2999
        %v3001 = vand.u32 %v785, 4294901760
        %v3002 = vsub.f32 %v785, %v3001
        %v3003 = vand.u32 %v3002, 4294901760
        %v3004 = vsub.f32 %v3002, %v3003
        %v3005 = vand.u32 %v3004, 4294901760
        %3006 = vmatpush.msra.mxu0 %v3005
        %v3007 = vand.u32 %v783, 4294901760
        %v3008 = vsub.f32 %v783, %v3007
        %v3009 = vand.u32 %v3008, 4294901760
        %v3010 = vsub.f32 %v3008, %v3009
        %v3011 = vand.u32 %v3010, 4294901760
        %3012 = vmatpush.msra.mxu0 %v3011
        %v3013 = vand.u32 %v781, 4294901760
        %v3014 = vsub.f32 %v781, %v3013
        %v3015 = vand.u32 %v3014, 4294901760
        %v3016 = vsub.f32 %v3014, %v3015
        %v3017 = vand.u32 %v3016, 4294901760
        %3018 = vmatpush.msra.mxu0 %v3017
        %v3019 = vand.u32 %v779, 4294901760
        %v3020 = vsub.f32 %v779, %v3019
        %v3021 = vand.u32 %v3020, 4294901760
        %v3022 = vsub.f32 %v3020, %v3021
        %v3023 = vand.u32 %v3022, 4294901760
        %3024 = vmatpush.msra.mxu0 %v3023
        %v3025 = vand.u32 %v777, 4294901760
        %v3026 = vsub.f32 %v777, %v3025
        %v3027 = vand.u32 %v3026, 4294901760
        %v3028 = vsub.f32 %v3026, %v3027
        %v3029 = vand.u32 %v3028, 4294901760
        %3030 = vmatpush.msra.mxu0 %v3029
        %v3031 = vand.u32 %v775, 4294901760
        %v3032 = vsub.f32 %v775, %v3031
        %v3033 = vand.u32 %v3032, 4294901760
        %v3034 = vsub.f32 %v3032, %v3033
        %v3035 = vand.u32 %v3034, 4294901760
        %3036 = vmatpush.msra.mxu0 %v3035
        %v3037 = vand.u32 %v773, 4294901760
        %v3038 = vsub.f32 %v773, %v3037
        %v3039 = vand.u32 %v3038, 4294901760
        %v3040 = vsub.f32 %v3038, %v3039
        %v3041 = vand.u32 %v3040, 4294901760
        %3042 = vmatpush.msra.mxu0 %v3041
        %v3043 = vand.u32 %v771, 4294901760
        %v3044 = vsub.f32 %v771, %v3043
        %v3045 = vand.u32 %v3044, 4294901760
        %v3046 = vsub.f32 %v3044, %v3045
        %v3047 = vand.u32 %v3046, 4294901760
        %3048 = vmatpush.msra.mxu0 %v3047
        %v3049 = vand.u32 %v769, 4294901760
        %v3050 = vsub.f32 %v769, %v3049
        %v3051 = vand.u32 %v3050, 4294901760
        %v3052 = vsub.f32 %v3050, %v3051
        %v3053 = vand.u32 %v3052, 4294901760
        %3054 = vmatpush.msra.mxu0 %v3053
        %v3055 = vand.u32 %v767, 4294901760
        %v3056 = vsub.f32 %v767, %v3055
        %v3057 = vand.u32 %v3056, 4294901760
        %v3058 = vsub.f32 %v3056, %v3057
        %v3059 = vand.u32 %v3058, 4294901760
        %3060 = vmatpush.msra.mxu0 %v3059
        %v3061 = vand.u32 %v765, 4294901760
        %v3062 = vsub.f32 %v765, %v3061
        %v3063 = vand.u32 %v3062, 4294901760
        %v3064 = vsub.f32 %v3062, %v3063
        %v3065 = vand.u32 %v3064, 4294901760
        %3066 = vmatpush.msra.mxu0 %v3065
        %v3067 = vand.u32 %v763, 4294901760
        %v3068 = vsub.f32 %v763, %v3067
        %v3069 = vand.u32 %v3068, 4294901760
        %v3070 = vsub.f32 %v3068, %v3069
        %v3071 = vand.u32 %v3070, 4294901760
        %3072 = vmatpush.msra.mxu0 %v3071
        %v3073 = vand.u32 %v742, 4294901760
        %3074 = vmatmul.f32.gmra.mxu0 %v3073
        %v3075 = vpop.f32.mrf.mxu0
        %v3076 = vadd.f32 %v2975, %v3075
        %3077 = vdwg.mxu0
        %v3078 = vand.u32 %v793, 4294901760
        %v3079 = vsub.f32 %v793, %v3078
        %3080 = vmatpush.msra.mxu0 %v3079
        %v3081 = vand.u32 %v791, 4294901760
        %v3082 = vsub.f32 %v791, %v3081
        %3083 = vmatpush.msra.mxu0 %v3082
        %v3084 = vand.u32 %v789, 4294901760
        %v3085 = vsub.f32 %v789, %v3084
        %3086 = vmatpush.msra.mxu0 %v3085
        %v3087 = vand.u32 %v787, 4294901760
        %v3088 = vsub.f32 %v787, %v3087
        %3089 = vmatpush.msra.mxu0 %v3088
        %v3090 = vand.u32 %v785, 4294901760
        %v3091 = vsub.f32 %v785, %v3090
        %3092 = vmatpush.msra.mxu0 %v3091
        %v3093 = vand.u32 %v783, 4294901760
        %v3094 = vsub.f32 %v783, %v3093
        %3095 = vmatpush.msra.mxu0 %v3094
        %v3096 = vand.u32 %v781, 4294901760
        %v3097 = vsub.f32 %v781, %v3096
        %3098 = vmatpush.msra.mxu0 %v3097
        %v3099 = vand.u32 %v779, 4294901760
        %v3100 = vsub.f32 %v779, %v3099
        %3101 = vmatpush.msra.mxu0 %v3100
        %v3102 = vand.u32 %v777, 4294901760
        %v3103 = vsub.f32 %v777, %v3102
        %3104 = vmatpush.msra.mxu0 %v3103
        %v3105 = vand.u32 %v775, 4294901760
        %v3106 = vsub.f32 %v775, %v3105
        %3107 = vmatpush.msra.mxu0 %v3106
        %v3108 = vand.u32 %v773, 4294901760
        %v3109 = vsub.f32 %v773, %v3108
        %3110 = vmatpush.msra.mxu0 %v3109
        %v3111 = vand.u32 %v771, 4294901760
        %v3112 = vsub.f32 %v771, %v3111
        %3113 = vmatpush.msra.mxu0 %v3112
        %v3114 = vand.u32 %v769, 4294901760
        %v3115 = vsub.f32 %v769, %v3114
        %3116 = vmatpush.msra.mxu0 %v3115
        %v3117 = vand.u32 %v767, 4294901760
        %v3118 = vsub.f32 %v767, %v3117
        %3119 = vmatpush.msra.mxu0 %v3118
        %v3120 = vand.u32 %v765, 4294901760
        %v3121 = vsub.f32 %v765, %v3120
        %3122 = vmatpush.msra.mxu0 %v3121
        %v3123 = vand.u32 %v763, 4294901760
        %v3124 = vsub.f32 %v763, %v3123
        %3125 = vmatpush.msra.mxu0 %v3124
        %v3126 = vand.u32 %v742, 4294901760
        %v3127 = vsub.f32 %v742, %v3126
        %3128 = vmatmul.f32.gmra.mxu0 %v3127
        %v3129 = vpop.f32.mrf.mxu0
        %v3130 = vadd.f32 %v3076, %v3129
        %3131 = vdwg.mxu0
        %v3132 = vand.u32 %v793, 4294901760
        %3133 = vmatpush.msra.mxu0 %v3132
        %v3134 = vand.u32 %v791, 4294901760
        %3135 = vmatpush.msra.mxu0 %v3134
        %v3136 = vand.u32 %v789, 4294901760
        %3137 = vmatpush.msra.mxu0 %v3136
        %v3138 = vand.u32 %v787, 4294901760
        %3139 = vmatpush.msra.mxu0 %v3138
        %v3140 = vand.u32 %v785, 4294901760
        %3141 = vmatpush.msra.mxu0 %v3140
        %v3142 = vand.u32 %v783, 4294901760
        %3143 = vmatpush.msra.mxu0 %v3142
        %v3144 = vand.u32 %v781, 4294901760
        %3145 = vmatpush.msra.mxu0 %v3144
        %v3146 = vand.u32 %v779, 4294901760
        %3147 = vmatpush.msra.mxu0 %v3146
        %v3148 = vand.u32 %v777, 4294901760
        %3149 = vmatpush.msra.mxu0 %v3148
        %v3150 = vand.u32 %v775, 4294901760
        %3151 = vmatpush.msra.mxu0 %v3150
        %v3152 = vand.u32 %v773, 4294901760
        %3153 = vmatpush.msra.mxu0 %v3152
        %v3154 = vand.u32 %v771, 4294901760
        %3155 = vmatpush.msra.mxu0 %v3154
        %v3156 = vand.u32 %v769, 4294901760
        %3157 = vmatpush.msra.mxu0 %v3156
        %v3158 = vand.u32 %v767, 4294901760
        %3159 = vmatpush.msra.mxu0 %v3158
        %v3160 = vand.u32 %v765, 4294901760
        %3161 = vmatpush.msra.mxu0 %v3160
        %v3162 = vand.u32 %v763, 4294901760
        %3163 = vmatpush.msra.mxu0 %v3162
        %v3164 = vand.u32 %v742, 4294901760
        %v3165 = vsub.f32 %v742, %v3164
        %v3166 = vand.u32 %v3165, 4294901760
        %3167 = vmatmul.f32.gmra.mxu0 %v3166
        %v3168 = vpop.f32.mrf.mxu0
        %v3169 = vadd.f32 %v3130, %v3168
        %3170 = vdwg.mxu0
        %v3171 = vand.u32 %v793, 4294901760
        %v3172 = vsub.f32 %v793, %v3171
        %v3173 = vand.u32 %v3172, 4294901760
        %3174 = vmatpush.msra.mxu0 %v3173
        %v3175 = vand.u32 %v791, 4294901760
        %v3176 = vsub.f32 %v791, %v3175
        %v3177 = vand.u32 %v3176, 4294901760
        %3178 = vmatpush.msra.mxu0 %v3177
        %v3179 = vand.u32 %v789, 4294901760
        %v3180 = vsub.f32 %v789, %v3179
        %v3181 = vand.u32 %v3180, 4294901760
        %3182 = vmatpush.msra.mxu0 %v3181
        %v3183 = vand.u32 %v787, 4294901760
        %v3184 = vsub.f32 %v787, %v3183
        %v3185 = vand.u32 %v3184, 4294901760
        %3186 = vmatpush.msra.mxu0 %v3185
        %v3187 = vand.u32 %v785, 4294901760
        %v3188 = vsub.f32 %v785, %v3187
        %v3189 = vand.u32 %v3188, 4294901760
        %3190 = vmatpush.msra.mxu0 %v3189
        %v3191 = vand.u32 %v783, 4294901760
        %v3192 = vsub.f32 %v783, %v3191
        %v3193 = vand.u32 %v3192, 4294901760
        %3194 = vmatpush.msra.mxu0 %v3193
        %v3195 = vand.u32 %v781, 4294901760
        %v3196 = vsub.f32 %v781, %v3195
        %v3197 = vand.u32 %v3196, 4294901760
        %3198 = vmatpush.msra.mxu0 %v3197
        %v3199 = vand.u32 %v779, 4294901760
        %v3200 = vsub.f32 %v779, %v3199
        %v3201 = vand.u32 %v3200, 4294901760
        %3202 = vmatpush.msra.mxu0 %v3201
        %v3203 = vand.u32 %v777, 4294901760
        %v3204 = vsub.f32 %v777, %v3203
        %v3205 = vand.u32 %v3204, 4294901760
        %3206 = vmatpush.msra.mxu0 %v3205
        %v3207 = vand.u32 %v775, 4294901760
        %v3208 = vsub.f32 %v775, %v3207
        %v3209 = vand.u32 %v3208, 4294901760
        %3210 = vmatpush.msra.mxu0 %v3209
        %v3211 = vand.u32 %v773, 4294901760
        %v3212 = vsub.f32 %v773, %v3211
        %v3213 = vand.u32 %v3212, 4294901760
        %3214 = vmatpush.msra.mxu0 %v3213
        %v3215 = vand.u32 %v771, 4294901760
        %v3216 = vsub.f32 %v771, %v3215
        %v3217 = vand.u32 %v3216, 4294901760
        %3218 = vmatpush.msra.mxu0 %v3217
        %v3219 = vand.u32 %v769, 4294901760
        %v3220 = vsub.f32 %v769, %v3219
        %v3221 = vand.u32 %v3220, 4294901760
        %3222 = vmatpush.msra.mxu0 %v3221
        %v3223 = vand.u32 %v767, 4294901760
        %v3224 = vsub.f32 %v767, %v3223
        %v3225 = vand.u32 %v3224, 4294901760
        %3226 = vmatpush.msra.mxu0 %v3225
        %v3227 = vand.u32 %v765, 4294901760
        %v3228 = vsub.f32 %v765, %v3227
        %v3229 = vand.u32 %v3228, 4294901760
        %3230 = vmatpush.msra.mxu0 %v3229
        %v3231 = vand.u32 %v763, 4294901760
        %v3232 = vsub.f32 %v763, %v3231
        %v3233 = vand.u32 %v3232, 4294901760
        %3234 = vmatpush.msra.mxu0 %v3233
        %v3235 = vand.u32 %v742, 4294901760
        %3236 = vmatmul.f32.gmra.mxu0 %v3235
        %v3237 = vpop.f32.mrf.mxu0
        %v3238 = vadd.f32 %v3169, %v3237
        %3239 = vdwg.mxu0
        %v3240 = vand.u32 %v793, 4294901760
        %3241 = vmatpush.msra.mxu0 %v3240
        %v3242 = vand.u32 %v791, 4294901760
        %3243 = vmatpush.msra.mxu0 %v3242
        %v3244 = vand.u32 %v789, 4294901760
        %3245 = vmatpush.msra.mxu0 %v3244
        %v3246 = vand.u32 %v787, 4294901760
        %3247 = vmatpush.msra.mxu0 %v3246
        %v3248 = vand.u32 %v785, 4294901760
        %3249 = vmatpush.msra.mxu0 %v3248
        %v3250 = vand.u32 %v783, 4294901760
        %3251 = vmatpush.msra.mxu0 %v3250
        %v3252 = vand.u32 %v781, 4294901760
        %3253 = vmatpush.msra.mxu0 %v3252
        %v3254 = vand.u32 %v779, 4294901760
        %3255 = vmatpush.msra.mxu0 %v3254
        %v3256 = vand.u32 %v777, 4294901760
        %3257 = vmatpush.msra.mxu0 %v3256
        %v3258 = vand.u32 %v775, 4294901760
        %3259 = vmatpush.msra.mxu0 %v3258
        %v3260 = vand.u32 %v773, 4294901760
        %3261 = vmatpush.msra.mxu0 %v3260
        %v3262 = vand.u32 %v771, 4294901760
        %3263 = vmatpush.msra.mxu0 %v3262
        %v3264 = vand.u32 %v769, 4294901760
        %3265 = vmatpush.msra.mxu0 %v3264
        %v3266 = vand.u32 %v767, 4294901760
        %3267 = vmatpush.msra.mxu0 %v3266
        %v3268 = vand.u32 %v765, 4294901760
        %3269 = vmatpush.msra.mxu0 %v3268
        %v3270 = vand.u32 %v763, 4294901760
        %3271 = vmatpush.msra.mxu0 %v3270
        %v3272 = vand.u32 %v742, 4294901760
        %3273 = vmatmul.f32.gmra.mxu0 %v3272
        %v3274 = vpop.f32.mrf.mxu0
        %v3275 = vadd.f32 %v3238, %v3274
        %3276 = vdwg.mxu0
        %v3277 = vand.u32 %v825, 4294901760
        %3278 = vmatpush.msra.mxu0 %v3277
        %v3279 = vand.u32 %v823, 4294901760
        %3280 = vmatpush.msra.mxu0 %v3279
        %v3281 = vand.u32 %v821, 4294901760
        %3282 = vmatpush.msra.mxu0 %v3281
        %v3283 = vand.u32 %v819, 4294901760
        %3284 = vmatpush.msra.mxu0 %v3283
        %v3285 = vand.u32 %v817, 4294901760
        %3286 = vmatpush.msra.mxu0 %v3285
        %v3287 = vand.u32 %v815, 4294901760
        %3288 = vmatpush.msra.mxu0 %v3287
        %v3289 = vand.u32 %v813, 4294901760
        %3290 = vmatpush.msra.mxu0 %v3289
        %v3291 = vand.u32 %v811, 4294901760
        %3292 = vmatpush.msra.mxu0 %v3291
        %v3293 = vand.u32 %v809, 4294901760
        %3294 = vmatpush.msra.mxu0 %v3293
        %v3295 = vand.u32 %v807, 4294901760
        %3296 = vmatpush.msra.mxu0 %v3295
        %v3297 = vand.u32 %v805, 4294901760
        %3298 = vmatpush.msra.mxu0 %v3297
        %v3299 = vand.u32 %v803, 4294901760
        %3300 = vmatpush.msra.mxu0 %v3299
        %v3301 = vand.u32 %v801, 4294901760
        %3302 = vmatpush.msra.mxu0 %v3301
        %v3303 = vand.u32 %v799, 4294901760
        %3304 = vmatpush.msra.mxu0 %v3303
        %v3305 = vand.u32 %v797, 4294901760
        %3306 = vmatpush.msra.mxu0 %v3305
        %v3307 = vand.u32 %v795, 4294901760
        %3308 = vmatpush.msra.mxu0 %v3307
        %v3309 = vand.u32 %v743, 4294901760
        %v3310 = vsub.f32 %v743, %v3309
        %v3311 = vand.u32 %v3310, 4294901760
        %v3312 = vsub.f32 %v3310, %v3311
        %v3313 = vand.u32 %v3312, 4294901760
        %3314 = vmatmul.f32.gmra.mxu0 %v3313
        %v3315 = vpop.f32.mrf.mxu0
        %v3316 = vadd.f32 %v3275, %v3315
        %3317 = vdwg.mxu0
        %v3318 = vand.u32 %v825, 4294901760
        %v3319 = vsub.f32 %v825, %v3318
        %v3320 = vand.u32 %v3319, 4294901760
        %v3321 = vsub.f32 %v3319, %v3320
        %v3322 = vand.u32 %v3321, 4294901760
        %3323 = vmatpush.msra.mxu0 %v3322
        %v3324 = vand.u32 %v823, 4294901760
        %v3325 = vsub.f32 %v823, %v3324
        %v3326 = vand.u32 %v3325, 4294901760
        %v3327 = vsub.f32 %v3325, %v3326
        %v3328 = vand.u32 %v3327, 4294901760
        %3329 = vmatpush.msra.mxu0 %v3328
        %v3330 = vand.u32 %v821, 4294901760
        %v3331 = vsub.f32 %v821, %v3330
        %v3332 = vand.u32 %v3331, 4294901760
        %v3333 = vsub.f32 %v3331, %v3332
        %v3334 = vand.u32 %v3333, 4294901760
        %3335 = vmatpush.msra.mxu0 %v3334
        %v3336 = vand.u32 %v819, 4294901760
        %v3337 = vsub.f32 %v819, %v3336
        %v3338 = vand.u32 %v3337, 4294901760
        %v3339 = vsub.f32 %v3337, %v3338
        %v3340 = vand.u32 %v3339, 4294901760
        %3341 = vmatpush.msra.mxu0 %v3340
        %v3342 = vand.u32 %v817, 4294901760
        %v3343 = vsub.f32 %v817, %v3342
        %v3344 = vand.u32 %v3343, 4294901760
        %v3345 = vsub.f32 %v3343, %v3344
        %v3346 = vand.u32 %v3345, 4294901760
        %3347 = vmatpush.msra.mxu0 %v3346
        %v3348 = vand.u32 %v815, 4294901760
        %v3349 = vsub.f32 %v815, %v3348
        %v3350 = vand.u32 %v3349, 4294901760
        %v3351 = vsub.f32 %v3349, %v3350
        %v3352 = vand.u32 %v3351, 4294901760
        %3353 = vmatpush.msra.mxu0 %v3352
        %v3354 = vand.u32 %v813, 4294901760
        %v3355 = vsub.f32 %v813, %v3354
        %v3356 = vand.u32 %v3355, 4294901760
        %v3357 = vsub.f32 %v3355, %v3356
        %v3358 = vand.u32 %v3357, 4294901760
        %3359 = vmatpush.msra.mxu0 %v3358
        %v3360 = vand.u32 %v811, 4294901760
        %v3361 = vsub.f32 %v811, %v3360
        %v3362 = vand.u32 %v3361, 4294901760
        %v3363 = vsub.f32 %v3361, %v3362
        %v3364 = vand.u32 %v3363, 4294901760
        %3365 = vmatpush.msra.mxu0 %v3364
        %v3366 = vand.u32 %v809, 4294901760
        %v3367 = vsub.f32 %v809, %v3366
        %v3368 = vand.u32 %v3367, 4294901760
        %v3369 = vsub.f32 %v3367, %v3368
        %v3370 = vand.u32 %v3369, 4294901760
        %3371 = vmatpush.msra.mxu0 %v3370
        %v3372 = vand.u32 %v807, 4294901760
        %v3373 = vsub.f32 %v807, %v3372
        %v3374 = vand.u32 %v3373, 4294901760
        %v3375 = vsub.f32 %v3373, %v3374
        %v3376 = vand.u32 %v3375, 4294901760
        %3377 = vmatpush.msra.mxu0 %v3376
        %v3378 = vand.u32 %v805, 4294901760
        %v3379 = vsub.f32 %v805, %v3378
        %v3380 = vand.u32 %v3379, 4294901760
        %v3381 = vsub.f32 %v3379, %v3380
        %v3382 = vand.u32 %v3381, 4294901760
        %3383 = vmatpush.msra.mxu0 %v3382
        %v3384 = vand.u32 %v803, 4294901760
        %v3385 = vsub.f32 %v803, %v3384
        %v3386 = vand.u32 %v3385, 4294901760
        %v3387 = vsub.f32 %v3385, %v3386
        %v3388 = vand.u32 %v3387, 4294901760
        %3389 = vmatpush.msra.mxu0 %v3388
        %v3390 = vand.u32 %v801, 4294901760
        %v3391 = vsub.f32 %v801, %v3390
        %v3392 = vand.u32 %v3391, 4294901760
        %v3393 = vsub.f32 %v3391, %v3392
        %v3394 = vand.u32 %v3393, 4294901760
        %3395 = vmatpush.msra.mxu0 %v3394
        %v3396 = vand.u32 %v799, 4294901760
        %v3397 = vsub.f32 %v799, %v3396
        %v3398 = vand.u32 %v3397, 4294901760
        %v3399 = vsub.f32 %v3397, %v3398
        %v3400 = vand.u32 %v3399, 4294901760
        %3401 = vmatpush.msra.mxu0 %v3400
        %v3402 = vand.u32 %v797, 4294901760
        %v3403 = vsub.f32 %v797, %v3402
        %v3404 = vand.u32 %v3403, 4294901760
        %v3405 = vsub.f32 %v3403, %v3404
        %v3406 = vand.u32 %v3405, 4294901760
        %3407 = vmatpush.msra.mxu0 %v3406
        %v3408 = vand.u32 %v795, 4294901760
        %v3409 = vsub.f32 %v795, %v3408
        %v3410 = vand.u32 %v3409, 4294901760
        %v3411 = vsub.f32 %v3409, %v3410
        %v3412 = vand.u32 %v3411, 4294901760
        %3413 = vmatpush.msra.mxu0 %v3412
        %v3414 = vand.u32 %v743, 4294901760
        %3415 = vmatmul.f32.gmra.mxu0 %v3414
        %v3416 = vpop.f32.mrf.mxu0
        %v3417 = vadd.f32 %v3316, %v3416
        %3418 = vdwg.mxu0
        %v3419 = vand.u32 %v825, 4294901760
        %v3420 = vsub.f32 %v825, %v3419
        %3421 = vmatpush.msra.mxu0 %v3420
        %v3422 = vand.u32 %v823, 4294901760
        %v3423 = vsub.f32 %v823, %v3422
        %3424 = vmatpush.msra.mxu0 %v3423
        %v3425 = vand.u32 %v821, 4294901760
        %v3426 = vsub.f32 %v821, %v3425
        %3427 = vmatpush.msra.mxu0 %v3426
        %v3428 = vand.u32 %v819, 4294901760
        %v3429 = vsub.f32 %v819, %v3428
        %3430 = vmatpush.msra.mxu0 %v3429
        %v3431 = vand.u32 %v817, 4294901760
        %v3432 = vsub.f32 %v817, %v3431
        %3433 = vmatpush.msra.mxu0 %v3432
        %v3434 = vand.u32 %v815, 4294901760
        %v3435 = vsub.f32 %v815, %v3434
        %3436 = vmatpush.msra.mxu0 %v3435
        %v3437 = vand.u32 %v813, 4294901760
        %v3438 = vsub.f32 %v813, %v3437
        %3439 = vmatpush.msra.mxu0 %v3438
        %v3440 = vand.u32 %v811, 4294901760
        %v3441 = vsub.f32 %v811, %v3440
        %3442 = vmatpush.msra.mxu0 %v3441
        %v3443 = vand.u32 %v809, 4294901760
        %v3444 = vsub.f32 %v809, %v3443
        %3445 = vmatpush.msra.mxu0 %v3444
        %v3446 = vand.u32 %v807, 4294901760
        %v3447 = vsub.f32 %v807, %v3446
        %3448 = vmatpush.msra.mxu0 %v3447
        %v3449 = vand.u32 %v805, 4294901760
        %v3450 = vsub.f32 %v805, %v3449
        %3451 = vmatpush.msra.mxu0 %v3450
        %v3452 = vand.u32 %v803, 4294901760
        %v3453 = vsub.f32 %v803, %v3452
        %3454 = vmatpush.msra.mxu0 %v3453
        %v3455 = vand.u32 %v801, 4294901760
        %v3456 = vsub.f32 %v801, %v3455
        %3457 = vmatpush.msra.mxu0 %v3456
        %v3458 = vand.u32 %v799, 4294901760
        %v3459 = vsub.f32 %v799, %v3458
        %3460 = vmatpush.msra.mxu0 %v3459
        %v3461 = vand.u32 %v797, 4294901760
        %v3462 = vsub.f32 %v797, %v3461
        %3463 = vmatpush.msra.mxu0 %v3462
        %v3464 = vand.u32 %v795, 4294901760
        %v3465 = vsub.f32 %v795, %v3464
        %3466 = vmatpush.msra.mxu0 %v3465
        %v3467 = vand.u32 %v743, 4294901760
        %v3468 = vsub.f32 %v743, %v3467
        %3469 = vmatmul.f32.gmra.mxu0 %v3468
        %v3470 = vpop.f32.mrf.mxu0
        %v3471 = vadd.f32 %v3417, %v3470
        %3472 = vdwg.mxu0
        %v3473 = vand.u32 %v825, 4294901760
        %3474 = vmatpush.msra.mxu0 %v3473
        %v3475 = vand.u32 %v823, 4294901760
        %3476 = vmatpush.msra.mxu0 %v3475
        %v3477 = vand.u32 %v821, 4294901760
        %3478 = vmatpush.msra.mxu0 %v3477
        %v3479 = vand.u32 %v819, 4294901760
        %3480 = vmatpush.msra.mxu0 %v3479
        %v3481 = vand.u32 %v817, 4294901760
        %3482 = vmatpush.msra.mxu0 %v3481
        %v3483 = vand.u32 %v815, 4294901760
        %3484 = vmatpush.msra.mxu0 %v3483
        %v3485 = vand.u32 %v813, 4294901760
        %3486 = vmatpush.msra.mxu0 %v3485
        %v3487 = vand.u32 %v811, 4294901760
        %3488 = vmatpush.msra.mxu0 %v3487
        %v3489 = vand.u32 %v809, 4294901760
        %3490 = vmatpush.msra.mxu0 %v3489
        %v3491 = vand.u32 %v807, 4294901760
        %3492 = vmatpush.msra.mxu0 %v3491
        %v3493 = vand.u32 %v805, 4294901760
        %3494 = vmatpush.msra.mxu0 %v3493
        %v3495 = vand.u32 %v803, 4294901760
        %3496 = vmatpush.msra.mxu0 %v3495
        %v3497 = vand.u32 %v801, 4294901760
        %3498 = vmatpush.msra.mxu0 %v3497
        %v3499 = vand.u32 %v799, 4294901760
        %3500 = vmatpush.msra.mxu0 %v3499
        %v3501 = vand.u32 %v797, 4294901760
        %3502 = vmatpush.msra.mxu0 %v3501
        %v3503 = vand.u32 %v795, 4294901760
        %3504 = vmatpush.msra.mxu0 %v3503
        %v3505 = vand.u32 %v743, 4294901760
        %v3506 = vsub.f32 %v743, %v3505
        %v3507 = vand.u32 %v3506, 4294901760
        %3508 = vmatmul.f32.gmra.mxu0 %v3507
        %v3509 = vpop.f32.mrf.mxu0
        %v3510 = vadd.f32 %v3471, %v3509
        %3511 = vdwg.mxu0
        %v3512 = vand.u32 %v825, 4294901760
        %v3513 = vsub.f32 %v825, %v3512
        %v3514 = vand.u32 %v3513, 4294901760
        %3515 = vmatpush.msra.mxu0 %v3514
        %v3516 = vand.u32 %v823, 4294901760
        %v3517 = vsub.f32 %v823, %v3516
        %v3518 = vand.u32 %v3517, 4294901760
        %3519 = vmatpush.msra.mxu0 %v3518
        %v3520 = vand.u32 %v821, 4294901760
        %v3521 = vsub.f32 %v821, %v3520
        %v3522 = vand.u32 %v3521, 4294901760
        %3523 = vmatpush.msra.mxu0 %v3522
        %v3524 = vand.u32 %v819, 4294901760
        %v3525 = vsub.f32 %v819, %v3524
        %v3526 = vand.u32 %v3525, 4294901760
        %3527 = vmatpush.msra.mxu0 %v3526
        %v3528 = vand.u32 %v817, 4294901760
        %v3529 = vsub.f32 %v817, %v3528
        %v3530 = vand.u32 %v3529, 4294901760
        %3531 = vmatpush.msra.mxu0 %v3530
        %v3532 = vand.u32 %v815, 4294901760
        %v3533 = vsub.f32 %v815, %v3532
        %v3534 = vand.u32 %v3533, 4294901760
        %3535 = vmatpush.msra.mxu0 %v3534
        %v3536 = vand.u32 %v813, 4294901760
        %v3537 = vsub.f32 %v813, %v3536
        %v3538 = vand.u32 %v3537, 4294901760
        %3539 = vmatpush.msra.mxu0 %v3538
        %v3540 = vand.u32 %v811, 4294901760
        %v3541 = vsub.f32 %v811, %v3540
        %v3542 = vand.u32 %v3541, 4294901760
        %3543 = vmatpush.msra.mxu0 %v3542
        %v3544 = vand.u32 %v809, 4294901760
        %v3545 = vsub.f32 %v809, %v3544
        %v3546 = vand.u32 %v3545, 4294901760
        %3547 = vmatpush.msra.mxu0 %v3546
        %v3548 = vand.u32 %v807, 4294901760
        %v3549 = vsub.f32 %v807, %v3548
        %v3550 = vand.u32 %v3549, 4294901760
        %3551 = vmatpush.msra.mxu0 %v3550
        %v3552 = vand.u32 %v805, 4294901760
        %v3553 = vsub.f32 %v805, %v3552
        %v3554 = vand.u32 %v3553, 4294901760
        %3555 = vmatpush.msra.mxu0 %v3554
        %v3556 = vand.u32 %v803, 4294901760
        %v3557 = vsub.f32 %v803, %v3556
        %v3558 = vand.u32 %v3557, 4294901760
        %3559 = vmatpush.msra.mxu0 %v3558
        %v3560 = vand.u32 %v801, 4294901760
        %v3561 = vsub.f32 %v801, %v3560
        %v3562 = vand.u32 %v3561, 4294901760
        %3563 = vmatpush.msra.mxu0 %v3562
        %v3564 = vand.u32 %v799, 4294901760
        %v3565 = vsub.f32 %v799, %v3564
        %v3566 = vand.u32 %v3565, 4294901760
        %3567 = vmatpush.msra.mxu0 %v3566
        %v3568 = vand.u32 %v797, 4294901760
        %v3569 = vsub.f32 %v797, %v3568
        %v3570 = vand.u32 %v3569, 4294901760
        %3571 = vmatpush.msra.mxu0 %v3570
        %v3572 = vand.u32 %v795, 4294901760
        %v3573 = vsub.f32 %v795, %v3572
        %v3574 = vand.u32 %v3573, 4294901760
        %3575 = vmatpush.msra.mxu0 %v3574
        %v3576 = vand.u32 %v743, 4294901760
        %3577 = vmatmul.f32.gmra.mxu0 %v3576
        %v3578 = vpop.f32.mrf.mxu0
        %v3579 = vadd.f32 %v3510, %v3578
        %3580 = vdwg.mxu0
        %v3581 = vand.u32 %v825, 4294901760
        %3582 = vmatpush.msra.mxu0 %v3581
        %v3583 = vand.u32 %v823, 4294901760
        %3584 = vmatpush.msra.mxu0 %v3583
        %v3585 = vand.u32 %v821, 4294901760
        %3586 = vmatpush.msra.mxu0 %v3585
        %v3587 = vand.u32 %v819, 4294901760
        %3588 = vmatpush.msra.mxu0 %v3587
        %v3589 = vand.u32 %v817, 4294901760
        %3590 = vmatpush.msra.mxu0 %v3589
        %v3591 = vand.u32 %v815, 4294901760
        %3592 = vmatpush.msra.mxu0 %v3591
        %v3593 = vand.u32 %v813, 4294901760
        %3594 = vmatpush.msra.mxu0 %v3593
        %v3595 = vand.u32 %v811, 4294901760
        %3596 = vmatpush.msra.mxu0 %v3595
        %v3597 = vand.u32 %v809, 4294901760
        %3598 = vmatpush.msra.mxu0 %v3597
        %v3599 = vand.u32 %v807, 4294901760
        %3600 = vmatpush.msra.mxu0 %v3599
        %v3601 = vand.u32 %v805, 4294901760
        %3602 = vmatpush.msra.mxu0 %v3601
        %v3603 = vand.u32 %v803, 4294901760
        %3604 = vmatpush.msra.mxu0 %v3603
        %v3605 = vand.u32 %v801, 4294901760
        %3606 = vmatpush.msra.mxu0 %v3605
        %v3607 = vand.u32 %v799, 4294901760
        %3608 = vmatpush.msra.mxu0 %v3607
        %v3609 = vand.u32 %v797, 4294901760
        %3610 = vmatpush.msra.mxu0 %v3609
        %v3611 = vand.u32 %v795, 4294901760
        %3612 = vmatpush.msra.mxu0 %v3611
        %v3613 = vand.u32 %v743, 4294901760
        %3614 = vmatmul.f32.gmra.mxu0 %v3613
        %v3615 = vpop.f32.mrf.mxu0
        %v3616 = vadd.f32 %v3579, %v3615
        %3617 = vdwg.mxu0
        %v3618 = vxor.u32 %v2934, 2147483648
        %v3619 = vxor.u32 %v3616, 2147483648
        %v3620 = vmul.f32 %v3618, 1.442695
        %v3621 = vpow.pop %v3620
        %v3622 = vmul.f32 %v3619, 1.442695
        %v3623 = vpow.pop %v3622
        %v3624 = vadd.f32 %v3621, 1.0
        %v3625 = vadd.f32 %v3623, 1.0
        %v3626 = vrcp.pop %v3624
        %v3627 = vmul.f32 %v3624, %v3626
        %v3628 = vsub.f32 1.0, %v3627
        %v3629 = vmul.f32 %v3626, %v3628
        %v3630 = vadd.f32 %v3626, %v3629
        %vm3631 = vweird.f32 %v3624
        %vm3632 = vweird.f32 %v3626
        %vm3633 = vmor %vm3631, %vm3632
        %v3634 = vsel %vm3633, %v3626, %v3630
        %v3635 = vand.u32 2147483647, %v3624
        %vm3636 = vcmp.eq.f32.partialorder %v3635, 8.507059e+37
        %v3637 = vand.u32 %v3624, 2147483648
        %v3638 = vor.u32 1.1754944e-38, %v3637
        %v3639 = vsel %vm3636, %v3638, %v3634
        %v3640 = vmul.f32 1.0, %v3639
        %v3641 = vrcp.pop %v3625
        %v3642 = vmul.f32 %v3625, %v3641
        %v3643 = vsub.f32 1.0, %v3642
        %v3644 = vmul.f32 %v3641, %v3643
        %v3645 = vadd.f32 %v3641, %v3644
        %vm3646 = vweird.f32 %v3625
        %vm3647 = vweird.f32 %v3641
        %vm3648 = vmor %vm3646, %vm3647
        %v3649 = vsel %vm3648, %v3641, %v3645
        %v3650 = vand.u32 2147483647, %v3625
        %vm3651 = vcmp.eq.f32.partialorder %v3650, 8.507059e+37
        %v3652 = vand.u32 %v3625, 2147483648
        %v3653 = vor.u32 1.1754944e-38, %v3652
        %v3654 = vsel %vm3651, %v3653, %v3649
        %v3655 = vmul.f32 1.0, %v3654
        %v3656 = vperm.slane %v3640, 0
        %v3657 = vperm.slane %v3655, 0
        %v3658 = vmul.f32 %v709, %v3656
        %v3659 = vmul.f32 %v710, %v3657
        %v3660 = vmul.f32 %v711, %v3656
        %v3661 = vmul.f32 %v712, %v3657
        %v3662 = vmul.f32 %v713, %v3656
        %v3663 = vmul.f32 %v714, %v3657
        %v3664 = vmul.f32 %v715, %v3656
        %v3665 = vmul.f32 %v716, %v3657
        %3666 = vst [vmem:[%s241] sm:$0xff] %v3658
        %3667 = vst [vmem:[%s241 + $0x8] sm:$0xff] %v3659
        %3668 = vst [vmem:[%s241 + $0x10] sm:$0xff] %v3660
        %3669 = vst [vmem:[%s241 + $0x18] sm:$0xff] %v3661
        %3670 = vst [vmem:[%s241 + $0x20] sm:$0xff] %v3662
        %3671 = vst [vmem:[%s241 + $0x28] sm:$0xff] %v3663
        %3672 = vst [vmem:[%s241 + $0x30] sm:$0xff] %v3664
        %3673 = vst [vmem:[%s241 + $0x38] sm:$0xff] %v3665
        %p3674 = scmp.lt.s32.totalorder %s17, 1
        %s3675 = scalar_select %p3674, %s17, 1
        %s3676 = smul.addr %s3675, 8
        %s3677 = smul.addr %s3676, 8
        %s3678 = scalar_lea.vmem %s5, %s3677
        // Predicated region
        $region45: #{cbam_forward.1} parent=39 // pred_check
          %p3679 = pneg %p145
        $region46: #{cbam_forward.1} parent=39 // pred_check_branch
          %3681 = sbr.rel (%p3679) target = $region48
        $region47: #{cbam_forward.1} parent=39 // pred_region
          _
        $region48: #{cbam_forward.1} parent=39 // pred_fallthru
          _
      $region40: #{cbam_forward.1} parent=5 // pred_fallthru
        _
      %p3682 = scmp.le.s32.totalorder 2, %s12
      // Predicated region
      $region49: #{cbam_forward.1} parent=5 // pred_check
        %p3683 = pneg %p3682
      $region50: #{cbam_forward.1} parent=5 // pred_check_branch
        %3685 = sbr.rel (%p3683) target = $region52
      $region51: #{cbam_forward.1} parent=5 // pred_region
        %s3686 = ssub.s32 %s12, 2
        // Predicated region
        $region53: #{cbam_forward.1} parent=51 // pred_check
          %p3687 = pneg %p151
        $region54: #{cbam_forward.1} parent=51 // pred_check_branch
          %3689 = sbr.rel (%p3687) target = $region56
        $region55: #{cbam_forward.1} parent=51 // pred_region
          %p3690 = scmp.lt.s32.totalorder %s18, 1
          %s3691 = scalar_select %p3690, %s18, 1
          %s3692 = smul.addr %s3691, 8
          %s3693 = smul.addr %s3692, 8
          %s3694 = scalar_lea.vmem %s5, %s3693
        $region56: #{cbam_forward.1} parent=51 // pred_fallthru
          _
      $region52: #{cbam_forward.1} parent=5 // pred_fallthru
        _
    $region6: #{cbam_forward.1} parent=1 // loop_footer
      %s16 = sadd.s32 1, %s12
    $region7: #{cbam_forward.1} parent=1 // loop_footer_branch
      %11 = sbr.rel target = $region3
    $region8: #{cbam_forward.1} parent=1 // loop_exit
      _
    %3695 = vsyncpa [#allocation3], 1
    %s3696 = scalar_lea.sflag [#allocation3], 1
    %3697 = vsyncpa %s3696, 1

</llo_original>
